<compile_context>
chip_gen: v5e
topology: v5e:2x2
jax: 0.10.0
libtpu: 0.0.40
codegen_flags: <defaults>
</compile_context>

<pallas_src>
import jax
import jax.numpy as jnp
from jax.experimental import pallas as pl
from jax.experimental.pallas import tpu as pltpu

_MM_DTYPE = jnp.bfloat16   # matmul operand dtype (accumulation is always f32)


# ------------------------------ fused kernel --------------------------------

def _netseq_kernel(x_ref, m1_ref, b1_ref, p1_ref, m2_ref, b2_ref, p2_ref,
                   wf1_ref, bf1_ref, wf2_ref, bf2_ref, o_ref):
    B = x_ref.shape[1]                 # batch tile (multiple of 16)
    f32 = jnp.float32

    # x tile: (28, B, 28) bf16 = (h, b, w) -> 2D slab, rows (h, b), lanes w.
    x2 = x_ref[...].reshape(28 * B, 28)

    # ---- Conv2d(1, 10, k=5) VALID: sum over kh of banded matmuls over W.
    # rows (ho, b); lanes co*24 + wo
    y1 = b1_ref[...] + jnp.dot(x2[0:24 * B, :], m1_ref[0],
                               preferred_element_type=f32)
    for kh in range(1, 5):
        y1 = y1 + jnp.dot(x2[kh * B:(kh + 24) * B, :], m1_ref[kh],
                          preferred_element_type=f32)

    # ---- MaxPool2d(2) + ReLU.
    # H-pool first (VPU max over aligned B-row blocks) -> halves the rows fed
    # to the selector matmul.
    t1 = y1.reshape(12, 2 * B, 240)
    hp1 = jnp.maximum(t1[:, :B, :], t1[:, B:, :]).reshape(12 * B, 240)
    # W-pool: lane j <- max(lane j, lane j+1) via an XLU roll (shift = width-1
    # == roll by -1), then ONE exact 0/1 even-lane selector matmul in bf16.
    mx1 = jnp.maximum(hp1, pltpu.roll(hp1, shift=hp1.shape[-1] - 1, axis=1))
    h1 = jnp.maximum(jnp.dot(mx1.astype(_MM_DTYPE), p1_ref[...],
                             preferred_element_type=f32), 0.0)
    h1 = h1.astype(_MM_DTYPE)          # (12B, 120): rows (h, b); lanes c*12 + w

    # ---- Conv2d(10, 20, k=5) VALID (Dropout2d: identity in eval mode).
    y2 = b2_ref[...] + jnp.dot(h1[0:8 * B, :], m2_ref[0],
                               preferred_element_type=f32)
    for kh in range(1, 5):
        y2 = y2 + jnp.dot(h1[kh * B:(kh + 8) * B, :], m2_ref[kh],
                          preferred_element_type=f32)
    # y2: (8B, 160): rows (ho, b); lanes co*8 + wo

    # ---- MaxPool2d(2) + ReLU (same H-pool -> roll -> bf16 selector scheme).
    t2 = y2.reshape(4, 2 * B, 160)
    hp2 = jnp.maximum(t2[:, :B, :], t2[:, B:, :]).reshape(4 * B, 160)
    mx2 = jnp.maximum(hp2, pltpu.roll(hp2, shift=hp2.shape[-1] - 1, axis=1))
    h2 = jnp.maximum(jnp.dot(mx2.astype(_MM_DTYPE), p2_ref[...],
                             preferred_element_type=f32), 0.0)
    h2 = h2.astype(_MM_DTYPE)          # (4B, 80): rows (h, b); lanes c*4 + w

    # ---- Linear(320, 50) + ReLU (Dropout: identity).  The PyTorch (c, h, w)
    # flatten order is folded into wf1_ref's host-side layout, so this is a
    # sum of per-h matmuls -- no in-kernel transpose / flatten.
    z1 = jnp.dot(h2[0:B, :], wf1_ref[0], preferred_element_type=f32)
    for h in range(1, 4):
        z1 = z1 + jnp.dot(h2[h * B:(h + 1) * B, :], wf1_ref[h],
                          preferred_element_type=f32)
    z1 = jnp.maximum(z1 + bf1_ref[...], 0.0)

    # ---- Linear(50, 10) + LogSoftmax(dim=1).
    z2 = jnp.dot(z1.astype(_MM_DTYPE), wf2_ref[...],
                 preferred_element_type=f32) + bf2_ref[...]
    z = z2 - jnp.max(z2, axis=-1, keepdims=True)
    o_ref[...] = z - jnp.log(jnp.sum(jnp.exp(z), axis=-1, keepdims=True))


# --------------------------- host-side weight prep --------------------------

def _banded_conv_weights(w, w_in, w_out):
    """(C_out, C_in, KH, KW) -> (KH, C_in*w_in, C_out*w_out) banded matrices.

    M[kh, ci*w_in + wi, co*w_out + wo] = w[co, ci, kh, wi - wo] (0 <= wi-wo < KW)
    so for X[row, ci*w_in + wi] = act[b, ci, ho + kh, wi]:
      sum_kh (X_kh @ M[kh])[row, co*w_out + wo] == Conv2d(act)[b, co, ho, wo].
    """
    c_out, c_in, kh_, kw_ = w.shape
    wi = jnp.arange(w_in)
    wo = jnp.arange(w_out)
    k = wi[None, :] - wo[:, None]                        # (w_out, w_in)
    valid = (k >= 0) & (k < kw_)
    g = w[:, :, :, jnp.clip(k, 0, kw_ - 1)]              # (c_out, c_in, KH, w_out, w_in)
    g = g * valid[None, None, None].astype(w.dtype)
    m = jnp.transpose(g, (2, 1, 4, 0, 3))                # (KH, c_in, w_in, c_out, w_out)
    return m.reshape(kh_, c_in * w_in, c_out * w_out)


def _pool_even_selector(c, w):
    """Exact 0/1 selector (c*w, c*w//2) picking even lanes within each c-block.

    0/1 values are exact in bf16, so the selector matmul runs at full MXU rate.
    """
    wh = w // 2
    rows = jnp.arange(c * w)
    cols = jnp.arange(c * wh)
    rc, rw = rows // w, rows % w
    cc, cj = cols // wh, cols % wh
    sel = (rc[:, None] == cc[None, :]) & (rw[:, None] == 2 * cj[None, :])
    return sel.astype(_MM_DTYPE)


def prepare_params(params):
    """One-time repack of the PyTorch-layout weights into kernel layout."""
    w1, b1, w2, b2, wf1, bf1, wf2, bf2 = params
    m1 = _banded_conv_weights(w1, 28, 24).astype(_MM_DTYPE)        # (5, 28, 240)
    m2 = _banded_conv_weights(w2, 12, 8).astype(_MM_DTYPE)         # (5, 120, 160)
    b1r = jnp.repeat(b1, 24)[None, :].astype(jnp.float32)          # (1, 240)
    b2r = jnp.repeat(b2, 8)[None, :].astype(jnp.float32)           # (1, 160)
    p1 = _pool_even_selector(10, 24)                               # (240, 120) bf16
    p2 = _pool_even_selector(20, 8)                                # (160, 80)  bf16
    # Fold the PyTorch (c, h, w) flatten order into fc1: [h, c*4+w, j].
    wf1h = jnp.transpose(wf1.reshape(50, 20, 4, 4), (2, 1, 3, 0)).reshape(4, 80, 50)
    wf1h = wf1h.astype(_MM_DTYPE)
    wf2t = wf2.T.astype(_MM_DTYPE)                                 # (50, 10)
    return (m1, b1r, p1, m2, b2r, p2,
            wf1h, bf1[None, :].astype(jnp.float32),
            wf2t, bf2[None, :].astype(jnp.float32))


# ------------------------------- forward pass --------------------------------

def _round_up(n, m):
    return (n + m - 1) // m * m


def net_seq_forward(x, prepped, *, block_batch=256):
    """x: (N, 1, 28, 28) f32 -> (N, 10) log-probabilities."""
    n = x.shape[0]
    # Batch tile: multiple of 16 (bf16 sublane packing); large tiles amortize
    # the per-grid-step overhead and raise matmul M.
    tb = min(_round_up(block_batch, 16), _round_up(n, 16))
    n_pad = _round_up(n, tb)
    # (N,1,28,28) -> (28, N_pad, 28) = (h, b, w) in bf16: halves the only
    # recurring HBM stream and removes all per-slice casts inside the kernel.
    xt = jnp.transpose(x.reshape(n, 28, 28), (1, 0, 2)).astype(_MM_DTYPE)
    if n_pad != n:
        xt = jnp.pad(xt, ((0, 0), (0, n_pad - n), (0, 0)))

    def _const_spec(a):
        # Constant weights (~0.5 MiB total): full block, index never changes,
        # so they are DMA'd once and stay VMEM-resident for the whole grid.
        return pl.BlockSpec(a.shape, lambda *_: (0,) * a.ndim)

    consts = prepped
    out = pl.pallas_call(
        _netseq_kernel,
        out_shape=jax.ShapeDtypeStruct((n_pad, 10), jnp.float32),
        grid_spec=pltpu.PrefetchScalarGridSpec(
            num_scalar_prefetch=0,
            grid=(n_pad // tb,),
            in_specs=[pl.BlockSpec((28, tb, 28), lambda i: (0, i, 0))]
                     + [_const_spec(a) for a in consts],
            out_specs=pl.BlockSpec((tb, 10), lambda i: (i, 0)),
        ),
        compiler_params=pltpu.CompilerParams(
            dimension_semantics=("parallel",),
            # ~25 MiB measured working set at tb=256; 56 MiB leaves headroom
            # yet stays below v7x's 64 MiB physical VMEM per TensorCore.
            vmem_limit_bytes=56 * 1024 * 1024),
    )(xt, *consts)
    return out[:n]


# ------------------------------ params / reference ---------------------------

def init_params(key):
    ks = jax.random.split(key, 8)
    w1 = jax.random.normal(ks[0], (10, 1, 5, 5), jnp.float32) * 0.1
    b1 = jax.random.normal(ks[1], (10,), jnp.float32) * 0.1
    w2 = jax.random.normal(ks[2], (20, 10, 5, 5), jnp.float32) * 0.05
    b2 = jax.random.normal(ks[3], (20,), jnp.float32) * 0.05
    wf1 = jax.random.normal(ks[4], (50, 320), jnp.float32) * 0.05
    bf1 = jax.random.normal(ks[5], (50,), jnp.float32) * 0.05
    wf2 = jax.random.normal(ks[6], (10, 50), jnp.float32) * 0.1
    bf2 = jax.random.normal(ks[7], (10,), jnp.float32) * 0.1
    return (w1, b1, w2, b2, wf1, bf1, wf2, bf2)


def ref_forward(x, params):
    w1, b1, w2, b2, wf1, bf1, wf2, bf2 = params
    dn = ('NCHW', 'OIHW', 'NCHW')
    y = jax.lax.conv_general_dilated(x, w1, (1, 1), 'VALID', dimension_numbers=dn)
    y = y + b1[None, :, None, None]
    y = jax.lax.reduce_window(y, -jnp.inf, jax.lax.max, (1, 1, 2, 2), (1, 1, 2, 2), 'VALID')
    y = jax.nn.relu(y)
    y = jax.lax.conv_general_dilated(y, w2, (1, 1), 'VALID', dimension_numbers=dn)
    y = y + b2[None, :, None, None]
    y = jax.lax.reduce_window(y, -jnp.inf, jax.lax.max, (1, 1, 2, 2), (1, 1, 2, 2), 'VALID')
    y = jax.nn.relu(y)
    y = y.reshape(y.shape[0], 320)
    y = jax.nn.relu(y @ wf1.T + bf1)
    y = y @ wf2.T + bf2
    return jax.nn.log_softmax(y, axis=1)


if __name__ == "__main__":
    key = jax.random.PRNGKey(0)
    kx, kp = jax.random.split(key)
    params = init_params(kp)
    prepped = prepare_params(params)

    # --- small correctness check (batch=2, single grid step of tb=16) ------
    x = jax.random.normal(kx, (2, 1, 28, 28), jnp.float32)
    out = jax.block_until_ready(net_seq_forward(x, prepped))
    ref = jax.block_until_ready(ref_forward(x, params))
    assert out.shape == (2, 10), out.shape
    assert bool(jnp.all(jnp.isfinite(out)))
    # bf16 matmul operands (f32 accumulate) vs. the f32 XLA reference.
    err = float(jnp.max(jnp.abs(out - ref)))
    assert err < 3e-2, err

    # --- production-tile smoke test (batch=512 -> 2 grid steps of tb=256) --
    x_big = jax.random.normal(kx, (512, 1, 28, 28), jnp.float32)
    out_b = jax.block_until_ready(net_seq_forward(x_big, prepped))
    ref_b = jax.block_until_ready(ref_forward(x_big, params))
    assert out_b.shape == (512, 10), out_b.shape
    assert bool(jnp.all(jnp.isfinite(out_b)))
    # Looser bound: max-error tail grows with 5120 bf16-rounded outputs; this
    # still catches any tiling/layout error (those are O(0.5+)).
    err_b = float(jnp.max(jnp.abs(out_b - ref_b)))
    assert err_b < 1e-1, err_b

    print("KERNEL_OK")
</pallas_src>

<mosaic_0001>
module attributes {stable_mosaic.version = 11 : i64} {
  func.func @_netseq_kernel(%arg0: i32, %arg1: memref<28x16x28xbf16, #tpu.memory_space<vmem>>, %arg2: memref<5x28x240xbf16, #tpu.memory_space<vmem>>, %arg3: memref<1x240xf32, #tpu.memory_space<vmem>>, %arg4: memref<240x120xbf16, #tpu.memory_space<vmem>>, %arg5: memref<5x120x160xbf16, #tpu.memory_space<vmem>>, %arg6: memref<1x160xf32, #tpu.memory_space<vmem>>, %arg7: memref<160x80xbf16, #tpu.memory_space<vmem>>, %arg8: memref<4x80x50xbf16, #tpu.memory_space<vmem>>, %arg9: memref<1x50xf32, #tpu.memory_space<vmem>>, %arg10: memref<50x10xbf16, #tpu.memory_space<vmem>>, %arg11: memref<1x10xf32, #tpu.memory_space<vmem>>, %arg12: memref<16x10xf32, #tpu.memory_space<vmem>>) attributes {dimension_semantics = [#tpu.dimension_semantics<parallel>], iteration_bounds = array<i64: 1>, scalar_prefetch = 0 : i64, scratch_operands = 0 : i64, tpu.core_type = #tpu.core_type<tc>, window_params = [{transform_indices = @transform_0, window_bounds = array<i64: 28, 16, 28>}, {pipeline_mode = #tpu.pipeline_mode<synchronous>, transform_indices = @transform_1, window_bounds = array<i64: 5, 28, 240>}, {pipeline_mode = #tpu.pipeline_mode<synchronous>, transform_indices = @transform_2, window_bounds = array<i64: 1, 240>}, {pipeline_mode = #tpu.pipeline_mode<synchronous>, transform_indices = @transform_3, window_bounds = array<i64: 240, 120>}, {pipeline_mode = #tpu.pipeline_mode<synchronous>, transform_indices = @transform_4, window_bounds = array<i64: 5, 120, 160>}, {pipeline_mode = #tpu.pipeline_mode<synchronous>, transform_indices = @transform_5, window_bounds = array<i64: 1, 160>}, {pipeline_mode = #tpu.pipeline_mode<synchronous>, transform_indices = @transform_6, window_bounds = array<i64: 160, 80>}, {pipeline_mode = #tpu.pipeline_mode<synchronous>, transform_indices = @transform_7, window_bounds = array<i64: 4, 80, 50>}, {pipeline_mode = #tpu.pipeline_mode<synchronous>, transform_indices = @transform_8, window_bounds = array<i64: 1, 50>}, {pipeline_mode = #tpu.pipeline_mode<synchronous>, transform_indices = @transform_9, window_bounds = array<i64: 50, 10>}, {pipeline_mode = #tpu.pipeline_mode<synchronous>, transform_indices = @transform_10, window_bounds = array<i64: 1, 10>}, {transform_indices = @transform_11, window_bounds = array<i64: 16, 10>}]} {
    %c0 = arith.constant 0 : index
    %c0_0 = arith.constant 0 : index
    %c0_1 = arith.constant 0 : index
    %0 = vector.load %arg1[%c0, %c0_0, %c0_1] : memref<28x16x28xbf16, #tpu.memory_space<vmem>>, vector<28x16x28xbf16>
    %1 = vector.shape_cast %0 : vector<28x16x28xbf16> to vector<448x28xbf16>
    %c0_2 = arith.constant 0 : index
    %c0_3 = arith.constant 0 : index
    %2 = vector.load %arg3[%c0_2, %c0_3] : memref<1x240xf32, #tpu.memory_space<vmem>>, vector<1x240xf32>
    %3 = vector.extract_strided_slice %1 {offsets = [0, 0], sizes = [384, 28], strides = [1, 1]} : vector<448x28xbf16> to vector<384x28xbf16>
    %c0_4 = arith.constant 0 : index
    %c0_5 = arith.constant 0 : index
    %c0_6 = arith.constant 0 : index
    %4 = vector.load %arg2[%c0_4, %c0_5, %c0_6] : memref<5x28x240xbf16, #tpu.memory_space<vmem>>, vector<1x28x240xbf16>
    %5 = vector.shape_cast %4 : vector<1x28x240xbf16> to vector<28x240xbf16>
    %cst = arith.constant dense<0.000000e+00> : vector<384x240xf32>
    %6 = tpu.matmul %3, %5, %cst {dimension_numbers = #tpu.dot_dimension_numbers<[1], [0], [0], [1], [0, 0, 1, 1], [], []>} : vector<384x28xbf16>, vector<28x240xbf16>, vector<384x240xf32> -> vector<384x240xf32>
    %7 = vector.broadcast %2 : vector<1x240xf32> to vector<384x240xf32>
    %8 = arith.addf %7, %6 : vector<384x240xf32>
    %9 = vector.extract_strided_slice %1 {offsets = [16, 0], sizes = [384, 28], strides = [1, 1]} : vector<448x28xbf16> to vector<384x28xbf16>
    %c1 = arith.constant 1 : index
    %c0_7 = arith.constant 0 : index
    %c0_8 = arith.constant 0 : index
    %10 = vector.load %arg2[%c1, %c0_7, %c0_8] : memref<5x28x240xbf16, #tpu.memory_space<vmem>>, vector<1x28x240xbf16>
    %11 = vector.shape_cast %10 : vector<1x28x240xbf16> to vector<28x240xbf16>
    %cst_9 = arith.constant dense<0.000000e+00> : vector<384x240xf32>
    %12 = tpu.matmul %9, %11, %cst_9 {dimension_numbers = #tpu.dot_dimension_numbers<[1], [0], [0], [1], [0, 0, 1, 1], [], []>} : vector<384x28xbf16>, vector<28x240xbf16>, vector<384x240xf32> -> vector<384x240xf32>
    %13 = arith.addf %8, %12 : vector<384x240xf32>
    %14 = vector.extract_strided_slice %1 {offsets = [32, 0], sizes = [384, 28], strides = [1, 1]} : vector<448x28xbf16> to vector<384x28xbf16>
    %c2 = arith.constant 2 : index
    %c0_10 = arith.constant 0 : index
    %c0_11 = arith.constant 0 : index
    %15 = vector.load %arg2[%c2, %c0_10, %c0_11] : memref<5x28x240xbf16, #tpu.memory_space<vmem>>, vector<1x28x240xbf16>
    %16 = vector.shape_cast %15 : vector<1x28x240xbf16> to vector<28x240xbf16>
    %cst_12 = arith.constant dense<0.000000e+00> : vector<384x240xf32>
    %17 = tpu.matmul %14, %16, %cst_12 {dimension_numbers = #tpu.dot_dimension_numbers<[1], [0], [0], [1], [0, 0, 1, 1], [], []>} : vector<384x28xbf16>, vector<28x240xbf16>, vector<384x240xf32> -> vector<384x240xf32>
    %18 = arith.addf %13, %17 : vector<384x240xf32>
    %19 = vector.extract_strided_slice %1 {offsets = [48, 0], sizes = [384, 28], strides = [1, 1]} : vector<448x28xbf16> to vector<384x28xbf16>
    %c3 = arith.constant 3 : index
    %c0_13 = arith.constant 0 : index
    %c0_14 = arith.constant 0 : index
    %20 = vector.load %arg2[%c3, %c0_13, %c0_14] : memref<5x28x240xbf16, #tpu.memory_space<vmem>>, vector<1x28x240xbf16>
    %21 = vector.shape_cast %20 : vector<1x28x240xbf16> to vector<28x240xbf16>
    %cst_15 = arith.constant dense<0.000000e+00> : vector<384x240xf32>
    %22 = tpu.matmul %19, %21, %cst_15 {dimension_numbers = #tpu.dot_dimension_numbers<[1], [0], [0], [1], [0, 0, 1, 1], [], []>} : vector<384x28xbf16>, vector<28x240xbf16>, vector<384x240xf32> -> vector<384x240xf32>
    %23 = arith.addf %18, %22 : vector<384x240xf32>
    %24 = vector.extract_strided_slice %1 {offsets = [64, 0], sizes = [384, 28], strides = [1, 1]} : vector<448x28xbf16> to vector<384x28xbf16>
    %c4 = arith.constant 4 : index
    %c0_16 = arith.constant 0 : index
    %c0_17 = arith.constant 0 : index
    %25 = vector.load %arg2[%c4, %c0_16, %c0_17] : memref<5x28x240xbf16, #tpu.memory_space<vmem>>, vector<1x28x240xbf16>
    %26 = vector.shape_cast %25 : vector<1x28x240xbf16> to vector<28x240xbf16>
    %cst_18 = arith.constant dense<0.000000e+00> : vector<384x240xf32>
    %27 = tpu.matmul %24, %26, %cst_18 {dimension_numbers = #tpu.dot_dimension_numbers<[1], [0], [0], [1], [0, 0, 1, 1], [], []>} : vector<384x28xbf16>, vector<28x240xbf16>, vector<384x240xf32> -> vector<384x240xf32>
    %28 = arith.addf %23, %27 : vector<384x240xf32>
    %29 = vector.shape_cast %28 : vector<384x240xf32> to vector<12x32x240xf32>
    %30 = vector.extract_strided_slice %29 {offsets = [0, 0, 0], sizes = [12, 16, 240], strides = [1, 1, 1]} : vector<12x32x240xf32> to vector<12x16x240xf32>
    %31 = vector.extract_strided_slice %29 {offsets = [0, 16, 0], sizes = [12, 16, 240], strides = [1, 1, 1]} : vector<12x32x240xf32> to vector<12x16x240xf32>
    %32 = arith.maximumf %30, %31 : vector<12x16x240xf32>
    %33 = vector.shape_cast %32 : vector<12x16x240xf32> to vector<192x240xf32>
    %c239_i32 = arith.constant 239 : i32
    %34 = tpu.dynamic_rotate %33 by %c239_i32 dim 1 : vector<192x240xf32>, i32 -> vector<192x240xf32>
    %35 = arith.maximumf %33, %34 : vector<192x240xf32>
    %36 = arith.truncf %35 : vector<192x240xf32> to vector<192x240xbf16>
    %c0_19 = arith.constant 0 : index
    %c0_20 = arith.constant 0 : index
    %37 = vector.load %arg4[%c0_19, %c0_20] : memref<240x120xbf16, #tpu.memory_space<vmem>>, vector<240x120xbf16>
    %cst_21 = arith.constant dense<0.000000e+00> : vector<192x120xf32>
    %38 = tpu.matmul %36, %37, %cst_21 {dimension_numbers = #tpu.dot_dimension_numbers<[1], [0], [0], [1], [0, 0, 1, 1], [], []>} : vector<192x240xbf16>, vector<240x120xbf16>, vector<192x120xf32> -> vector<192x120xf32>
    %cst_22 = arith.constant 0.000000e+00 : f32
    %39 = vector.broadcast %cst_22 : f32 to vector<192x120xf32>
    %40 = arith.maximumf %38, %39 : vector<192x120xf32>
    %41 = arith.truncf %40 : vector<192x120xf32> to vector<192x120xbf16>
    %c0_23 = arith.constant 0 : index
    %c0_24 = arith.constant 0 : index
    %42 = vector.load %arg6[%c0_23, %c0_24] : memref<1x160xf32, #tpu.memory_space<vmem>>, vector<1x160xf32>
    %43 = vector.extract_strided_slice %41 {offsets = [0, 0], sizes = [128, 120], strides = [1, 1]} : vector<192x120xbf16> to vector<128x120xbf16>
    %c0_25 = arith.constant 0 : index
    %c0_26 = arith.constant 0 : index
    %c0_27 = arith.constant 0 : index
    %44 = vector.load %arg5[%c0_25, %c0_26, %c0_27] : memref<5x120x160xbf16, #tpu.memory_space<vmem>>, vector<1x120x160xbf16>
    %45 = vector.shape_cast %44 : vector<1x120x160xbf16> to vector<120x160xbf16>
    %cst_28 = arith.constant dense<0.000000e+00> : vector<128x160xf32>
    %46 = tpu.matmul %43, %45, %cst_28 {dimension_numbers = #tpu.dot_dimension_numbers<[1], [0], [0], [1], [0, 0, 1, 1], [], []>} : vector<128x120xbf16>, vector<120x160xbf16>, vector<128x160xf32> -> vector<128x160xf32>
    %47 = vector.broadcast %42 : vector<1x160xf32> to vector<128x160xf32>
    %48 = arith.addf %47, %46 : vector<128x160xf32>
    %49 = vector.extract_strided_slice %41 {offsets = [16, 0], sizes = [128, 120], strides = [1, 1]} : vector<192x120xbf16> to vector<128x120xbf16>
    %c1_29 = arith.constant 1 : index
    %c0_30 = arith.constant 0 : index
    %c0_31 = arith.constant 0 : index
    %50 = vector.load %arg5[%c1_29, %c0_30, %c0_31] : memref<5x120x160xbf16, #tpu.memory_space<vmem>>, vector<1x120x160xbf16>
    %51 = vector.shape_cast %50 : vector<1x120x160xbf16> to vector<120x160xbf16>
    %cst_32 = arith.constant dense<0.000000e+00> : vector<128x160xf32>
    %52 = tpu.matmul %49, %51, %cst_32 {dimension_numbers = #tpu.dot_dimension_numbers<[1], [0], [0], [1], [0, 0, 1, 1], [], []>} : vector<128x120xbf16>, vector<120x160xbf16>, vector<128x160xf32> -> vector<128x160xf32>
    %53 = arith.addf %48, %52 : vector<128x160xf32>
    %54 = vector.extract_strided_slice %41 {offsets = [32, 0], sizes = [128, 120], strides = [1, 1]} : vector<192x120xbf16> to vector<128x120xbf16>
    %c2_33 = arith.constant 2 : index
    %c0_34 = arith.constant 0 : index
    %c0_35 = arith.constant 0 : index
    %55 = vector.load %arg5[%c2_33, %c0_34, %c0_35] : memref<5x120x160xbf16, #tpu.memory_space<vmem>>, vector<1x120x160xbf16>
    %56 = vector.shape_cast %55 : vector<1x120x160xbf16> to vector<120x160xbf16>
    %cst_36 = arith.constant dense<0.000000e+00> : vector<128x160xf32>
    %57 = tpu.matmul %54, %56, %cst_36 {dimension_numbers = #tpu.dot_dimension_numbers<[1], [0], [0], [1], [0, 0, 1, 1], [], []>} : vector<128x120xbf16>, vector<120x160xbf16>, vector<128x160xf32> -> vector<128x160xf32>
    %58 = arith.addf %53, %57 : vector<128x160xf32>
    %59 = vector.extract_strided_slice %41 {offsets = [48, 0], sizes = [128, 120], strides = [1, 1]} : vector<192x120xbf16> to vector<128x120xbf16>
    %c3_37 = arith.constant 3 : index
    %c0_38 = arith.constant 0 : index
    %c0_39 = arith.constant 0 : index
    %60 = vector.load %arg5[%c3_37, %c0_38, %c0_39] : memref<5x120x160xbf16, #tpu.memory_space<vmem>>, vector<1x120x160xbf16>
    %61 = vector.shape_cast %60 : vector<1x120x160xbf16> to vector<120x160xbf16>
    %cst_40 = arith.constant dense<0.000000e+00> : vector<128x160xf32>
    %62 = tpu.matmul %59, %61, %cst_40 {dimension_numbers = #tpu.dot_dimension_numbers<[1], [0], [0], [1], [0, 0, 1, 1], [], []>} : vector<128x120xbf16>, vector<120x160xbf16>, vector<128x160xf32> -> vector<128x160xf32>
    %63 = arith.addf %58, %62 : vector<128x160xf32>
    %64 = vector.extract_strided_slice %41 {offsets = [64, 0], sizes = [128, 120], strides = [1, 1]} : vector<192x120xbf16> to vector<128x120xbf16>
    %c4_41 = arith.constant 4 : index
    %c0_42 = arith.constant 0 : index
    %c0_43 = arith.constant 0 : index
    %65 = vector.load %arg5[%c4_41, %c0_42, %c0_43] : memref<5x120x160xbf16, #tpu.memory_space<vmem>>, vector<1x120x160xbf16>
    %66 = vector.shape_cast %65 : vector<1x120x160xbf16> to vector<120x160xbf16>
    %cst_44 = arith.constant dense<0.000000e+00> : vector<128x160xf32>
    %67 = tpu.matmul %64, %66, %cst_44 {dimension_numbers = #tpu.dot_dimension_numbers<[1], [0], [0], [1], [0, 0, 1, 1], [], []>} : vector<128x120xbf16>, vector<120x160xbf16>, vector<128x160xf32> -> vector<128x160xf32>
    %68 = arith.addf %63, %67 : vector<128x160xf32>
    %69 = vector.shape_cast %68 : vector<128x160xf32> to vector<4x32x160xf32>
    %70 = vector.extract_strided_slice %69 {offsets = [0, 0, 0], sizes = [4, 16, 160], strides = [1, 1, 1]} : vector<4x32x160xf32> to vector<4x16x160xf32>
    %71 = vector.extract_strided_slice %69 {offsets = [0, 16, 0], sizes = [4, 16, 160], strides = [1, 1, 1]} : vector<4x32x160xf32> to vector<4x16x160xf32>
    %72 = arith.maximumf %70, %71 : vector<4x16x160xf32>
    %73 = vector.shape_cast %72 : vector<4x16x160xf32> to vector<64x160xf32>
    %c159_i32 = arith.constant 159 : i32
    %74 = tpu.dynamic_rotate %73 by %c159_i32 dim 1 : vector<64x160xf32>, i32 -> vector<64x160xf32>
    %75 = arith.maximumf %73, %74 : vector<64x160xf32>
    %76 = arith.truncf %75 : vector<64x160xf32> to vector<64x160xbf16>
    %c0_45 = arith.constant 0 : index
    %c0_46 = arith.constant 0 : index
    %77 = vector.load %arg7[%c0_45, %c0_46] : memref<160x80xbf16, #tpu.memory_space<vmem>>, vector<160x80xbf16>
    %cst_47 = arith.constant dense<0.000000e+00> : vector<64x80xf32>
    %78 = tpu.matmul %76, %77, %cst_47 {dimension_numbers = #tpu.dot_dimension_numbers<[1], [0], [0], [1], [0, 0, 1, 1], [], []>} : vector<64x160xbf16>, vector<160x80xbf16>, vector<64x80xf32> -> vector<64x80xf32>
    %cst_48 = arith.constant 0.000000e+00 : f32
    %79 = vector.broadcast %cst_48 : f32 to vector<64x80xf32>
    %80 = arith.maximumf %78, %79 : vector<64x80xf32>
    %81 = arith.truncf %80 : vector<64x80xf32> to vector<64x80xbf16>
    %82 = vector.extract_strided_slice %81 {offsets = [0, 0], sizes = [16, 80], strides = [1, 1]} : vector<64x80xbf16> to vector<16x80xbf16>
    %c0_49 = arith.constant 0 : index
    %c0_50 = arith.constant 0 : index
    %c0_51 = arith.constant 0 : index
    %83 = vector.load %arg8[%c0_49, %c0_50, %c0_51] : memref<4x80x50xbf16, #tpu.memory_space<vmem>>, vector<1x80x50xbf16>
    %84 = vector.shape_cast %83 : vector<1x80x50xbf16> to vector<80x50xbf16>
    %cst_52 = arith.constant dense<0.000000e+00> : vector<16x50xf32>
    %85 = tpu.matmul %82, %84, %cst_52 {dimension_numbers = #tpu.dot_dimension_numbers<[1], [0], [0], [1], [0, 0, 1, 1], [], []>} : vector<16x80xbf16>, vector<80x50xbf16>, vector<16x50xf32> -> vector<16x50xf32>
    %86 = vector.extract_strided_slice %81 {offsets = [16, 0], sizes = [16, 80], strides = [1, 1]} : vector<64x80xbf16> to vector<16x80xbf16>
    %c1_53 = arith.constant 1 : index
    %c0_54 = arith.constant 0 : index
    %c0_55 = arith.constant 0 : index
    %87 = vector.load %arg8[%c1_53, %c0_54, %c0_55] : memref<4x80x50xbf16, #tpu.memory_space<vmem>>, vector<1x80x50xbf16>
    %88 = vector.shape_cast %87 : vector<1x80x50xbf16> to vector<80x50xbf16>
    %cst_56 = arith.constant dense<0.000000e+00> : vector<16x50xf32>
    %89 = tpu.matmul %86, %88, %cst_56 {dimension_numbers = #tpu.dot_dimension_numbers<[1], [0], [0], [1], [0, 0, 1, 1], [], []>} : vector<16x80xbf16>, vector<80x50xbf16>, vector<16x50xf32> -> vector<16x50xf32>
    %90 = arith.addf %85, %89 : vector<16x50xf32>
    %91 = vector.extract_strided_slice %81 {offsets = [32, 0], sizes = [16, 80], strides = [1, 1]} : vector<64x80xbf16> to vector<16x80xbf16>
    %c2_57 = arith.constant 2 : index
    %c0_58 = arith.constant 0 : index
    %c0_59 = arith.constant 0 : index
    %92 = vector.load %arg8[%c2_57, %c0_58, %c0_59] : memref<4x80x50xbf16, #tpu.memory_space<vmem>>, vector<1x80x50xbf16>
    %93 = vector.shape_cast %92 : vector<1x80x50xbf16> to vector<80x50xbf16>
    %cst_60 = arith.constant dense<0.000000e+00> : vector<16x50xf32>
    %94 = tpu.matmul %91, %93, %cst_60 {dimension_numbers = #tpu.dot_dimension_numbers<[1], [0], [0], [1], [0, 0, 1, 1], [], []>} : vector<16x80xbf16>, vector<80x50xbf16>, vector<16x50xf32> -> vector<16x50xf32>
    %95 = arith.addf %90, %94 : vector<16x50xf32>
    %96 = vector.extract_strided_slice %81 {offsets = [48, 0], sizes = [16, 80], strides = [1, 1]} : vector<64x80xbf16> to vector<16x80xbf16>
    %c3_61 = arith.constant 3 : index
    %c0_62 = arith.constant 0 : index
    %c0_63 = arith.constant 0 : index
    %97 = vector.load %arg8[%c3_61, %c0_62, %c0_63] : memref<4x80x50xbf16, #tpu.memory_space<vmem>>, vector<1x80x50xbf16>
    %98 = vector.shape_cast %97 : vector<1x80x50xbf16> to vector<80x50xbf16>
    %cst_64 = arith.constant dense<0.000000e+00> : vector<16x50xf32>
    %99 = tpu.matmul %96, %98, %cst_64 {dimension_numbers = #tpu.dot_dimension_numbers<[1], [0], [0], [1], [0, 0, 1, 1], [], []>} : vector<16x80xbf16>, vector<80x50xbf16>, vector<16x50xf32> -> vector<16x50xf32>
    %100 = arith.addf %95, %99 : vector<16x50xf32>
    %c0_65 = arith.constant 0 : index
    %c0_66 = arith.constant 0 : index
    %101 = vector.load %arg9[%c0_65, %c0_66] : memref<1x50xf32, #tpu.memory_space<vmem>>, vector<1x50xf32>
    %102 = vector.broadcast %101 : vector<1x50xf32> to vector<16x50xf32>
    %103 = arith.addf %100, %102 : vector<16x50xf32>
    %cst_67 = arith.constant 0.000000e+00 : f32
    %104 = vector.broadcast %cst_67 : f32 to vector<16x50xf32>
    %105 = arith.maximumf %103, %104 : vector<16x50xf32>
    %106 = arith.truncf %105 : vector<16x50xf32> to vector<16x50xbf16>
    %c0_68 = arith.constant 0 : index
    %c0_69 = arith.constant 0 : index
    %107 = vector.load %arg10[%c0_68, %c0_69] : memref<50x10xbf16, #tpu.memory_space<vmem>>, vector<50x10xbf16>
    %cst_70 = arith.constant dense<0.000000e+00> : vector<16x10xf32>
    %108 = tpu.matmul %106, %107, %cst_70 {dimension_numbers = #tpu.dot_dimension_numbers<[1], [0], [0], [1], [0, 0, 1, 1], [], []>} : vector<16x50xbf16>, vector<50x10xbf16>, vector<16x10xf32> -> vector<16x10xf32>
    %c0_71 = arith.constant 0 : index
    %c0_72 = arith.constant 0 : index
    %109 = vector.load %arg11[%c0_71, %c0_72] : memref<1x10xf32, #tpu.memory_space<vmem>>, vector<1x10xf32>
    %110 = vector.broadcast %109 : vector<1x10xf32> to vector<16x10xf32>
    %111 = arith.addf %108, %110 : vector<16x10xf32>
    %cst_73 = arith.constant dense<0xFF800000> : vector<16xf32>
    %112 = vector.multi_reduction <maximumf>, %111, %cst_73 [1] : vector<16x10xf32> to vector<16xf32>
    %113 = vector.shape_cast %112 : vector<16xf32> to vector<16x1xf32>
    %114 = vector.broadcast %113 : vector<16x1xf32> to vector<16x10xf32>
    %115 = arith.subf %111, %114 : vector<16x10xf32>
    %116 = math.exp %115 : vector<16x10xf32>
    %cst_74 = arith.constant dense<0.000000e+00> : vector<16xf32>
    %117 = vector.multi_reduction <add>, %116, %cst_74 [1] : vector<16x10xf32> to vector<16xf32>
    %118 = vector.shape_cast %117 : vector<16xf32> to vector<16x1xf32>
    %119 = math.log %118 : vector<16x1xf32>
    %120 = vector.broadcast %119 : vector<16x1xf32> to vector<16x10xf32>
    %121 = arith.subf %115, %120 : vector<16x10xf32>
    %c0_75 = arith.constant 0 : index
    %c0_76 = arith.constant 0 : index
    %122 = vector.load %arg12[%c0_75, %c0_76] : memref<16x10xf32, #tpu.memory_space<vmem>>, vector<16x10xf32>
    tpu.vector_store %arg12[%c0_75, %c0_76], %121 {strides = array<i32>} : memref<16x10xf32, #tpu.memory_space<vmem>>, vector<16x10xf32>,
    return
  }
  func.func @transform_0(%arg0: i32) -> (i32, i32, i32) {
    %c0_i32 = arith.constant 0 : i32
    %c0_i32_0 = arith.constant 0 : i32
    %c0_i32_1 = arith.constant 0 : i32
    return %c0_i32, %arg0, %c0_i32_0 : i32, i32, i32
  }
  func.func @transform_1(%arg0: i32) -> (i32, i32, i32) {
    %c0_i32 = arith.constant 0 : i32
    %c0_i32_0 = arith.constant 0 : i32
    %c0_i32_1 = arith.constant 0 : i32
    %c0_i32_2 = arith.constant 0 : i32
    return %c0_i32, %c0_i32_0, %c0_i32_1 : i32, i32, i32
  }
  func.func @transform_2(%arg0: i32) -> (i32, i32) {
    %c0_i32 = arith.constant 0 : i32
    %c0_i32_0 = arith.constant 0 : i32
    %c0_i32_1 = arith.constant 0 : i32
    return %c0_i32, %c0_i32_0 : i32, i32
  }
  func.func @transform_3(%arg0: i32) -> (i32, i32) {
    %c0_i32 = arith.constant 0 : i32
    %c0_i32_0 = arith.constant 0 : i32
    %c0_i32_1 = arith.constant 0 : i32
    return %c0_i32, %c0_i32_0 : i32, i32
  }
  func.func @transform_4(%arg0: i32) -> (i32, i32, i32) {
    %c0_i32 = arith.constant 0 : i32
    %c0_i32_0 = arith.constant 0 : i32
    %c0_i32_1 = arith.constant 0 : i32
    %c0_i32_2 = arith.constant 0 : i32
    return %c0_i32, %c0_i32_0, %c0_i32_1 : i32, i32, i32
  }
  func.func @transform_5(%arg0: i32) -> (i32, i32) {
    %c0_i32 = arith.constant 0 : i32
    %c0_i32_0 = arith.constant 0 : i32
    %c0_i32_1 = arith.constant 0 : i32
    return %c0_i32, %c0_i32_0 : i32, i32
  }
  func.func @transform_6(%arg0: i32) -> (i32, i32) {
    %c0_i32 = arith.constant 0 : i32
    %c0_i32_0 = arith.constant 0 : i32
    %c0_i32_1 = arith.constant 0 : i32
    return %c0_i32, %c0_i32_0 : i32, i32
  }
  func.func @transform_7(%arg0: i32) -> (i32, i32, i32) {
    %c0_i32 = arith.constant 0 : i32
    %c0_i32_0 = arith.constant 0 : i32
    %c0_i32_1 = arith.constant 0 : i32
    %c0_i32_2 = arith.constant 0 : i32
    return %c0_i32, %c0_i32_0, %c0_i32_1 : i32, i32, i32
  }
  func.func @transform_8(%arg0: i32) -> (i32, i32) {
    %c0_i32 = arith.constant 0 : i32
    %c0_i32_0 = arith.constant 0 : i32
    %c0_i32_1 = arith.constant 0 : i32
    return %c0_i32, %c0_i32_0 : i32, i32
  }
  func.func @transform_9(%arg0: i32) -> (i32, i32) {
    %c0_i32 = arith.constant 0 : i32
    %c0_i32_0 = arith.constant 0 : i32
    %c0_i32_1 = arith.constant 0 : i32
    return %c0_i32, %c0_i32_0 : i32, i32
  }
  func.func @transform_10(%arg0: i32) -> (i32, i32) {
    %c0_i32 = arith.constant 0 : i32
    %c0_i32_0 = arith.constant 0 : i32
    %c0_i32_1 = arith.constant 0 : i32
    return %c0_i32, %c0_i32_0 : i32, i32
  }
  func.func @transform_11(%arg0: i32) -> (i32, i32) {
    %c0_i32 = arith.constant 0 : i32
    %c0_i32_0 = arith.constant 0 : i32
    return %arg0, %c0_i32 : i32, i32
  }
}

</mosaic_0001>

<llo_original>
// kernel: tpu_custom_call.1
$region0: #{tpu_custom_call.1}
  #allocation0 [shape = 'u32[]', space=smem, size = 0x4, offset = 0x4, fixed_abs, tag = 'smem constant byte address 0x4 - core index']
  #allocation1 [shape = 'u32[72,128]{1,0:T(1,128)}', space=vmem, size = 0x9000, scoped, tag = 'internal scratch']
  %s0 = inlined_call_operand.vmem [shape: bf16[28,16,28], index: 0, kind: input, shape index: {}]
  %s1 = inlined_call_operand.vmem [shape: bf16[5,28,240], index: 1, kind: input, shape index: {}]
  %s2 = inlined_call_operand.vmem [shape: f32[1,240], index: 2, kind: input, shape index: {}]
  %s3 = inlined_call_operand.vmem [shape: bf16[240,120], index: 3, kind: input, shape index: {}]
  %s4 = inlined_call_operand.vmem [shape: bf16[5,120,160], index: 4, kind: input, shape index: {}]
  %s5 = inlined_call_operand.vmem [shape: f32[1,160], index: 5, kind: input, shape index: {}]
  %s6 = inlined_call_operand.vmem [shape: bf16[160,80], index: 6, kind: input, shape index: {}]
  %s7 = inlined_call_operand.vmem [shape: bf16[4,80,50], index: 7, kind: input, shape index: {}]
  %s8 = inlined_call_operand.vmem [shape: f32[1,50], index: 8, kind: input, shape index: {}]
  %s9 = inlined_call_operand.vmem [shape: bf16[50,10], index: 9, kind: input, shape index: {}]
  %s10 = inlined_call_operand.vmem [shape: f32[1,10], index: 10, kind: input, shape index: {}]
  %s11 = inlined_call_operand.hbm [shape: f32[16,10], index: 11, kind: output, shape index: {}]
  %s12 = sld [smem:[#allocation0]]
  $region54: #{tpu_custom_call.1} parent=0
    _
  %s14 = ssub.s32 1, %s12
  %s15 = scalar_select 0, %s14, %s12
  $region1: #{tpu_custom_call.1} parent=0
    #allocation2 [shape = 'u8[8192]{0}', space=vmem, size = 0x2000, scoped, tag = 'output window, operand 0, single buffered']
    #allocation3 [shape = 's32[1]{0}', space=sflag, size = 0x4, scoped, tag = 'scoped memory for tpu_custom_call.1']
    %16 = vsyncpa [#allocation3], 0
    // Predicated region
    $region2: #{tpu_custom_call.1} parent=1 // pred_check
      _
    $region3: #{tpu_custom_call.1} parent=1 // pred_check_branch
      %18 = sbr.rel (0) target = $region5
    $region4: #{tpu_custom_call.1} parent=1 // pred_region
      _
    $region5: #{tpu_custom_call.1} parent=1 // pred_fallthru
      _
    // Predicated region
    $region6: #{tpu_custom_call.1} parent=1 // pred_check
      _
    $region7: #{tpu_custom_call.1} parent=1 // pred_check_branch
      %20 = sbr.rel (0) target = $region9
    $region8: #{tpu_custom_call.1} parent=1 // pred_region
      _
    $region9: #{tpu_custom_call.1} parent=1 // pred_fallthru
      _
    // Predicated region
    $region10: #{tpu_custom_call.1} parent=1 // pred_check
      _
    $region11: #{tpu_custom_call.1} parent=1 // pred_check_branch
      %22 = sbr.rel (0) target = $region13
    $region12: #{tpu_custom_call.1} parent=1 // pred_region
      _
    $region13: #{tpu_custom_call.1} parent=1 // pred_fallthru
      _
    // Predicated region
    $region14: #{tpu_custom_call.1} parent=1 // pred_check
      _
    $region15: #{tpu_custom_call.1} parent=1 // pred_check_branch
      %24 = sbr.rel (0) target = $region17
    $region16: #{tpu_custom_call.1} parent=1 // pred_region
      _
    $region17: #{tpu_custom_call.1} parent=1 // pred_fallthru
      _
    // Predicated region
    $region18: #{tpu_custom_call.1} parent=1 // pred_check
      _
    $region19: #{tpu_custom_call.1} parent=1 // pred_check_branch
      %26 = sbr.rel (0) target = $region21
    $region20: #{tpu_custom_call.1} parent=1 // pred_region
      _
    $region21: #{tpu_custom_call.1} parent=1 // pred_fallthru
      _
    // Predicated region
    $region22: #{tpu_custom_call.1} parent=1 // pred_check
      _
    $region23: #{tpu_custom_call.1} parent=1 // pred_check_branch
      %28 = sbr.rel (0) target = $region25
    $region24: #{tpu_custom_call.1} parent=1 // pred_region
      _
    $region25: #{tpu_custom_call.1} parent=1 // pred_fallthru
      _
    // Predicated region
    $region26: #{tpu_custom_call.1} parent=1 // pred_check
      _
    $region27: #{tpu_custom_call.1} parent=1 // pred_check_branch
      %30 = sbr.rel (0) target = $region29
    $region28: #{tpu_custom_call.1} parent=1 // pred_region
      _
    $region29: #{tpu_custom_call.1} parent=1 // pred_fallthru
      _
    // Predicated region
    $region30: #{tpu_custom_call.1} parent=1 // pred_check
      _
    $region31: #{tpu_custom_call.1} parent=1 // pred_check_branch
      %32 = sbr.rel (0) target = $region33
    $region32: #{tpu_custom_call.1} parent=1 // pred_region
      _
    $region33: #{tpu_custom_call.1} parent=1 // pred_fallthru
      _
    // Predicated region
    $region34: #{tpu_custom_call.1} parent=1 // pred_check
      _
    $region35: #{tpu_custom_call.1} parent=1 // pred_check_branch
      %34 = sbr.rel (0) target = $region37
    $region36: #{tpu_custom_call.1} parent=1 // pred_region
      _
    $region37: #{tpu_custom_call.1} parent=1 // pred_fallthru
      _
    // Predicated region
    $region38: #{tpu_custom_call.1} parent=1 // pred_check
      _
    $region39: #{tpu_custom_call.1} parent=1 // pred_check_branch
      %36 = sbr.rel (0) target = $region41
    $region40: #{tpu_custom_call.1} parent=1 // pred_region
      _
    $region41: #{tpu_custom_call.1} parent=1 // pred_fallthru
      _
    // Predicated region
    $region42: #{tpu_custom_call.1} parent=1 // pred_check
      _
    $region43: #{tpu_custom_call.1} parent=1 // pred_check_branch
      %38 = sbr.rel (0) target = $region45
    $region44: #{tpu_custom_call.1} parent=1 // pred_region
      _
    $region45: #{tpu_custom_call.1} parent=1 // pred_fallthru
      _
    %v40 = vld [vmem:[%s0] sm:$0xf]
    %v41 = vld [vmem:[%s0 + $0x4] sm:$0xf]
    %v42 = vld [vmem:[%s0 + $0x8] sm:$0xf]
    %v43 = vld [vmem:[%s0 + $0xc] sm:$0xf]
    %v44 = vld [vmem:[%s0 + $0x10] sm:$0xf]
    %v45 = vld [vmem:[%s0 + $0x14] sm:$0xf]
    %v46 = vld [vmem:[%s0 + $0x18] sm:$0xf]
    %v47 = vld [vmem:[%s0 + $0x1c] sm:$0xf]
    %v48 = vld [vmem:[%s0 + $0x20] sm:$0xf]
    %v49 = vld [vmem:[%s0 + $0x24] sm:$0xf]
    %v50 = vld [vmem:[%s0 + $0x28] sm:$0xf]
    %v51 = vld [vmem:[%s0 + $0x2c] sm:$0xf]
    %v52 = vld [vmem:[%s0 + $0x30] sm:$0xf]
    %v53 = vld [vmem:[%s0 + $0x34] sm:$0xf]
    %v54 = vld [vmem:[%s0 + $0x38] sm:$0xf]
    %v55 = vld [vmem:[%s0 + $0x3c] sm:$0xf]
    %v56 = vld [vmem:[%s0 + $0x40] sm:$0xf]
    %v57 = vld [vmem:[%s0 + $0x44] sm:$0xf]
    %v58 = vld [vmem:[%s0 + $0x48] sm:$0xf]
    %v59 = vld [vmem:[%s0 + $0x4c] sm:$0xf]
    %v60 = vld [vmem:[%s0 + $0x50] sm:$0xf]
    %v61 = vld [vmem:[%s0 + $0x54] sm:$0xf]
    %v62 = vld [vmem:[%s0 + $0x58] sm:$0xf]
    %v63 = vld [vmem:[%s0 + $0x5c] sm:$0xf]
    %v64 = vld [vmem:[%s0 + $0x60] sm:$0xf]
    %v65 = vld [vmem:[%s0 + $0x64] sm:$0xf]
    %v66 = vld [vmem:[%s0 + $0x68] sm:$0xf]
    %v67 = vld [vmem:[%s0 + $0x6c] sm:$0xf]
    %v68 = vld [vmem:[%s0 + $0x70] sm:$0xf]
    %v69 = vld [vmem:[%s0 + $0x74] sm:$0xf]
    %v70 = vld [vmem:[%s0 + $0x78] sm:$0xf]
    %v71 = vld [vmem:[%s0 + $0x7c] sm:$0xf]
    %v72 = vld [vmem:[%s0 + $0x80] sm:$0xf]
    %v73 = vld [vmem:[%s0 + $0x84] sm:$0xf]
    %v74 = vld [vmem:[%s0 + $0x88] sm:$0xf]
    %v75 = vld [vmem:[%s0 + $0x8c] sm:$0xf]
    %v76 = vld [vmem:[%s0 + $0x90] sm:$0xf]
    %v77 = vld [vmem:[%s0 + $0x94] sm:$0xf]
    %v78 = vld [vmem:[%s0 + $0x98] sm:$0xf]
    %v79 = vld [vmem:[%s0 + $0x9c] sm:$0xf]
    %v80 = vld [vmem:[%s0 + $0xa0] sm:$0xf]
    %v81 = vld [vmem:[%s0 + $0xa4] sm:$0xf]
    %v82 = vld [vmem:[%s0 + $0xa8] sm:$0xf]
    %v83 = vld [vmem:[%s0 + $0xac] sm:$0xf]
    %v84 = vld [vmem:[%s0 + $0xb0] sm:$0xf]
    %v85 = vld [vmem:[%s0 + $0xb4] sm:$0xf]
    %v86 = vld [vmem:[%s0 + $0xb8] sm:$0xf]
    %v87 = vld [vmem:[%s0 + $0xbc] sm:$0xf]
    %v88 = vld [vmem:[%s0 + $0xc0] sm:$0xf]
    %v89 = vld [vmem:[%s0 + $0xc4] sm:$0xf]
    %v90 = vld [vmem:[%s0 + $0xc8] sm:$0xf]
    %v91 = vld [vmem:[%s0 + $0xcc] sm:$0xf]
    %v92 = vld [vmem:[%s0 + $0xd0] sm:$0xf]
    %v93 = vld [vmem:[%s0 + $0xd4] sm:$0xf]
    %v94 = vld [vmem:[%s0 + $0xd8] sm:$0xf]
    %v95 = vld [vmem:[%s0 + $0xdc] sm:$0xf]
    %v96 = vld [vmem:[%s2] sm:$0x3]
    %v97 = vld [vmem:[%s1] sm:$0xff]
    %v98 = vld [vmem:[%s1 + $0x8] sm:$0xff]
    %v99 = vld [vmem:[%s1 + $0x10] sm:$0xff]
    %v100 = vld [vmem:[%s1 + $0x18] sm:$0x33]
    %v149 = vunpack.c.l.b16 %v40
    %v150 = vunpack.c.l.b16 %v41
    %v151 = vunpack.c.l.b16 %v42
    %v152 = vunpack.c.l.b16 %v43
    %v153 = vunpack.c.l.b16 %v44
    %v154 = vunpack.c.l.b16 %v45
    %v155 = vunpack.c.l.b16 %v46
    %v156 = vunpack.c.l.b16 %v47
    %v157 = vunpack.c.l.b16 %v48
    %v158 = vunpack.c.l.b16 %v49
    %v159 = vunpack.c.l.b16 %v50
    %v160 = vunpack.c.l.b16 %v51
    %v161 = vunpack.c.l.b16 %v52
    %v162 = vunpack.c.l.b16 %v53
    %v163 = vunpack.c.l.b16 %v54
    %v164 = vunpack.c.l.b16 %v55
    %v165 = vunpack.c.l.b16 %v56
    %v166 = vunpack.c.l.b16 %v57
    %v167 = vunpack.c.l.b16 %v58
    %v168 = vunpack.c.l.b16 %v59
    %v169 = vunpack.c.l.b16 %v60
    %v170 = vunpack.c.l.b16 %v61
    %v171 = vunpack.c.l.b16 %v62
    %v172 = vunpack.c.l.b16 %v63
    %v173 = vunpack.c.l.b16 %v64
    %v174 = vunpack.c.l.b16 %v65
    %v175 = vunpack.c.l.b16 %v66
    %v176 = vunpack.c.l.b16 %v67
    %v177 = vunpack.c.l.b16 %v68
    %v178 = vunpack.c.l.b16 %v69
    %v179 = vunpack.c.l.b16 %v70
    %v180 = vunpack.c.l.b16 %v71
    %v181 = vunpack.c.l.b16 %v72
    %v182 = vunpack.c.l.b16 %v73
    %v183 = vunpack.c.l.b16 %v74
    %v184 = vunpack.c.l.b16 %v75
    %v185 = vunpack.c.l.b16 %v76
    %v186 = vunpack.c.l.b16 %v77
    %v187 = vunpack.c.l.b16 %v78
    %v188 = vunpack.c.l.b16 %v79
    %v189 = vunpack.c.l.b16 %v80
    %v190 = vunpack.c.l.b16 %v81
    %v191 = vunpack.c.l.b16 %v82
    %v192 = vunpack.c.l.b16 %v83
    %v193 = vunpack.c.l.b16 %v84
    %v194 = vunpack.c.l.b16 %v85
    %v195 = vunpack.c.l.b16 %v86
    %v196 = vunpack.c.l.b16 %v87
    %v197 = vpack.c.b16 %v150, %v149
    %v198 = vpack.c.b16 %v152, %v151
    %v199 = vpack.c.b16 %v154, %v153
    %v200 = vpack.c.b16 %v156, %v155
    %v201 = vpack.c.b16 %v158, %v157
    %v202 = vpack.c.b16 %v160, %v159
    %v203 = vpack.c.b16 %v162, %v161
    %v204 = vpack.c.b16 %v164, %v163
    %v205 = vpack.c.b16 %v166, %v165
    %v206 = vpack.c.b16 %v168, %v167
    %v207 = vpack.c.b16 %v170, %v169
    %v208 = vpack.c.b16 %v172, %v171
    %v209 = vpack.c.b16 %v174, %v173
    %v210 = vpack.c.b16 %v176, %v175
    %v211 = vpack.c.b16 %v178, %v177
    %v212 = vpack.c.b16 %v180, %v179
    %v213 = vpack.c.b16 %v182, %v181
    %v214 = vpack.c.b16 %v184, %v183
    %v215 = vpack.c.b16 %v186, %v185
    %v216 = vpack.c.b16 %v188, %v187
    %v217 = vpack.c.b16 %v190, %v189
    %v218 = vpack.c.b16 %v192, %v191
    %v219 = vpack.c.b16 %v194, %v193
    %v220 = vpack.c.b16 %v196, %v195
    %v225 = vunpack.c.l.b16 %v97
    %v226 = vunpack.c.h.b16 %v97
    %v227 = vunpack.c.l.b16 %v98
    %v228 = vunpack.c.h.b16 %v98
    %v229 = vunpack.c.l.b16 %v99
    %v230 = vunpack.c.h.b16 %v99
    %v231 = vunpack.c.l.b16 %v100
    %v232 = vunpack.c.h.b16 %v100
    %v233 = vpack.c.b16 %v227, %v225
    %v234 = vpack.c.b16 %v228, %v226
    %v235 = vpack.c.b16 %v231, %v229
    %v236 = vpack.c.b16 %v232, %v230
    %vm239 = vcmask 228352
    %v241 = vsel %vm239, %v197, 0
    %v244 = vsel %vm239, %v198, 0
    %v247 = vsel %vm239, %v199, 0
    %v250 = vsel %vm239, %v200, 0
    %v253 = vsel %vm239, %v201, 0
    %v256 = vsel %vm239, %v202, 0
    %v259 = vsel %vm239, %v203, 0
    %v262 = vsel %vm239, %v204, 0
    %v265 = vsel %vm239, %v205, 0
    %v268 = vsel %vm239, %v206, 0
    %v271 = vsel %vm239, %v207, 0
    %v274 = vsel %vm239, %v208, 0
    %v277 = vsel %vm239, %v209, 0
    %v280 = vsel %vm239, %v210, 0
    %v283 = vsel %vm239, %v211, 0
    %v286 = vsel %vm239, %v212, 0
    %v289 = vsel %vm239, %v213, 0
    %v292 = vsel %vm239, %v214, 0
    %v295 = vsel %vm239, %v215, 0
    %v298 = vsel %vm239, %v216, 0
    %v301 = vsel %vm239, %v217, 0
    %v304 = vsel %vm239, %v218, 0
    %v307 = vsel %vm239, %v219, 0
    %v310 = vsel %vm239, %v220, 0
    %vm312 = vcmask 1045504
    %v314 = vsel %vm312, %v235, 0
    %v317 = vsel %vm312, %v236, 0
    %319 = vmatpush.bf16.msra.mxu0 0
    %320 = vmatpush.bf16.msra.mxu0 0
    %321 = vmatpush.bf16.msra.mxu0 0
    %322 = vmatpush.bf16.msra.mxu0 0
    %323 = vmatpush.bf16.msra.mxu0 0
    %324 = vmatpush.bf16.msra.mxu0 0
    %325 = vmatpush.bf16.msra.mxu0 %v314
    %326 = vmatpush.bf16.msra.mxu0 %v233
    %327 = vmatmul.bf16.gmra.mxu0 %v241
    %v328 = vpop.f32.mrf.mxu0
    %v329 = vadd.f32 0.0, %v328
    %v330 = vpop.f32.mrf.mxu0
    %v331 = vadd.f32 0.0, %v330
    %332 = vmatmul.bf16.gmra.mxu0 %v244
    %v333 = vpop.f32.mrf.mxu0
    %v334 = vadd.f32 0.0, %v333
    %v335 = vpop.f32.mrf.mxu0
    %v336 = vadd.f32 0.0, %v335
    %337 = vmatmul.bf16.gmra.mxu0 %v247
    %v338 = vpop.f32.mrf.mxu0
    %v339 = vadd.f32 0.0, %v338
    %v340 = vpop.f32.mrf.mxu0
    %v341 = vadd.f32 0.0, %v340
    %342 = vmatmul.bf16.gmra.mxu0 %v250
    %v343 = vpop.f32.mrf.mxu0
    %v344 = vadd.f32 0.0, %v343
    %v345 = vpop.f32.mrf.mxu0
    %v346 = vadd.f32 0.0, %v345
    %347 = vmatmul.bf16.gmra.mxu0 %v253
    %v348 = vpop.f32.mrf.mxu0
    %v349 = vadd.f32 0.0, %v348
    %v350 = vpop.f32.mrf.mxu0
    %v351 = vadd.f32 0.0, %v350
    %352 = vmatmul.bf16.gmra.mxu0 %v256
    %v353 = vpop.f32.mrf.mxu0
    %v354 = vadd.f32 0.0, %v353
    %v355 = vpop.f32.mrf.mxu0
    %v356 = vadd.f32 0.0, %v355
    %357 = vmatmul.bf16.gmra.mxu0 %v259
    %v358 = vpop.f32.mrf.mxu0
    %v359 = vadd.f32 0.0, %v358
    %v360 = vpop.f32.mrf.mxu0
    %v361 = vadd.f32 0.0, %v360
    %362 = vmatmul.bf16.gmra.mxu0 %v262
    %v363 = vpop.f32.mrf.mxu0
    %v364 = vadd.f32 0.0, %v363
    %v365 = vpop.f32.mrf.mxu0
    %v366 = vadd.f32 0.0, %v365
    %367 = vmatmul.bf16.gmra.mxu0 %v265
    %v368 = vpop.f32.mrf.mxu0
    %v369 = vadd.f32 0.0, %v368
    %v370 = vpop.f32.mrf.mxu0
    %v371 = vadd.f32 0.0, %v370
    %372 = vmatmul.bf16.gmra.mxu0 %v268
    %v373 = vpop.f32.mrf.mxu0
    %v374 = vadd.f32 0.0, %v373
    %v375 = vpop.f32.mrf.mxu0
    %v376 = vadd.f32 0.0, %v375
    %377 = vmatmul.bf16.gmra.mxu0 %v271
    %v378 = vpop.f32.mrf.mxu0
    %v379 = vadd.f32 0.0, %v378
    %v380 = vpop.f32.mrf.mxu0
    %v381 = vadd.f32 0.0, %v380
    %382 = vmatmul.bf16.gmra.mxu0 %v274
    %v383 = vpop.f32.mrf.mxu0
    %v384 = vadd.f32 0.0, %v383
    %v385 = vpop.f32.mrf.mxu0
    %v386 = vadd.f32 0.0, %v385
    %387 = vmatmul.bf16.gmra.mxu0 %v277
    %v388 = vpop.f32.mrf.mxu0
    %v389 = vadd.f32 0.0, %v388
    %v390 = vpop.f32.mrf.mxu0
    %v391 = vadd.f32 0.0, %v390
    %392 = vmatmul.bf16.gmra.mxu0 %v280
    %v393 = vpop.f32.mrf.mxu0
    %v394 = vadd.f32 0.0, %v393
    %v395 = vpop.f32.mrf.mxu0
    %v396 = vadd.f32 0.0, %v395
    %397 = vmatmul.bf16.gmra.mxu0 %v283
    %v398 = vpop.f32.mrf.mxu0
    %v399 = vadd.f32 0.0, %v398
    %v400 = vpop.f32.mrf.mxu0
    %v401 = vadd.f32 0.0, %v400
    %402 = vmatmul.bf16.gmra.mxu0 %v286
    %v403 = vpop.f32.mrf.mxu0
    %v404 = vadd.f32 0.0, %v403
    %v405 = vpop.f32.mrf.mxu0
    %v406 = vadd.f32 0.0, %v405
    %407 = vmatmul.bf16.gmra.mxu0 %v289
    %v408 = vpop.f32.mrf.mxu0
    %v409 = vadd.f32 0.0, %v408
    %v410 = vpop.f32.mrf.mxu0
    %v411 = vadd.f32 0.0, %v410
    %412 = vmatmul.bf16.gmra.mxu0 %v292
    %v413 = vpop.f32.mrf.mxu0
    %v414 = vadd.f32 0.0, %v413
    %v415 = vpop.f32.mrf.mxu0
    %v416 = vadd.f32 0.0, %v415
    %417 = vmatmul.bf16.gmra.mxu0 %v295
    %v418 = vpop.f32.mrf.mxu0
    %v419 = vadd.f32 0.0, %v418
    %v420 = vpop.f32.mrf.mxu0
    %v421 = vadd.f32 0.0, %v420
    %422 = vmatmul.bf16.gmra.mxu0 %v298
    %v423 = vpop.f32.mrf.mxu0
    %v424 = vadd.f32 0.0, %v423
    %v425 = vpop.f32.mrf.mxu0
    %v426 = vadd.f32 0.0, %v425
    %427 = vmatmul.bf16.gmra.mxu0 %v301
    %v428 = vpop.f32.mrf.mxu0
    %v429 = vadd.f32 0.0, %v428
    %v430 = vpop.f32.mrf.mxu0
    %v431 = vadd.f32 0.0, %v430
    %432 = vmatmul.bf16.gmra.mxu0 %v304
    %v433 = vpop.f32.mrf.mxu0
    %v434 = vadd.f32 0.0, %v433
    %v435 = vpop.f32.mrf.mxu0
    %v436 = vadd.f32 0.0, %v435
    %437 = vmatmul.bf16.gmra.mxu0 %v307
    %v438 = vpop.f32.mrf.mxu0
    %v439 = vadd.f32 0.0, %v438
    %v440 = vpop.f32.mrf.mxu0
    %v441 = vadd.f32 0.0, %v440
    %442 = vmatmul.bf16.gmra.mxu0 %v310
    %v443 = vpop.f32.mrf.mxu0
    %v444 = vadd.f32 0.0, %v443
    %v445 = vpop.f32.mrf.mxu0
    %v446 = vadd.f32 0.0, %v445
    %447 = vdwg.mxu0
    %448 = vmatpush.bf16.msra.mxu0 0
    %449 = vmatpush.bf16.msra.mxu0 0
    %450 = vmatpush.bf16.msra.mxu0 0
    %451 = vmatpush.bf16.msra.mxu0 0
    %452 = vmatpush.bf16.msra.mxu0 0
    %453 = vmatpush.bf16.msra.mxu0 0
    %454 = vmatpush.bf16.msra.mxu0 %v317
    %455 = vmatpush.bf16.msra.mxu0 %v234
    %456 = vmatmul.bf16.gmra.mxu0 %v241
    %v457 = vpop.f32.mrf.mxu0
    %v458 = vadd.f32 0.0, %v457
    %v459 = vpop.f32.mrf.mxu0
    %v460 = vadd.f32 0.0, %v459
    %461 = vmatmul.bf16.gmra.mxu0 %v244
    %v462 = vpop.f32.mrf.mxu0
    %v463 = vadd.f32 0.0, %v462
    %v464 = vpop.f32.mrf.mxu0
    %v465 = vadd.f32 0.0, %v464
    %466 = vmatmul.bf16.gmra.mxu0 %v247
    %v467 = vpop.f32.mrf.mxu0
    %v468 = vadd.f32 0.0, %v467
    %v469 = vpop.f32.mrf.mxu0
    %v470 = vadd.f32 0.0, %v469
    %471 = vmatmul.bf16.gmra.mxu0 %v250
    %v472 = vpop.f32.mrf.mxu0
    %v473 = vadd.f32 0.0, %v472
    %v474 = vpop.f32.mrf.mxu0
    %v475 = vadd.f32 0.0, %v474
    %476 = vmatmul.bf16.gmra.mxu0 %v253
    %v477 = vpop.f32.mrf.mxu0
    %v478 = vadd.f32 0.0, %v477
    %v479 = vpop.f32.mrf.mxu0
    %v480 = vadd.f32 0.0, %v479
    %481 = vmatmul.bf16.gmra.mxu0 %v256
    %v482 = vpop.f32.mrf.mxu0
    %v483 = vadd.f32 0.0, %v482
    %v484 = vpop.f32.mrf.mxu0
    %v485 = vadd.f32 0.0, %v484
    %486 = vmatmul.bf16.gmra.mxu0 %v259
    %v487 = vpop.f32.mrf.mxu0
    %v488 = vadd.f32 0.0, %v487
    %v489 = vpop.f32.mrf.mxu0
    %v490 = vadd.f32 0.0, %v489
    %491 = vmatmul.bf16.gmra.mxu0 %v262
    %v492 = vpop.f32.mrf.mxu0
    %v493 = vadd.f32 0.0, %v492
    %v494 = vpop.f32.mrf.mxu0
    %v495 = vadd.f32 0.0, %v494
    %496 = vmatmul.bf16.gmra.mxu0 %v265
    %v497 = vpop.f32.mrf.mxu0
    %v498 = vadd.f32 0.0, %v497
    %v499 = vpop.f32.mrf.mxu0
    %v500 = vadd.f32 0.0, %v499
    %501 = vmatmul.bf16.gmra.mxu0 %v268
    %v502 = vpop.f32.mrf.mxu0
    %v503 = vadd.f32 0.0, %v502
    %v504 = vpop.f32.mrf.mxu0
    %v505 = vadd.f32 0.0, %v504
    %506 = vmatmul.bf16.gmra.mxu0 %v271
    %v507 = vpop.f32.mrf.mxu0
    %v508 = vadd.f32 0.0, %v507
    %v509 = vpop.f32.mrf.mxu0
    %v510 = vadd.f32 0.0, %v509
    %511 = vmatmul.bf16.gmra.mxu0 %v274
    %v512 = vpop.f32.mrf.mxu0
    %v513 = vadd.f32 0.0, %v512
    %v514 = vpop.f32.mrf.mxu0
    %v515 = vadd.f32 0.0, %v514
    %516 = vmatmul.bf16.gmra.mxu0 %v277
    %v517 = vpop.f32.mrf.mxu0
    %v518 = vadd.f32 0.0, %v517
    %v519 = vpop.f32.mrf.mxu0
    %v520 = vadd.f32 0.0, %v519
    %521 = vmatmul.bf16.gmra.mxu0 %v280
    %v522 = vpop.f32.mrf.mxu0
    %v523 = vadd.f32 0.0, %v522
    %v524 = vpop.f32.mrf.mxu0
    %v525 = vadd.f32 0.0, %v524
    %526 = vmatmul.bf16.gmra.mxu0 %v283
    %v527 = vpop.f32.mrf.mxu0
    %v528 = vadd.f32 0.0, %v527
    %v529 = vpop.f32.mrf.mxu0
    %v530 = vadd.f32 0.0, %v529
    %531 = vmatmul.bf16.gmra.mxu0 %v286
    %v532 = vpop.f32.mrf.mxu0
    %v533 = vadd.f32 0.0, %v532
    %v534 = vpop.f32.mrf.mxu0
    %v535 = vadd.f32 0.0, %v534
    %536 = vmatmul.bf16.gmra.mxu0 %v289
    %v537 = vpop.f32.mrf.mxu0
    %v538 = vadd.f32 0.0, %v537
    %v539 = vpop.f32.mrf.mxu0
    %v540 = vadd.f32 0.0, %v539
    %541 = vmatmul.bf16.gmra.mxu0 %v292
    %v542 = vpop.f32.mrf.mxu0
    %v543 = vadd.f32 0.0, %v542
    %v544 = vpop.f32.mrf.mxu0
    %v545 = vadd.f32 0.0, %v544
    %546 = vmatmul.bf16.gmra.mxu0 %v295
    %v547 = vpop.f32.mrf.mxu0
    %v548 = vadd.f32 0.0, %v547
    %v549 = vpop.f32.mrf.mxu0
    %v550 = vadd.f32 0.0, %v549
    %551 = vmatmul.bf16.gmra.mxu0 %v298
    %v552 = vpop.f32.mrf.mxu0
    %v553 = vadd.f32 0.0, %v552
    %v554 = vpop.f32.mrf.mxu0
    %v555 = vadd.f32 0.0, %v554
    %556 = vmatmul.bf16.gmra.mxu0 %v301
    %v557 = vpop.f32.mrf.mxu0
    %v558 = vadd.f32 0.0, %v557
    %v559 = vpop.f32.mrf.mxu0
    %v560 = vadd.f32 0.0, %v559
    %561 = vmatmul.bf16.gmra.mxu0 %v304
    %v562 = vpop.f32.mrf.mxu0
    %v563 = vadd.f32 0.0, %v562
    %v564 = vpop.f32.mrf.mxu0
    %v565 = vadd.f32 0.0, %v564
    %566 = vmatmul.bf16.gmra.mxu0 %v307
    %v567 = vpop.f32.mrf.mxu0
    %v568 = vadd.f32 0.0, %v567
    %v569 = vpop.f32.mrf.mxu0
    %v570 = vadd.f32 0.0, %v569
    %571 = vmatmul.bf16.gmra.mxu0 %v310
    %v572 = vpop.f32.mrf.mxu0
    %v573 = vadd.f32 0.0, %v572
    %v574 = vpop.f32.mrf.mxu0
    %v575 = vadd.f32 0.0, %v574
    %576 = vdwg.mxu0
    %v578 = vperm.slane %v96, 0
    %v579 = vperm.slane %v96, 1
    %v582 = vadd.f32 %v578, %v329
    %v583 = vadd.f32 %v579, %v458
    %v584 = vadd.f32 %v578, %v331
    %v585 = vadd.f32 %v579, %v460
    %v586 = vadd.f32 %v578, %v334
    %v587 = vadd.f32 %v579, %v463
    %v588 = vadd.f32 %v578, %v336
    %v589 = vadd.f32 %v579, %v465
    %v590 = vadd.f32 %v578, %v339
    %v591 = vadd.f32 %v579, %v468
    %v592 = vadd.f32 %v578, %v341
    %v593 = vadd.f32 %v579, %v470
    %v594 = vadd.f32 %v578, %v344
    %v595 = vadd.f32 %v579, %v473
    %v596 = vadd.f32 %v578, %v346
    %v597 = vadd.f32 %v579, %v475
    %v598 = vadd.f32 %v578, %v349
    %v599 = vadd.f32 %v579, %v478
    %v600 = vadd.f32 %v578, %v351
    %v601 = vadd.f32 %v579, %v480
    %v602 = vadd.f32 %v578, %v354
    %v603 = vadd.f32 %v579, %v483
    %v604 = vadd.f32 %v578, %v356
    %v605 = vadd.f32 %v579, %v485
    %v606 = vadd.f32 %v578, %v359
    %v607 = vadd.f32 %v579, %v488
    %v608 = vadd.f32 %v578, %v361
    %v609 = vadd.f32 %v579, %v490
    %v610 = vadd.f32 %v578, %v364
    %v611 = vadd.f32 %v579, %v493
    %v612 = vadd.f32 %v578, %v366
    %v613 = vadd.f32 %v579, %v495
    %v614 = vadd.f32 %v578, %v369
    %v615 = vadd.f32 %v579, %v498
    %v616 = vadd.f32 %v578, %v371
    %v617 = vadd.f32 %v579, %v500
    %v618 = vadd.f32 %v578, %v374
    %v619 = vadd.f32 %v579, %v503
    %v620 = vadd.f32 %v578, %v376
    %v621 = vadd.f32 %v579, %v505
    %v622 = vadd.f32 %v578, %v379
    %v623 = vadd.f32 %v579, %v508
    %v624 = vadd.f32 %v578, %v381
    %v625 = vadd.f32 %v579, %v510
    %v626 = vadd.f32 %v578, %v384
    %v627 = vadd.f32 %v579, %v513
    %v628 = vadd.f32 %v578, %v386
    %v629 = vadd.f32 %v579, %v515
    %v630 = vadd.f32 %v578, %v389
    %v631 = vadd.f32 %v579, %v518
    %v632 = vadd.f32 %v578, %v391
    %v633 = vadd.f32 %v579, %v520
    %v634 = vadd.f32 %v578, %v394
    %v635 = vadd.f32 %v579, %v523
    %v636 = vadd.f32 %v578, %v396
    %v637 = vadd.f32 %v579, %v525
    %v638 = vadd.f32 %v578, %v399
    %v639 = vadd.f32 %v579, %v528
    %v640 = vadd.f32 %v578, %v401
    %v641 = vadd.f32 %v579, %v530
    %v642 = vadd.f32 %v578, %v404
    %v643 = vadd.f32 %v579, %v533
    %v644 = vadd.f32 %v578, %v406
    %v645 = vadd.f32 %v579, %v535
    %v646 = vadd.f32 %v578, %v409
    %v647 = vadd.f32 %v579, %v538
    %v648 = vadd.f32 %v578, %v411
    %v649 = vadd.f32 %v579, %v540
    %v650 = vadd.f32 %v578, %v414
    %v651 = vadd.f32 %v579, %v543
    %v652 = vadd.f32 %v578, %v416
    %v653 = vadd.f32 %v579, %v545
    %v654 = vadd.f32 %v578, %v419
    %v655 = vadd.f32 %v579, %v548
    %v656 = vadd.f32 %v578, %v421
    %v657 = vadd.f32 %v579, %v550
    %v658 = vadd.f32 %v578, %v424
    %v659 = vadd.f32 %v579, %v553
    %v660 = vadd.f32 %v578, %v426
    %v661 = vadd.f32 %v579, %v555
    %v662 = vadd.f32 %v578, %v429
    %v663 = vadd.f32 %v579, %v558
    %v664 = vadd.f32 %v578, %v431
    %v665 = vadd.f32 %v579, %v560
    %v666 = vadd.f32 %v578, %v434
    %v667 = vadd.f32 %v579, %v563
    %v668 = vadd.f32 %v578, %v436
    %v669 = vadd.f32 %v579, %v565
    %v670 = vadd.f32 %v578, %v439
    %v671 = vadd.f32 %v579, %v568
    %v672 = vadd.f32 %v578, %v441
    %v673 = vadd.f32 %v579, %v570
    %v674 = vadd.f32 %v578, %v444
    %v675 = vadd.f32 %v579, %v573
    %v676 = vadd.f32 %v578, %v446
    %v677 = vadd.f32 %v579, %v575
    %s678 = scalar_lea.vmem %s1, 32
    %v679 = vld [vmem:[%s678] sm:$0xff]
    %v680 = vld [vmem:[%s678 + $0x8] sm:$0xff]
    %v681 = vld [vmem:[%s678 + $0x10] sm:$0xff]
    %v682 = vld [vmem:[%s678 + $0x18] sm:$0x33]
    %v685 = vunpack.c.l.b16 %v88
    %v686 = vunpack.c.l.b16 %v89
    %v687 = vpack.c.b16 %v686, %v685
    %v692 = vunpack.c.l.b16 %v679
    %v693 = vunpack.c.h.b16 %v679
    %v694 = vunpack.c.l.b16 %v680
    %v695 = vunpack.c.h.b16 %v680
    %v696 = vunpack.c.l.b16 %v681
    %v697 = vunpack.c.h.b16 %v681
    %v698 = vunpack.c.l.b16 %v682
    %v699 = vunpack.c.h.b16 %v682
    %v700 = vpack.c.b16 %v694, %v692
    %v701 = vpack.c.b16 %v695, %v693
    %v702 = vpack.c.b16 %v698, %v696
    %v703 = vpack.c.b16 %v699, %v697
    %v707 = vsel %vm239, %v687, 0
    %v710 = vsel %vm312, %v702, 0
    %v713 = vsel %vm312, %v703, 0
    %715 = vmatpush.bf16.msra.mxu0 0
    %716 = vmatpush.bf16.msra.mxu0 0
    %717 = vmatpush.bf16.msra.mxu0 0
    %718 = vmatpush.bf16.msra.mxu0 0
    %719 = vmatpush.bf16.msra.mxu0 0
    %720 = vmatpush.bf16.msra.mxu0 0
    %721 = vmatpush.bf16.msra.mxu0 %v710
    %722 = vmatpush.bf16.msra.mxu0 %v700
    %723 = vmatmul.bf16.gmra.mxu0 %v244
    %v724 = vpop.f32.mrf.mxu0
    %v725 = vadd.f32 0.0, %v724
    %v726 = vpop.f32.mrf.mxu0
    %v727 = vadd.f32 0.0, %v726
    %728 = vmatmul.bf16.gmra.mxu0 %v247
    %v729 = vpop.f32.mrf.mxu0
    %v730 = vadd.f32 0.0, %v729
    %v731 = vpop.f32.mrf.mxu0
    %v732 = vadd.f32 0.0, %v731
    %733 = vmatmul.bf16.gmra.mxu0 %v250
    %v734 = vpop.f32.mrf.mxu0
    %v735 = vadd.f32 0.0, %v734
    %v736 = vpop.f32.mrf.mxu0
    %v737 = vadd.f32 0.0, %v736
    %738 = vmatmul.bf16.gmra.mxu0 %v253
    %v739 = vpop.f32.mrf.mxu0
    %v740 = vadd.f32 0.0, %v739
    %v741 = vpop.f32.mrf.mxu0
    %v742 = vadd.f32 0.0, %v741
    %743 = vmatmul.bf16.gmra.mxu0 %v256
    %v744 = vpop.f32.mrf.mxu0
    %v745 = vadd.f32 0.0, %v744
    %v746 = vpop.f32.mrf.mxu0
    %v747 = vadd.f32 0.0, %v746
    %748 = vmatmul.bf16.gmra.mxu0 %v259
    %v749 = vpop.f32.mrf.mxu0
    %v750 = vadd.f32 0.0, %v749
    %v751 = vpop.f32.mrf.mxu0
    %v752 = vadd.f32 0.0, %v751
    %753 = vmatmul.bf16.gmra.mxu0 %v262
    %v754 = vpop.f32.mrf.mxu0
    %v755 = vadd.f32 0.0, %v754
    %v756 = vpop.f32.mrf.mxu0
    %v757 = vadd.f32 0.0, %v756
    %758 = vmatmul.bf16.gmra.mxu0 %v265
    %v759 = vpop.f32.mrf.mxu0
    %v760 = vadd.f32 0.0, %v759
    %v761 = vpop.f32.mrf.mxu0
    %v762 = vadd.f32 0.0, %v761
    %763 = vmatmul.bf16.gmra.mxu0 %v268
    %v764 = vpop.f32.mrf.mxu0
    %v765 = vadd.f32 0.0, %v764
    %v766 = vpop.f32.mrf.mxu0
    %v767 = vadd.f32 0.0, %v766
    %768 = vmatmul.bf16.gmra.mxu0 %v271
    %v769 = vpop.f32.mrf.mxu0
    %v770 = vadd.f32 0.0, %v769
    %v771 = vpop.f32.mrf.mxu0
    %v772 = vadd.f32 0.0, %v771
    %773 = vmatmul.bf16.gmra.mxu0 %v274
    %v774 = vpop.f32.mrf.mxu0
    %v775 = vadd.f32 0.0, %v774
    %v776 = vpop.f32.mrf.mxu0
    %v777 = vadd.f32 0.0, %v776
    %778 = vmatmul.bf16.gmra.mxu0 %v277
    %v779 = vpop.f32.mrf.mxu0
    %v780 = vadd.f32 0.0, %v779
    %v781 = vpop.f32.mrf.mxu0
    %v782 = vadd.f32 0.0, %v781
    %783 = vmatmul.bf16.gmra.mxu0 %v280
    %v784 = vpop.f32.mrf.mxu0
    %v785 = vadd.f32 0.0, %v784
    %v786 = vpop.f32.mrf.mxu0
    %v787 = vadd.f32 0.0, %v786
    %788 = vmatmul.bf16.gmra.mxu0 %v283
    %v789 = vpop.f32.mrf.mxu0
    %v790 = vadd.f32 0.0, %v789
    %v791 = vpop.f32.mrf.mxu0
    %v792 = vadd.f32 0.0, %v791
    %793 = vmatmul.bf16.gmra.mxu0 %v286
    %v794 = vpop.f32.mrf.mxu0
    %v795 = vadd.f32 0.0, %v794
    %v796 = vpop.f32.mrf.mxu0
    %v797 = vadd.f32 0.0, %v796
    %798 = vmatmul.bf16.gmra.mxu0 %v289
    %v799 = vpop.f32.mrf.mxu0
    %v800 = vadd.f32 0.0, %v799
    %v801 = vpop.f32.mrf.mxu0
    %v802 = vadd.f32 0.0, %v801
    %803 = vmatmul.bf16.gmra.mxu0 %v292
    %v804 = vpop.f32.mrf.mxu0
    %v805 = vadd.f32 0.0, %v804
    %v806 = vpop.f32.mrf.mxu0
    %v807 = vadd.f32 0.0, %v806
    %808 = vmatmul.bf16.gmra.mxu0 %v295
    %v809 = vpop.f32.mrf.mxu0
    %v810 = vadd.f32 0.0, %v809
    %v811 = vpop.f32.mrf.mxu0
    %v812 = vadd.f32 0.0, %v811
    %813 = vmatmul.bf16.gmra.mxu0 %v298
    %v814 = vpop.f32.mrf.mxu0
    %v815 = vadd.f32 0.0, %v814
    %v816 = vpop.f32.mrf.mxu0
    %v817 = vadd.f32 0.0, %v816
    %818 = vmatmul.bf16.gmra.mxu0 %v301
    %v819 = vpop.f32.mrf.mxu0
    %v820 = vadd.f32 0.0, %v819
    %v821 = vpop.f32.mrf.mxu0
    %v822 = vadd.f32 0.0, %v821
    %823 = vmatmul.bf16.gmra.mxu0 %v304
    %v824 = vpop.f32.mrf.mxu0
    %v825 = vadd.f32 0.0, %v824
    %v826 = vpop.f32.mrf.mxu0
    %v827 = vadd.f32 0.0, %v826
    %828 = vmatmul.bf16.gmra.mxu0 %v307
    %v829 = vpop.f32.mrf.mxu0
    %v830 = vadd.f32 0.0, %v829
    %v831 = vpop.f32.mrf.mxu0
    %v832 = vadd.f32 0.0, %v831
    %833 = vmatmul.bf16.gmra.mxu0 %v310
    %v834 = vpop.f32.mrf.mxu0
    %v835 = vadd.f32 0.0, %v834
    %v836 = vpop.f32.mrf.mxu0
    %v837 = vadd.f32 0.0, %v836
    %838 = vmatmul.bf16.gmra.mxu0 %v707
    %v839 = vpop.f32.mrf.mxu0
    %v840 = vadd.f32 0.0, %v839
    %v841 = vpop.f32.mrf.mxu0
    %v842 = vadd.f32 0.0, %v841
    %843 = vdwg.mxu0
    %844 = vmatpush.bf16.msra.mxu0 0
    %845 = vmatpush.bf16.msra.mxu0 0
    %846 = vmatpush.bf16.msra.mxu0 0
    %847 = vmatpush.bf16.msra.mxu0 0
    %848 = vmatpush.bf16.msra.mxu0 0
    %849 = vmatpush.bf16.msra.mxu0 0
    %850 = vmatpush.bf16.msra.mxu0 %v713
    %851 = vmatpush.bf16.msra.mxu0 %v701
    %852 = vmatmul.bf16.gmra.mxu0 %v244
    %v853 = vpop.f32.mrf.mxu0
    %v854 = vadd.f32 0.0, %v853
    %v855 = vpop.f32.mrf.mxu0
    %v856 = vadd.f32 0.0, %v855
    %857 = vmatmul.bf16.gmra.mxu0 %v247
    %v858 = vpop.f32.mrf.mxu0
    %v859 = vadd.f32 0.0, %v858
    %v860 = vpop.f32.mrf.mxu0
    %v861 = vadd.f32 0.0, %v860
    %862 = vmatmul.bf16.gmra.mxu0 %v250
    %v863 = vpop.f32.mrf.mxu0
    %v864 = vadd.f32 0.0, %v863
    %v865 = vpop.f32.mrf.mxu0
    %v866 = vadd.f32 0.0, %v865
    %867 = vmatmul.bf16.gmra.mxu0 %v253
    %v868 = vpop.f32.mrf.mxu0
    %v869 = vadd.f32 0.0, %v868
    %v870 = vpop.f32.mrf.mxu0
    %v871 = vadd.f32 0.0, %v870
    %872 = vmatmul.bf16.gmra.mxu0 %v256
    %v873 = vpop.f32.mrf.mxu0
    %v874 = vadd.f32 0.0, %v873
    %v875 = vpop.f32.mrf.mxu0
    %v876 = vadd.f32 0.0, %v875
    %877 = vmatmul.bf16.gmra.mxu0 %v259
    %v878 = vpop.f32.mrf.mxu0
    %v879 = vadd.f32 0.0, %v878
    %v880 = vpop.f32.mrf.mxu0
    %v881 = vadd.f32 0.0, %v880
    %882 = vmatmul.bf16.gmra.mxu0 %v262
    %v883 = vpop.f32.mrf.mxu0
    %v884 = vadd.f32 0.0, %v883
    %v885 = vpop.f32.mrf.mxu0
    %v886 = vadd.f32 0.0, %v885
    %887 = vmatmul.bf16.gmra.mxu0 %v265
    %v888 = vpop.f32.mrf.mxu0
    %v889 = vadd.f32 0.0, %v888
    %v890 = vpop.f32.mrf.mxu0
    %v891 = vadd.f32 0.0, %v890
    %892 = vmatmul.bf16.gmra.mxu0 %v268
    %v893 = vpop.f32.mrf.mxu0
    %v894 = vadd.f32 0.0, %v893
    %v895 = vpop.f32.mrf.mxu0
    %v896 = vadd.f32 0.0, %v895
    %897 = vmatmul.bf16.gmra.mxu0 %v271
    %v898 = vpop.f32.mrf.mxu0
    %v899 = vadd.f32 0.0, %v898
    %v900 = vpop.f32.mrf.mxu0
    %v901 = vadd.f32 0.0, %v900
    %902 = vmatmul.bf16.gmra.mxu0 %v274
    %v903 = vpop.f32.mrf.mxu0
    %v904 = vadd.f32 0.0, %v903
    %v905 = vpop.f32.mrf.mxu0
    %v906 = vadd.f32 0.0, %v905
    %907 = vmatmul.bf16.gmra.mxu0 %v277
    %v908 = vpop.f32.mrf.mxu0
    %v909 = vadd.f32 0.0, %v908
    %v910 = vpop.f32.mrf.mxu0
    %v911 = vadd.f32 0.0, %v910
    %912 = vmatmul.bf16.gmra.mxu0 %v280
    %v913 = vpop.f32.mrf.mxu0
    %v914 = vadd.f32 0.0, %v913
    %v915 = vpop.f32.mrf.mxu0
    %v916 = vadd.f32 0.0, %v915
    %917 = vmatmul.bf16.gmra.mxu0 %v283
    %v918 = vpop.f32.mrf.mxu0
    %v919 = vadd.f32 0.0, %v918
    %v920 = vpop.f32.mrf.mxu0
    %v921 = vadd.f32 0.0, %v920
    %922 = vmatmul.bf16.gmra.mxu0 %v286
    %v923 = vpop.f32.mrf.mxu0
    %v924 = vadd.f32 0.0, %v923
    %v925 = vpop.f32.mrf.mxu0
    %v926 = vadd.f32 0.0, %v925
    %927 = vmatmul.bf16.gmra.mxu0 %v289
    %v928 = vpop.f32.mrf.mxu0
    %v929 = vadd.f32 0.0, %v928
    %v930 = vpop.f32.mrf.mxu0
    %v931 = vadd.f32 0.0, %v930
    %932 = vmatmul.bf16.gmra.mxu0 %v292
    %v933 = vpop.f32.mrf.mxu0
    %v934 = vadd.f32 0.0, %v933
    %v935 = vpop.f32.mrf.mxu0
    %v936 = vadd.f32 0.0, %v935
    %937 = vmatmul.bf16.gmra.mxu0 %v295
    %v938 = vpop.f32.mrf.mxu0
    %v939 = vadd.f32 0.0, %v938
    %v940 = vpop.f32.mrf.mxu0
    %v941 = vadd.f32 0.0, %v940
    %942 = vmatmul.bf16.gmra.mxu0 %v298
    %v943 = vpop.f32.mrf.mxu0
    %v944 = vadd.f32 0.0, %v943
    %v945 = vpop.f32.mrf.mxu0
    %v946 = vadd.f32 0.0, %v945
    %947 = vmatmul.bf16.gmra.mxu0 %v301
    %v948 = vpop.f32.mrf.mxu0
    %v949 = vadd.f32 0.0, %v948
    %v950 = vpop.f32.mrf.mxu0
    %v951 = vadd.f32 0.0, %v950
    %952 = vmatmul.bf16.gmra.mxu0 %v304
    %v953 = vpop.f32.mrf.mxu0
    %v954 = vadd.f32 0.0, %v953
    %v955 = vpop.f32.mrf.mxu0
    %v956 = vadd.f32 0.0, %v955
    %957 = vmatmul.bf16.gmra.mxu0 %v307
    %v958 = vpop.f32.mrf.mxu0
    %v959 = vadd.f32 0.0, %v958
    %v960 = vpop.f32.mrf.mxu0
    %v961 = vadd.f32 0.0, %v960
    %962 = vmatmul.bf16.gmra.mxu0 %v310
    %v963 = vpop.f32.mrf.mxu0
    %v964 = vadd.f32 0.0, %v963
    %v965 = vpop.f32.mrf.mxu0
    %v966 = vadd.f32 0.0, %v965
    %967 = vmatmul.bf16.gmra.mxu0 %v707
    %v968 = vpop.f32.mrf.mxu0
    %v969 = vadd.f32 0.0, %v968
    %v970 = vpop.f32.mrf.mxu0
    %v971 = vadd.f32 0.0, %v970
    %972 = vdwg.mxu0
    %v973 = vadd.f32 %v582, %v725
    %v974 = vadd.f32 %v583, %v854
    %v975 = vadd.f32 %v584, %v727
    %v976 = vadd.f32 %v585, %v856
    %v977 = vadd.f32 %v586, %v730
    %v978 = vadd.f32 %v587, %v859
    %v979 = vadd.f32 %v588, %v732
    %v980 = vadd.f32 %v589, %v861
    %v981 = vadd.f32 %v590, %v735
    %v982 = vadd.f32 %v591, %v864
    %v983 = vadd.f32 %v592, %v737
    %v984 = vadd.f32 %v593, %v866
    %v985 = vadd.f32 %v594, %v740
    %v986 = vadd.f32 %v595, %v869
    %v987 = vadd.f32 %v596, %v742
    %v988 = vadd.f32 %v597, %v871
    %v989 = vadd.f32 %v598, %v745
    %v990 = vadd.f32 %v599, %v874
    %v991 = vadd.f32 %v600, %v747
    %v992 = vadd.f32 %v601, %v876
    %v993 = vadd.f32 %v602, %v750
    %v994 = vadd.f32 %v603, %v879
    %v995 = vadd.f32 %v604, %v752
    %v996 = vadd.f32 %v605, %v881
    %v997 = vadd.f32 %v606, %v755
    %v998 = vadd.f32 %v607, %v884
    %v999 = vadd.f32 %v608, %v757
    %v1000 = vadd.f32 %v609, %v886
    %v1001 = vadd.f32 %v610, %v760
    %v1002 = vadd.f32 %v611, %v889
    %v1003 = vadd.f32 %v612, %v762
    %v1004 = vadd.f32 %v613, %v891
    %v1005 = vadd.f32 %v614, %v765
    %v1006 = vadd.f32 %v615, %v894
    %v1007 = vadd.f32 %v616, %v767
    %v1008 = vadd.f32 %v617, %v896
    %v1009 = vadd.f32 %v618, %v770
    %v1010 = vadd.f32 %v619, %v899
    %v1011 = vadd.f32 %v620, %v772
    %v1012 = vadd.f32 %v621, %v901
    %v1013 = vadd.f32 %v622, %v775
    %v1014 = vadd.f32 %v623, %v904
    %v1015 = vadd.f32 %v624, %v777
    %v1016 = vadd.f32 %v625, %v906
    %v1017 = vadd.f32 %v626, %v780
    %v1018 = vadd.f32 %v627, %v909
    %v1019 = vadd.f32 %v628, %v782
    %v1020 = vadd.f32 %v629, %v911
    %v1021 = vadd.f32 %v630, %v785
    %v1022 = vadd.f32 %v631, %v914
    %v1023 = vadd.f32 %v632, %v787
    %v1024 = vadd.f32 %v633, %v916
    %v1025 = vadd.f32 %v634, %v790
    %v1026 = vadd.f32 %v635, %v919
    %v1027 = vadd.f32 %v636, %v792
    %v1028 = vadd.f32 %v637, %v921
    %v1029 = vadd.f32 %v638, %v795
    %v1030 = vadd.f32 %v639, %v924
    %v1031 = vadd.f32 %v640, %v797
    %v1032 = vadd.f32 %v641, %v926
    %v1033 = vadd.f32 %v642, %v800
    %v1034 = vadd.f32 %v643, %v929
    %v1035 = vadd.f32 %v644, %v802
    %v1036 = vadd.f32 %v645, %v931
    %v1037 = vadd.f32 %v646, %v805
    %v1038 = vadd.f32 %v647, %v934
    %v1039 = vadd.f32 %v648, %v807
    %v1040 = vadd.f32 %v649, %v936
    %v1041 = vadd.f32 %v650, %v810
    %v1042 = vadd.f32 %v651, %v939
    %v1043 = vadd.f32 %v652, %v812
    %v1044 = vadd.f32 %v653, %v941
    %v1045 = vadd.f32 %v654, %v815
    %v1046 = vadd.f32 %v655, %v944
    %v1047 = vadd.f32 %v656, %v817
    %v1048 = vadd.f32 %v657, %v946
    %v1049 = vadd.f32 %v658, %v820
    %v1050 = vadd.f32 %v659, %v949
    %v1051 = vadd.f32 %v660, %v822
    %v1052 = vadd.f32 %v661, %v951
    %v1053 = vadd.f32 %v662, %v825
    %v1054 = vadd.f32 %v663, %v954
    %v1055 = vadd.f32 %v664, %v827
    %v1056 = vadd.f32 %v665, %v956
    %v1057 = vadd.f32 %v666, %v830
    %v1058 = vadd.f32 %v667, %v959
    %v1059 = vadd.f32 %v668, %v832
    %v1060 = vadd.f32 %v669, %v961
    %v1061 = vadd.f32 %v670, %v835
    %v1062 = vadd.f32 %v671, %v964
    %v1063 = vadd.f32 %v672, %v837
    %v1064 = vadd.f32 %v673, %v966
    %v1065 = vadd.f32 %v674, %v840
    %v1066 = vadd.f32 %v675, %v969
    %v1067 = vadd.f32 %v676, %v842
    %v1068 = vadd.f32 %v677, %v971
    %s1069 = scalar_lea.vmem %s1, 64
    %v1070 = vld [vmem:[%s1069] sm:$0xff]
    %v1071 = vld [vmem:[%s1069 + $0x8] sm:$0xff]
    %v1072 = vld [vmem:[%s1069 + $0x10] sm:$0xff]
    %v1073 = vld [vmem:[%s1069 + $0x18] sm:$0x33]
    %v1076 = vunpack.c.l.b16 %v90
    %v1077 = vunpack.c.l.b16 %v91
    %v1078 = vpack.c.b16 %v1077, %v1076
    %v1083 = vunpack.c.l.b16 %v1070
    %v1084 = vunpack.c.h.b16 %v1070
    %v1085 = vunpack.c.l.b16 %v1071
    %v1086 = vunpack.c.h.b16 %v1071
    %v1087 = vunpack.c.l.b16 %v1072
    %v1088 = vunpack.c.h.b16 %v1072
    %v1089 = vunpack.c.l.b16 %v1073
    %v1090 = vunpack.c.h.b16 %v1073
    %v1091 = vpack.c.b16 %v1085, %v1083
    %v1092 = vpack.c.b16 %v1086, %v1084
    %v1093 = vpack.c.b16 %v1089, %v1087
    %v1094 = vpack.c.b16 %v1090, %v1088
    %v1098 = vsel %vm239, %v1078, 0
    %v1101 = vsel %vm312, %v1093, 0
    %v1104 = vsel %vm312, %v1094, 0
    %1106 = vmatpush.bf16.msra.mxu0 0
    %1107 = vmatpush.bf16.msra.mxu0 0
    %1108 = vmatpush.bf16.msra.mxu0 0
    %1109 = vmatpush.bf16.msra.mxu0 0
    %1110 = vmatpush.bf16.msra.mxu0 0
    %1111 = vmatpush.bf16.msra.mxu0 0
    %1112 = vmatpush.bf16.msra.mxu0 %v1101
    %1113 = vmatpush.bf16.msra.mxu0 %v1091
    %1114 = vmatmul.bf16.gmra.mxu0 %v247
    %v1115 = vpop.f32.mrf.mxu0
    %v1116 = vadd.f32 0.0, %v1115
    %v1117 = vpop.f32.mrf.mxu0
    %v1118 = vadd.f32 0.0, %v1117
    %1119 = vmatmul.bf16.gmra.mxu0 %v250
    %v1120 = vpop.f32.mrf.mxu0
    %v1121 = vadd.f32 0.0, %v1120
    %v1122 = vpop.f32.mrf.mxu0
    %v1123 = vadd.f32 0.0, %v1122
    %1124 = vmatmul.bf16.gmra.mxu0 %v253
    %v1125 = vpop.f32.mrf.mxu0
    %v1126 = vadd.f32 0.0, %v1125
    %v1127 = vpop.f32.mrf.mxu0
    %v1128 = vadd.f32 0.0, %v1127
    %1129 = vmatmul.bf16.gmra.mxu0 %v256
    %v1130 = vpop.f32.mrf.mxu0
    %v1131 = vadd.f32 0.0, %v1130
    %v1132 = vpop.f32.mrf.mxu0
    %v1133 = vadd.f32 0.0, %v1132
    %1134 = vmatmul.bf16.gmra.mxu0 %v259
    %v1135 = vpop.f32.mrf.mxu0
    %v1136 = vadd.f32 0.0, %v1135
    %v1137 = vpop.f32.mrf.mxu0
    %v1138 = vadd.f32 0.0, %v1137
    %1139 = vmatmul.bf16.gmra.mxu0 %v262
    %v1140 = vpop.f32.mrf.mxu0
    %v1141 = vadd.f32 0.0, %v1140
    %v1142 = vpop.f32.mrf.mxu0
    %v1143 = vadd.f32 0.0, %v1142
    %1144 = vmatmul.bf16.gmra.mxu0 %v265
    %v1145 = vpop.f32.mrf.mxu0
    %v1146 = vadd.f32 0.0, %v1145
    %v1147 = vpop.f32.mrf.mxu0
    %v1148 = vadd.f32 0.0, %v1147
    %1149 = vmatmul.bf16.gmra.mxu0 %v268
    %v1150 = vpop.f32.mrf.mxu0
    %v1151 = vadd.f32 0.0, %v1150
    %v1152 = vpop.f32.mrf.mxu0
    %v1153 = vadd.f32 0.0, %v1152
    %1154 = vmatmul.bf16.gmra.mxu0 %v271
    %v1155 = vpop.f32.mrf.mxu0
    %v1156 = vadd.f32 0.0, %v1155
    %v1157 = vpop.f32.mrf.mxu0
    %v1158 = vadd.f32 0.0, %v1157
    %1159 = vmatmul.bf16.gmra.mxu0 %v274
    %v1160 = vpop.f32.mrf.mxu0
    %v1161 = vadd.f32 0.0, %v1160
    %v1162 = vpop.f32.mrf.mxu0
    %v1163 = vadd.f32 0.0, %v1162
    %1164 = vmatmul.bf16.gmra.mxu0 %v277
    %v1165 = vpop.f32.mrf.mxu0
    %v1166 = vadd.f32 0.0, %v1165
    %v1167 = vpop.f32.mrf.mxu0
    %v1168 = vadd.f32 0.0, %v1167
    %1169 = vmatmul.bf16.gmra.mxu0 %v280
    %v1170 = vpop.f32.mrf.mxu0
    %v1171 = vadd.f32 0.0, %v1170
    %v1172 = vpop.f32.mrf.mxu0
    %v1173 = vadd.f32 0.0, %v1172
    %1174 = vmatmul.bf16.gmra.mxu0 %v283
    %v1175 = vpop.f32.mrf.mxu0
    %v1176 = vadd.f32 0.0, %v1175
    %v1177 = vpop.f32.mrf.mxu0
    %v1178 = vadd.f32 0.0, %v1177
    %1179 = vmatmul.bf16.gmra.mxu0 %v286
    %v1180 = vpop.f32.mrf.mxu0
    %v1181 = vadd.f32 0.0, %v1180
    %v1182 = vpop.f32.mrf.mxu0
    %v1183 = vadd.f32 0.0, %v1182
    %1184 = vmatmul.bf16.gmra.mxu0 %v289
    %v1185 = vpop.f32.mrf.mxu0
    %v1186 = vadd.f32 0.0, %v1185
    %v1187 = vpop.f32.mrf.mxu0
    %v1188 = vadd.f32 0.0, %v1187
    %1189 = vmatmul.bf16.gmra.mxu0 %v292
    %v1190 = vpop.f32.mrf.mxu0
    %v1191 = vadd.f32 0.0, %v1190
    %v1192 = vpop.f32.mrf.mxu0
    %v1193 = vadd.f32 0.0, %v1192
    %1194 = vmatmul.bf16.gmra.mxu0 %v295
    %v1195 = vpop.f32.mrf.mxu0
    %v1196 = vadd.f32 0.0, %v1195
    %v1197 = vpop.f32.mrf.mxu0
    %v1198 = vadd.f32 0.0, %v1197
    %1199 = vmatmul.bf16.gmra.mxu0 %v298
    %v1200 = vpop.f32.mrf.mxu0
    %v1201 = vadd.f32 0.0, %v1200
    %v1202 = vpop.f32.mrf.mxu0
    %v1203 = vadd.f32 0.0, %v1202
    %1204 = vmatmul.bf16.gmra.mxu0 %v301
    %v1205 = vpop.f32.mrf.mxu0
    %v1206 = vadd.f32 0.0, %v1205
    %v1207 = vpop.f32.mrf.mxu0
    %v1208 = vadd.f32 0.0, %v1207
    %1209 = vmatmul.bf16.gmra.mxu0 %v304
    %v1210 = vpop.f32.mrf.mxu0
    %v1211 = vadd.f32 0.0, %v1210
    %v1212 = vpop.f32.mrf.mxu0
    %v1213 = vadd.f32 0.0, %v1212
    %1214 = vmatmul.bf16.gmra.mxu0 %v307
    %v1215 = vpop.f32.mrf.mxu0
    %v1216 = vadd.f32 0.0, %v1215
    %v1217 = vpop.f32.mrf.mxu0
    %v1218 = vadd.f32 0.0, %v1217
    %1219 = vmatmul.bf16.gmra.mxu0 %v310
    %v1220 = vpop.f32.mrf.mxu0
    %v1221 = vadd.f32 0.0, %v1220
    %v1222 = vpop.f32.mrf.mxu0
    %v1223 = vadd.f32 0.0, %v1222
    %1224 = vmatmul.bf16.gmra.mxu0 %v707
    %v1225 = vpop.f32.mrf.mxu0
    %v1226 = vadd.f32 0.0, %v1225
    %v1227 = vpop.f32.mrf.mxu0
    %v1228 = vadd.f32 0.0, %v1227
    %1229 = vmatmul.bf16.gmra.mxu0 %v1098
    %v1230 = vpop.f32.mrf.mxu0
    %v1231 = vadd.f32 0.0, %v1230
    %v1232 = vpop.f32.mrf.mxu0
    %v1233 = vadd.f32 0.0, %v1232
    %1234 = vdwg.mxu0
    %1235 = vmatpush.bf16.msra.mxu0 0
    %1236 = vmatpush.bf16.msra.mxu0 0
    %1237 = vmatpush.bf16.msra.mxu0 0
    %1238 = vmatpush.bf16.msra.mxu0 0
    %1239 = vmatpush.bf16.msra.mxu0 0
    %1240 = vmatpush.bf16.msra.mxu0 0
    %1241 = vmatpush.bf16.msra.mxu0 %v1104
    %1242 = vmatpush.bf16.msra.mxu0 %v1092
    %1243 = vmatmul.bf16.gmra.mxu0 %v247
    %v1244 = vpop.f32.mrf.mxu0
    %v1245 = vadd.f32 0.0, %v1244
    %v1246 = vpop.f32.mrf.mxu0
    %v1247 = vadd.f32 0.0, %v1246
    %1248 = vmatmul.bf16.gmra.mxu0 %v250
    %v1249 = vpop.f32.mrf.mxu0
    %v1250 = vadd.f32 0.0, %v1249
    %v1251 = vpop.f32.mrf.mxu0
    %v1252 = vadd.f32 0.0, %v1251
    %1253 = vmatmul.bf16.gmra.mxu0 %v253
    %v1254 = vpop.f32.mrf.mxu0
    %v1255 = vadd.f32 0.0, %v1254
    %v1256 = vpop.f32.mrf.mxu0
    %v1257 = vadd.f32 0.0, %v1256
    %1258 = vmatmul.bf16.gmra.mxu0 %v256
    %v1259 = vpop.f32.mrf.mxu0
    %v1260 = vadd.f32 0.0, %v1259
    %v1261 = vpop.f32.mrf.mxu0
    %v1262 = vadd.f32 0.0, %v1261
    %1263 = vmatmul.bf16.gmra.mxu0 %v259
    %v1264 = vpop.f32.mrf.mxu0
    %v1265 = vadd.f32 0.0, %v1264
    %v1266 = vpop.f32.mrf.mxu0
    %v1267 = vadd.f32 0.0, %v1266
    %1268 = vmatmul.bf16.gmra.mxu0 %v262
    %v1269 = vpop.f32.mrf.mxu0
    %v1270 = vadd.f32 0.0, %v1269
    %v1271 = vpop.f32.mrf.mxu0
    %v1272 = vadd.f32 0.0, %v1271
    %1273 = vmatmul.bf16.gmra.mxu0 %v265
    %v1274 = vpop.f32.mrf.mxu0
    %v1275 = vadd.f32 0.0, %v1274
    %v1276 = vpop.f32.mrf.mxu0
    %v1277 = vadd.f32 0.0, %v1276
    %1278 = vmatmul.bf16.gmra.mxu0 %v268
    %v1279 = vpop.f32.mrf.mxu0
    %v1280 = vadd.f32 0.0, %v1279
    %v1281 = vpop.f32.mrf.mxu0
    %v1282 = vadd.f32 0.0, %v1281
    %1283 = vmatmul.bf16.gmra.mxu0 %v271
    %v1284 = vpop.f32.mrf.mxu0
    %v1285 = vadd.f32 0.0, %v1284
    %v1286 = vpop.f32.mrf.mxu0
    %v1287 = vadd.f32 0.0, %v1286
    %1288 = vmatmul.bf16.gmra.mxu0 %v274
    %v1289 = vpop.f32.mrf.mxu0
    %v1290 = vadd.f32 0.0, %v1289
    %v1291 = vpop.f32.mrf.mxu0
    %v1292 = vadd.f32 0.0, %v1291
    %1293 = vmatmul.bf16.gmra.mxu0 %v277
    %v1294 = vpop.f32.mrf.mxu0
    %v1295 = vadd.f32 0.0, %v1294
    %v1296 = vpop.f32.mrf.mxu0
    %v1297 = vadd.f32 0.0, %v1296
    %1298 = vmatmul.bf16.gmra.mxu0 %v280
    %v1299 = vpop.f32.mrf.mxu0
    %v1300 = vadd.f32 0.0, %v1299
    %v1301 = vpop.f32.mrf.mxu0
    %v1302 = vadd.f32 0.0, %v1301
    %1303 = vmatmul.bf16.gmra.mxu0 %v283
    %v1304 = vpop.f32.mrf.mxu0
    %v1305 = vadd.f32 0.0, %v1304
    %v1306 = vpop.f32.mrf.mxu0
    %v1307 = vadd.f32 0.0, %v1306
    %1308 = vmatmul.bf16.gmra.mxu0 %v286
    %v1309 = vpop.f32.mrf.mxu0
    %v1310 = vadd.f32 0.0, %v1309
    %v1311 = vpop.f32.mrf.mxu0
    %v1312 = vadd.f32 0.0, %v1311
    %1313 = vmatmul.bf16.gmra.mxu0 %v289
    %v1314 = vpop.f32.mrf.mxu0
    %v1315 = vadd.f32 0.0, %v1314
    %v1316 = vpop.f32.mrf.mxu0
    %v1317 = vadd.f32 0.0, %v1316
    %1318 = vmatmul.bf16.gmra.mxu0 %v292
    %v1319 = vpop.f32.mrf.mxu0
    %v1320 = vadd.f32 0.0, %v1319
    %v1321 = vpop.f32.mrf.mxu0
    %v1322 = vadd.f32 0.0, %v1321
    %1323 = vmatmul.bf16.gmra.mxu0 %v295
    %v1324 = vpop.f32.mrf.mxu0
    %v1325 = vadd.f32 0.0, %v1324
    %v1326 = vpop.f32.mrf.mxu0
    %v1327 = vadd.f32 0.0, %v1326
    %1328 = vmatmul.bf16.gmra.mxu0 %v298
    %v1329 = vpop.f32.mrf.mxu0
    %v1330 = vadd.f32 0.0, %v1329
    %v1331 = vpop.f32.mrf.mxu0
    %v1332 = vadd.f32 0.0, %v1331
    %1333 = vmatmul.bf16.gmra.mxu0 %v301
    %v1334 = vpop.f32.mrf.mxu0
    %v1335 = vadd.f32 0.0, %v1334
    %v1336 = vpop.f32.mrf.mxu0
    %v1337 = vadd.f32 0.0, %v1336
    %1338 = vmatmul.bf16.gmra.mxu0 %v304
    %v1339 = vpop.f32.mrf.mxu0
    %v1340 = vadd.f32 0.0, %v1339
    %v1341 = vpop.f32.mrf.mxu0
    %v1342 = vadd.f32 0.0, %v1341
    %1343 = vmatmul.bf16.gmra.mxu0 %v307
    %v1344 = vpop.f32.mrf.mxu0
    %v1345 = vadd.f32 0.0, %v1344
    %v1346 = vpop.f32.mrf.mxu0
    %v1347 = vadd.f32 0.0, %v1346
    %1348 = vmatmul.bf16.gmra.mxu0 %v310
    %v1349 = vpop.f32.mrf.mxu0
    %v1350 = vadd.f32 0.0, %v1349
    %v1351 = vpop.f32.mrf.mxu0
    %v1352 = vadd.f32 0.0, %v1351
    %1353 = vmatmul.bf16.gmra.mxu0 %v707
    %v1354 = vpop.f32.mrf.mxu0
    %v1355 = vadd.f32 0.0, %v1354
    %v1356 = vpop.f32.mrf.mxu0
    %v1357 = vadd.f32 0.0, %v1356
    %1358 = vmatmul.bf16.gmra.mxu0 %v1098
    %v1359 = vpop.f32.mrf.mxu0
    %v1360 = vadd.f32 0.0, %v1359
    %v1361 = vpop.f32.mrf.mxu0
    %v1362 = vadd.f32 0.0, %v1361
    %1363 = vdwg.mxu0
    %v1364 = vadd.f32 %v973, %v1116
    %v1365 = vadd.f32 %v974, %v1245
    %v1366 = vadd.f32 %v975, %v1118
    %v1367 = vadd.f32 %v976, %v1247
    %v1368 = vadd.f32 %v977, %v1121
    %v1369 = vadd.f32 %v978, %v1250
    %v1370 = vadd.f32 %v979, %v1123
    %v1371 = vadd.f32 %v980, %v1252
    %v1372 = vadd.f32 %v981, %v1126
    %v1373 = vadd.f32 %v982, %v1255
    %v1374 = vadd.f32 %v983, %v1128
    %v1375 = vadd.f32 %v984, %v1257
    %v1376 = vadd.f32 %v985, %v1131
    %v1377 = vadd.f32 %v986, %v1260
    %v1378 = vadd.f32 %v987, %v1133
    %v1379 = vadd.f32 %v988, %v1262
    %v1380 = vadd.f32 %v989, %v1136
    %v1381 = vadd.f32 %v990, %v1265
    %v1382 = vadd.f32 %v991, %v1138
    %v1383 = vadd.f32 %v992, %v1267
    %v1384 = vadd.f32 %v993, %v1141
    %v1385 = vadd.f32 %v994, %v1270
    %v1386 = vadd.f32 %v995, %v1143
    %v1387 = vadd.f32 %v996, %v1272
    %v1388 = vadd.f32 %v997, %v1146
    %v1389 = vadd.f32 %v998, %v1275
    %v1390 = vadd.f32 %v999, %v1148
    %v1391 = vadd.f32 %v1000, %v1277
    %v1392 = vadd.f32 %v1001, %v1151
    %v1393 = vadd.f32 %v1002, %v1280
    %v1394 = vadd.f32 %v1003, %v1153
    %v1395 = vadd.f32 %v1004, %v1282
    %v1396 = vadd.f32 %v1005, %v1156
    %v1397 = vadd.f32 %v1006, %v1285
    %v1398 = vadd.f32 %v1007, %v1158
    %v1399 = vadd.f32 %v1008, %v1287
    %v1400 = vadd.f32 %v1009, %v1161
    %v1401 = vadd.f32 %v1010, %v1290
    %v1402 = vadd.f32 %v1011, %v1163
    %v1403 = vadd.f32 %v1012, %v1292
    %v1404 = vadd.f32 %v1013, %v1166
    %v1405 = vadd.f32 %v1014, %v1295
    %v1406 = vadd.f32 %v1015, %v1168
    %v1407 = vadd.f32 %v1016, %v1297
    %v1408 = vadd.f32 %v1017, %v1171
    %v1409 = vadd.f32 %v1018, %v1300
    %v1410 = vadd.f32 %v1019, %v1173
    %v1411 = vadd.f32 %v1020, %v1302
    %v1412 = vadd.f32 %v1021, %v1176
    %v1413 = vadd.f32 %v1022, %v1305
    %v1414 = vadd.f32 %v1023, %v1178
    %v1415 = vadd.f32 %v1024, %v1307
    %v1416 = vadd.f32 %v1025, %v1181
    %v1417 = vadd.f32 %v1026, %v1310
    %v1418 = vadd.f32 %v1027, %v1183
    %v1419 = vadd.f32 %v1028, %v1312
    %v1420 = vadd.f32 %v1029, %v1186
    %v1421 = vadd.f32 %v1030, %v1315
    %v1422 = vadd.f32 %v1031, %v1188
    %v1423 = vadd.f32 %v1032, %v1317
    %v1424 = vadd.f32 %v1033, %v1191
    %v1425 = vadd.f32 %v1034, %v1320
    %v1426 = vadd.f32 %v1035, %v1193
    %v1427 = vadd.f32 %v1036, %v1322
    %v1428 = vadd.f32 %v1037, %v1196
    %v1429 = vadd.f32 %v1038, %v1325
    %v1430 = vadd.f32 %v1039, %v1198
    %v1431 = vadd.f32 %v1040, %v1327
    %v1432 = vadd.f32 %v1041, %v1201
    %v1433 = vadd.f32 %v1042, %v1330
    %v1434 = vadd.f32 %v1043, %v1203
    %v1435 = vadd.f32 %v1044, %v1332
    %v1436 = vadd.f32 %v1045, %v1206
    %v1437 = vadd.f32 %v1046, %v1335
    %v1438 = vadd.f32 %v1047, %v1208
    %v1439 = vadd.f32 %v1048, %v1337
    %v1440 = vadd.f32 %v1049, %v1211
    %v1441 = vadd.f32 %v1050, %v1340
    %v1442 = vadd.f32 %v1051, %v1213
    %v1443 = vadd.f32 %v1052, %v1342
    %v1444 = vadd.f32 %v1053, %v1216
    %v1445 = vadd.f32 %v1054, %v1345
    %v1446 = vadd.f32 %v1055, %v1218
    %v1447 = vadd.f32 %v1056, %v1347
    %v1448 = vadd.f32 %v1057, %v1221
    %v1449 = vadd.f32 %v1058, %v1350
    %v1450 = vadd.f32 %v1059, %v1223
    %v1451 = vadd.f32 %v1060, %v1352
    %v1452 = vadd.f32 %v1061, %v1226
    %v1453 = vadd.f32 %v1062, %v1355
    %v1454 = vadd.f32 %v1063, %v1228
    %v1455 = vadd.f32 %v1064, %v1357
    %v1456 = vadd.f32 %v1065, %v1231
    %v1457 = vadd.f32 %v1066, %v1360
    %v1458 = vadd.f32 %v1067, %v1233
    %v1459 = vadd.f32 %v1068, %v1362
    %s1460 = scalar_lea.vmem %s1, 96
    %v1461 = vld [vmem:[%s1460] sm:$0xff]
    %v1462 = vld [vmem:[%s1460 + $0x8] sm:$0xff]
    %v1463 = vld [vmem:[%s1460 + $0x10] sm:$0xff]
    %v1464 = vld [vmem:[%s1460 + $0x18] sm:$0x33]
    %v1467 = vunpack.c.l.b16 %v92
    %v1468 = vunpack.c.l.b16 %v93
    %v1469 = vpack.c.b16 %v1468, %v1467
    %v1474 = vunpack.c.l.b16 %v1461
    %v1475 = vunpack.c.h.b16 %v1461
    %v1476 = vunpack.c.l.b16 %v1462
    %v1477 = vunpack.c.h.b16 %v1462
    %v1478 = vunpack.c.l.b16 %v1463
    %v1479 = vunpack.c.h.b16 %v1463
    %v1480 = vunpack.c.l.b16 %v1464
    %v1481 = vunpack.c.h.b16 %v1464
    %v1482 = vpack.c.b16 %v1476, %v1474
    %v1483 = vpack.c.b16 %v1477, %v1475
    %v1484 = vpack.c.b16 %v1480, %v1478
    %v1485 = vpack.c.b16 %v1481, %v1479
    %v1489 = vsel %vm239, %v1469, 0
    %v1492 = vsel %vm312, %v1484, 0
    %v1495 = vsel %vm312, %v1485, 0
    %1497 = vmatpush.bf16.msra.mxu0 0
    %1498 = vmatpush.bf16.msra.mxu0 0
    %1499 = vmatpush.bf16.msra.mxu0 0
    %1500 = vmatpush.bf16.msra.mxu0 0
    %1501 = vmatpush.bf16.msra.mxu0 0
    %1502 = vmatpush.bf16.msra.mxu0 0
    %1503 = vmatpush.bf16.msra.mxu0 %v1492
    %1504 = vmatpush.bf16.msra.mxu0 %v1482
    %1505 = vmatmul.bf16.gmra.mxu0 %v250
    %v1506 = vpop.f32.mrf.mxu0
    %v1507 = vadd.f32 0.0, %v1506
    %v1508 = vpop.f32.mrf.mxu0
    %v1509 = vadd.f32 0.0, %v1508
    %1510 = vmatmul.bf16.gmra.mxu0 %v253
    %v1511 = vpop.f32.mrf.mxu0
    %v1512 = vadd.f32 0.0, %v1511
    %v1513 = vpop.f32.mrf.mxu0
    %v1514 = vadd.f32 0.0, %v1513
    %1515 = vmatmul.bf16.gmra.mxu0 %v256
    %v1516 = vpop.f32.mrf.mxu0
    %v1517 = vadd.f32 0.0, %v1516
    %v1518 = vpop.f32.mrf.mxu0
    %v1519 = vadd.f32 0.0, %v1518
    %1520 = vmatmul.bf16.gmra.mxu0 %v259
    %v1521 = vpop.f32.mrf.mxu0
    %v1522 = vadd.f32 0.0, %v1521
    %v1523 = vpop.f32.mrf.mxu0
    %v1524 = vadd.f32 0.0, %v1523
    %1525 = vmatmul.bf16.gmra.mxu0 %v262
    %v1526 = vpop.f32.mrf.mxu0
    %v1527 = vadd.f32 0.0, %v1526
    %v1528 = vpop.f32.mrf.mxu0
    %v1529 = vadd.f32 0.0, %v1528
    %1530 = vmatmul.bf16.gmra.mxu0 %v265
    %v1531 = vpop.f32.mrf.mxu0
    %v1532 = vadd.f32 0.0, %v1531
    %v1533 = vpop.f32.mrf.mxu0
    %v1534 = vadd.f32 0.0, %v1533
    %1535 = vmatmul.bf16.gmra.mxu0 %v268
    %v1536 = vpop.f32.mrf.mxu0
    %v1537 = vadd.f32 0.0, %v1536
    %v1538 = vpop.f32.mrf.mxu0
    %v1539 = vadd.f32 0.0, %v1538
    %1540 = vmatmul.bf16.gmra.mxu0 %v271
    %v1541 = vpop.f32.mrf.mxu0
    %v1542 = vadd.f32 0.0, %v1541
    %v1543 = vpop.f32.mrf.mxu0
    %v1544 = vadd.f32 0.0, %v1543
    %1545 = vmatmul.bf16.gmra.mxu0 %v274
    %v1546 = vpop.f32.mrf.mxu0
    %v1547 = vadd.f32 0.0, %v1546
    %v1548 = vpop.f32.mrf.mxu0
    %v1549 = vadd.f32 0.0, %v1548
    %1550 = vmatmul.bf16.gmra.mxu0 %v277
    %v1551 = vpop.f32.mrf.mxu0
    %v1552 = vadd.f32 0.0, %v1551
    %v1553 = vpop.f32.mrf.mxu0
    %v1554 = vadd.f32 0.0, %v1553
    %1555 = vmatmul.bf16.gmra.mxu0 %v280
    %v1556 = vpop.f32.mrf.mxu0
    %v1557 = vadd.f32 0.0, %v1556
    %v1558 = vpop.f32.mrf.mxu0
    %v1559 = vadd.f32 0.0, %v1558
    %1560 = vmatmul.bf16.gmra.mxu0 %v283
    %v1561 = vpop.f32.mrf.mxu0
    %v1562 = vadd.f32 0.0, %v1561
    %v1563 = vpop.f32.mrf.mxu0
    %v1564 = vadd.f32 0.0, %v1563
    %1565 = vmatmul.bf16.gmra.mxu0 %v286
    %v1566 = vpop.f32.mrf.mxu0
    %v1567 = vadd.f32 0.0, %v1566
    %v1568 = vpop.f32.mrf.mxu0
    %v1569 = vadd.f32 0.0, %v1568
    %1570 = vmatmul.bf16.gmra.mxu0 %v289
    %v1571 = vpop.f32.mrf.mxu0
    %v1572 = vadd.f32 0.0, %v1571
    %v1573 = vpop.f32.mrf.mxu0
    %v1574 = vadd.f32 0.0, %v1573
    %1575 = vmatmul.bf16.gmra.mxu0 %v292
    %v1576 = vpop.f32.mrf.mxu0
    %v1577 = vadd.f32 0.0, %v1576
    %v1578 = vpop.f32.mrf.mxu0
    %v1579 = vadd.f32 0.0, %v1578
    %1580 = vmatmul.bf16.gmra.mxu0 %v295
    %v1581 = vpop.f32.mrf.mxu0
    %v1582 = vadd.f32 0.0, %v1581
    %v1583 = vpop.f32.mrf.mxu0
    %v1584 = vadd.f32 0.0, %v1583
    %1585 = vmatmul.bf16.gmra.mxu0 %v298
    %v1586 = vpop.f32.mrf.mxu0
    %v1587 = vadd.f32 0.0, %v1586
    %v1588 = vpop.f32.mrf.mxu0
    %v1589 = vadd.f32 0.0, %v1588
    %1590 = vmatmul.bf16.gmra.mxu0 %v301
    %v1591 = vpop.f32.mrf.mxu0
    %v1592 = vadd.f32 0.0, %v1591
    %v1593 = vpop.f32.mrf.mxu0
    %v1594 = vadd.f32 0.0, %v1593
    %1595 = vmatmul.bf16.gmra.mxu0 %v304
    %v1596 = vpop.f32.mrf.mxu0
    %v1597 = vadd.f32 0.0, %v1596
    %v1598 = vpop.f32.mrf.mxu0
    %v1599 = vadd.f32 0.0, %v1598
    %1600 = vmatmul.bf16.gmra.mxu0 %v307
    %v1601 = vpop.f32.mrf.mxu0
    %v1602 = vadd.f32 0.0, %v1601
    %v1603 = vpop.f32.mrf.mxu0
    %v1604 = vadd.f32 0.0, %v1603
    %1605 = vmatmul.bf16.gmra.mxu0 %v310
    %v1606 = vpop.f32.mrf.mxu0
    %v1607 = vadd.f32 0.0, %v1606
    %v1608 = vpop.f32.mrf.mxu0
    %v1609 = vadd.f32 0.0, %v1608
    %1610 = vmatmul.bf16.gmra.mxu0 %v707
    %v1611 = vpop.f32.mrf.mxu0
    %v1612 = vadd.f32 0.0, %v1611
    %v1613 = vpop.f32.mrf.mxu0
    %v1614 = vadd.f32 0.0, %v1613
    %1615 = vmatmul.bf16.gmra.mxu0 %v1098
    %v1616 = vpop.f32.mrf.mxu0
    %v1617 = vadd.f32 0.0, %v1616
    %v1618 = vpop.f32.mrf.mxu0
    %v1619 = vadd.f32 0.0, %v1618
    %1620 = vmatmul.bf16.gmra.mxu0 %v1489
    %v1621 = vpop.f32.mrf.mxu0
    %v1622 = vadd.f32 0.0, %v1621
    %v1623 = vpop.f32.mrf.mxu0
    %v1624 = vadd.f32 0.0, %v1623
    %1625 = vdwg.mxu0
    %1626 = vmatpush.bf16.msra.mxu0 0
    %1627 = vmatpush.bf16.msra.mxu0 0
    %1628 = vmatpush.bf16.msra.mxu0 0
    %1629 = vmatpush.bf16.msra.mxu0 0
    %1630 = vmatpush.bf16.msra.mxu0 0
    %1631 = vmatpush.bf16.msra.mxu0 0
    %1632 = vmatpush.bf16.msra.mxu0 %v1495
    %1633 = vmatpush.bf16.msra.mxu0 %v1483
    %1634 = vmatmul.bf16.gmra.mxu0 %v250
    %v1635 = vpop.f32.mrf.mxu0
    %v1636 = vadd.f32 0.0, %v1635
    %v1637 = vpop.f32.mrf.mxu0
    %v1638 = vadd.f32 0.0, %v1637
    %1639 = vmatmul.bf16.gmra.mxu0 %v253
    %v1640 = vpop.f32.mrf.mxu0
    %v1641 = vadd.f32 0.0, %v1640
    %v1642 = vpop.f32.mrf.mxu0
    %v1643 = vadd.f32 0.0, %v1642
    %1644 = vmatmul.bf16.gmra.mxu0 %v256
    %v1645 = vpop.f32.mrf.mxu0
    %v1646 = vadd.f32 0.0, %v1645
    %v1647 = vpop.f32.mrf.mxu0
    %v1648 = vadd.f32 0.0, %v1647
    %1649 = vmatmul.bf16.gmra.mxu0 %v259
    %v1650 = vpop.f32.mrf.mxu0
    %v1651 = vadd.f32 0.0, %v1650
    %v1652 = vpop.f32.mrf.mxu0
    %v1653 = vadd.f32 0.0, %v1652
    %1654 = vmatmul.bf16.gmra.mxu0 %v262
    %v1655 = vpop.f32.mrf.mxu0
    %v1656 = vadd.f32 0.0, %v1655
    %v1657 = vpop.f32.mrf.mxu0
    %v1658 = vadd.f32 0.0, %v1657
    %1659 = vmatmul.bf16.gmra.mxu0 %v265
    %v1660 = vpop.f32.mrf.mxu0
    %v1661 = vadd.f32 0.0, %v1660
    %v1662 = vpop.f32.mrf.mxu0
    %v1663 = vadd.f32 0.0, %v1662
    %1664 = vmatmul.bf16.gmra.mxu0 %v268
    %v1665 = vpop.f32.mrf.mxu0
    %v1666 = vadd.f32 0.0, %v1665
    %v1667 = vpop.f32.mrf.mxu0
    %v1668 = vadd.f32 0.0, %v1667
    %1669 = vmatmul.bf16.gmra.mxu0 %v271
    %v1670 = vpop.f32.mrf.mxu0
    %v1671 = vadd.f32 0.0, %v1670
    %v1672 = vpop.f32.mrf.mxu0
    %v1673 = vadd.f32 0.0, %v1672
    %1674 = vmatmul.bf16.gmra.mxu0 %v274
    %v1675 = vpop.f32.mrf.mxu0
    %v1676 = vadd.f32 0.0, %v1675
    %v1677 = vpop.f32.mrf.mxu0
    %v1678 = vadd.f32 0.0, %v1677
    %1679 = vmatmul.bf16.gmra.mxu0 %v277
    %v1680 = vpop.f32.mrf.mxu0
    %v1681 = vadd.f32 0.0, %v1680
    %v1682 = vpop.f32.mrf.mxu0
    %v1683 = vadd.f32 0.0, %v1682
    %1684 = vmatmul.bf16.gmra.mxu0 %v280
    %v1685 = vpop.f32.mrf.mxu0
    %v1686 = vadd.f32 0.0, %v1685
    %v1687 = vpop.f32.mrf.mxu0
    %v1688 = vadd.f32 0.0, %v1687
    %1689 = vmatmul.bf16.gmra.mxu0 %v283
    %v1690 = vpop.f32.mrf.mxu0
    %v1691 = vadd.f32 0.0, %v1690
    %v1692 = vpop.f32.mrf.mxu0
    %v1693 = vadd.f32 0.0, %v1692
    %1694 = vmatmul.bf16.gmra.mxu0 %v286
    %v1695 = vpop.f32.mrf.mxu0
    %v1696 = vadd.f32 0.0, %v1695
    %v1697 = vpop.f32.mrf.mxu0
    %v1698 = vadd.f32 0.0, %v1697
    %1699 = vmatmul.bf16.gmra.mxu0 %v289
    %v1700 = vpop.f32.mrf.mxu0
    %v1701 = vadd.f32 0.0, %v1700
    %v1702 = vpop.f32.mrf.mxu0
    %v1703 = vadd.f32 0.0, %v1702
    %1704 = vmatmul.bf16.gmra.mxu0 %v292
    %v1705 = vpop.f32.mrf.mxu0
    %v1706 = vadd.f32 0.0, %v1705
    %v1707 = vpop.f32.mrf.mxu0
    %v1708 = vadd.f32 0.0, %v1707
    %1709 = vmatmul.bf16.gmra.mxu0 %v295
    %v1710 = vpop.f32.mrf.mxu0
    %v1711 = vadd.f32 0.0, %v1710
    %v1712 = vpop.f32.mrf.mxu0
    %v1713 = vadd.f32 0.0, %v1712
    %1714 = vmatmul.bf16.gmra.mxu0 %v298
    %v1715 = vpop.f32.mrf.mxu0
    %v1716 = vadd.f32 0.0, %v1715
    %v1717 = vpop.f32.mrf.mxu0
    %v1718 = vadd.f32 0.0, %v1717
    %1719 = vmatmul.bf16.gmra.mxu0 %v301
    %v1720 = vpop.f32.mrf.mxu0
    %v1721 = vadd.f32 0.0, %v1720
    %v1722 = vpop.f32.mrf.mxu0
    %v1723 = vadd.f32 0.0, %v1722
    %1724 = vmatmul.bf16.gmra.mxu0 %v304
    %v1725 = vpop.f32.mrf.mxu0
    %v1726 = vadd.f32 0.0, %v1725
    %v1727 = vpop.f32.mrf.mxu0
    %v1728 = vadd.f32 0.0, %v1727
    %1729 = vmatmul.bf16.gmra.mxu0 %v307
    %v1730 = vpop.f32.mrf.mxu0
    %v1731 = vadd.f32 0.0, %v1730
    %v1732 = vpop.f32.mrf.mxu0
    %v1733 = vadd.f32 0.0, %v1732
    %1734 = vmatmul.bf16.gmra.mxu0 %v310
    %v1735 = vpop.f32.mrf.mxu0
    %v1736 = vadd.f32 0.0, %v1735
    %v1737 = vpop.f32.mrf.mxu0
    %v1738 = vadd.f32 0.0, %v1737
    %1739 = vmatmul.bf16.gmra.mxu0 %v707
    %v1740 = vpop.f32.mrf.mxu0
    %v1741 = vadd.f32 0.0, %v1740
    %v1742 = vpop.f32.mrf.mxu0
    %v1743 = vadd.f32 0.0, %v1742
    %1744 = vmatmul.bf16.gmra.mxu0 %v1098
    %v1745 = vpop.f32.mrf.mxu0
    %v1746 = vadd.f32 0.0, %v1745
    %v1747 = vpop.f32.mrf.mxu0
    %v1748 = vadd.f32 0.0, %v1747
    %1749 = vmatmul.bf16.gmra.mxu0 %v1489
    %v1750 = vpop.f32.mrf.mxu0
    %v1751 = vadd.f32 0.0, %v1750
    %v1752 = vpop.f32.mrf.mxu0
    %v1753 = vadd.f32 0.0, %v1752
    %1754 = vdwg.mxu0
    %v1755 = vadd.f32 %v1364, %v1507
    %v1756 = vadd.f32 %v1365, %v1636
    %v1757 = vadd.f32 %v1366, %v1509
    %v1758 = vadd.f32 %v1367, %v1638
    %v1759 = vadd.f32 %v1368, %v1512
    %v1760 = vadd.f32 %v1369, %v1641
    %v1761 = vadd.f32 %v1370, %v1514
    %v1762 = vadd.f32 %v1371, %v1643
    %v1763 = vadd.f32 %v1372, %v1517
    %v1764 = vadd.f32 %v1373, %v1646
    %v1765 = vadd.f32 %v1374, %v1519
    %v1766 = vadd.f32 %v1375, %v1648
    %v1767 = vadd.f32 %v1376, %v1522
    %v1768 = vadd.f32 %v1377, %v1651
    %v1769 = vadd.f32 %v1378, %v1524
    %v1770 = vadd.f32 %v1379, %v1653
    %v1771 = vadd.f32 %v1380, %v1527
    %v1772 = vadd.f32 %v1381, %v1656
    %v1773 = vadd.f32 %v1382, %v1529
    %v1774 = vadd.f32 %v1383, %v1658
    %v1775 = vadd.f32 %v1384, %v1532
    %v1776 = vadd.f32 %v1385, %v1661
    %v1777 = vadd.f32 %v1386, %v1534
    %v1778 = vadd.f32 %v1387, %v1663
    %v1779 = vadd.f32 %v1388, %v1537
    %v1780 = vadd.f32 %v1389, %v1666
    %v1781 = vadd.f32 %v1390, %v1539
    %v1782 = vadd.f32 %v1391, %v1668
    %v1783 = vadd.f32 %v1392, %v1542
    %v1784 = vadd.f32 %v1393, %v1671
    %v1785 = vadd.f32 %v1394, %v1544
    %v1786 = vadd.f32 %v1395, %v1673
    %v1787 = vadd.f32 %v1396, %v1547
    %v1788 = vadd.f32 %v1397, %v1676
    %v1789 = vadd.f32 %v1398, %v1549
    %v1790 = vadd.f32 %v1399, %v1678
    %v1791 = vadd.f32 %v1400, %v1552
    %v1792 = vadd.f32 %v1401, %v1681
    %v1793 = vadd.f32 %v1402, %v1554
    %v1794 = vadd.f32 %v1403, %v1683
    %v1795 = vadd.f32 %v1404, %v1557
    %v1796 = vadd.f32 %v1405, %v1686
    %v1797 = vadd.f32 %v1406, %v1559
    %v1798 = vadd.f32 %v1407, %v1688
    %v1799 = vadd.f32 %v1408, %v1562
    %v1800 = vadd.f32 %v1409, %v1691
    %v1801 = vadd.f32 %v1410, %v1564
    %v1802 = vadd.f32 %v1411, %v1693
    %v1803 = vadd.f32 %v1412, %v1567
    %v1804 = vadd.f32 %v1413, %v1696
    %v1805 = vadd.f32 %v1414, %v1569
    %v1806 = vadd.f32 %v1415, %v1698
    %v1807 = vadd.f32 %v1416, %v1572
    %v1808 = vadd.f32 %v1417, %v1701
    %v1809 = vadd.f32 %v1418, %v1574
    %v1810 = vadd.f32 %v1419, %v1703
    %v1811 = vadd.f32 %v1420, %v1577
    %v1812 = vadd.f32 %v1421, %v1706
    %v1813 = vadd.f32 %v1422, %v1579
    %v1814 = vadd.f32 %v1423, %v1708
    %v1815 = vadd.f32 %v1424, %v1582
    %v1816 = vadd.f32 %v1425, %v1711
    %v1817 = vadd.f32 %v1426, %v1584
    %v1818 = vadd.f32 %v1427, %v1713
    %v1819 = vadd.f32 %v1428, %v1587
    %v1820 = vadd.f32 %v1429, %v1716
    %v1821 = vadd.f32 %v1430, %v1589
    %v1822 = vadd.f32 %v1431, %v1718
    %v1823 = vadd.f32 %v1432, %v1592
    %v1824 = vadd.f32 %v1433, %v1721
    %v1825 = vadd.f32 %v1434, %v1594
    %v1826 = vadd.f32 %v1435, %v1723
    %v1827 = vadd.f32 %v1436, %v1597
    %v1828 = vadd.f32 %v1437, %v1726
    %v1829 = vadd.f32 %v1438, %v1599
    %v1830 = vadd.f32 %v1439, %v1728
    %v1831 = vadd.f32 %v1440, %v1602
    %v1832 = vadd.f32 %v1441, %v1731
    %v1833 = vadd.f32 %v1442, %v1604
    %v1834 = vadd.f32 %v1443, %v1733
    %v1835 = vadd.f32 %v1444, %v1607
    %v1836 = vadd.f32 %v1445, %v1736
    %v1837 = vadd.f32 %v1446, %v1609
    %v1838 = vadd.f32 %v1447, %v1738
    %v1839 = vadd.f32 %v1448, %v1612
    %v1840 = vadd.f32 %v1449, %v1741
    %v1841 = vadd.f32 %v1450, %v1614
    %v1842 = vadd.f32 %v1451, %v1743
    %v1843 = vadd.f32 %v1452, %v1617
    %v1844 = vadd.f32 %v1453, %v1746
    %v1845 = vadd.f32 %v1454, %v1619
    %v1846 = vadd.f32 %v1455, %v1748
    %v1847 = vadd.f32 %v1456, %v1622
    %v1848 = vadd.f32 %v1457, %v1751
    %v1849 = vadd.f32 %v1458, %v1624
    %v1850 = vadd.f32 %v1459, %v1753
    %s1851 = scalar_lea.vmem %s1, 128
    %v1852 = vld [vmem:[%s1851] sm:$0xff]
    %v1853 = vld [vmem:[%s1851 + $0x8] sm:$0xff]
    %v1854 = vld [vmem:[%s1851 + $0x10] sm:$0xff]
    %v1855 = vld [vmem:[%s1851 + $0x18] sm:$0x33]
    %v1858 = vunpack.c.l.b16 %v94
    %v1859 = vunpack.c.l.b16 %v95
    %v1860 = vpack.c.b16 %v1859, %v1858
    %v1865 = vunpack.c.l.b16 %v1852
    %v1866 = vunpack.c.h.b16 %v1852
    %v1867 = vunpack.c.l.b16 %v1853
    %v1868 = vunpack.c.h.b16 %v1853
    %v1869 = vunpack.c.l.b16 %v1854
    %v1870 = vunpack.c.h.b16 %v1854
    %v1871 = vunpack.c.l.b16 %v1855
    %v1872 = vunpack.c.h.b16 %v1855
    %v1873 = vpack.c.b16 %v1867, %v1865
    %v1874 = vpack.c.b16 %v1868, %v1866
    %v1875 = vpack.c.b16 %v1871, %v1869
    %v1876 = vpack.c.b16 %v1872, %v1870
    %v1880 = vsel %vm239, %v1860, 0
    %v1883 = vsel %vm312, %v1875, 0
    %v1886 = vsel %vm312, %v1876, 0
    %1888 = vmatpush.bf16.msra.mxu0 0
    %1889 = vmatpush.bf16.msra.mxu0 0
    %1890 = vmatpush.bf16.msra.mxu0 0
    %1891 = vmatpush.bf16.msra.mxu0 0
    %1892 = vmatpush.bf16.msra.mxu0 0
    %1893 = vmatpush.bf16.msra.mxu0 0
    %1894 = vmatpush.bf16.msra.mxu0 %v1883
    %1895 = vmatpush.bf16.msra.mxu0 %v1873
    %1896 = vmatmul.bf16.gmra.mxu0 %v253
    %v1897 = vpop.f32.mrf.mxu0
    %v1898 = vadd.f32 0.0, %v1897
    %v1899 = vpop.f32.mrf.mxu0
    %v1900 = vadd.f32 0.0, %v1899
    %1901 = vmatmul.bf16.gmra.mxu0 %v256
    %v1902 = vpop.f32.mrf.mxu0
    %v1903 = vadd.f32 0.0, %v1902
    %v1904 = vpop.f32.mrf.mxu0
    %v1905 = vadd.f32 0.0, %v1904
    %1906 = vmatmul.bf16.gmra.mxu0 %v259
    %v1907 = vpop.f32.mrf.mxu0
    %v1908 = vadd.f32 0.0, %v1907
    %v1909 = vpop.f32.mrf.mxu0
    %v1910 = vadd.f32 0.0, %v1909
    %1911 = vmatmul.bf16.gmra.mxu0 %v262
    %v1912 = vpop.f32.mrf.mxu0
    %v1913 = vadd.f32 0.0, %v1912
    %v1914 = vpop.f32.mrf.mxu0
    %v1915 = vadd.f32 0.0, %v1914
    %1916 = vmatmul.bf16.gmra.mxu0 %v265
    %v1917 = vpop.f32.mrf.mxu0
    %v1918 = vadd.f32 0.0, %v1917
    %v1919 = vpop.f32.mrf.mxu0
    %v1920 = vadd.f32 0.0, %v1919
    %1921 = vmatmul.bf16.gmra.mxu0 %v268
    %v1922 = vpop.f32.mrf.mxu0
    %v1923 = vadd.f32 0.0, %v1922
    %v1924 = vpop.f32.mrf.mxu0
    %v1925 = vadd.f32 0.0, %v1924
    %1926 = vmatmul.bf16.gmra.mxu0 %v271
    %v1927 = vpop.f32.mrf.mxu0
    %v1928 = vadd.f32 0.0, %v1927
    %v1929 = vpop.f32.mrf.mxu0
    %v1930 = vadd.f32 0.0, %v1929
    %1931 = vmatmul.bf16.gmra.mxu0 %v274
    %v1932 = vpop.f32.mrf.mxu0
    %v1933 = vadd.f32 0.0, %v1932
    %v1934 = vpop.f32.mrf.mxu0
    %v1935 = vadd.f32 0.0, %v1934
    %1936 = vmatmul.bf16.gmra.mxu0 %v277
    %v1937 = vpop.f32.mrf.mxu0
    %v1938 = vadd.f32 0.0, %v1937
    %v1939 = vpop.f32.mrf.mxu0
    %v1940 = vadd.f32 0.0, %v1939
    %1941 = vmatmul.bf16.gmra.mxu0 %v280
    %v1942 = vpop.f32.mrf.mxu0
    %v1943 = vadd.f32 0.0, %v1942
    %v1944 = vpop.f32.mrf.mxu0
    %v1945 = vadd.f32 0.0, %v1944
    %1946 = vmatmul.bf16.gmra.mxu0 %v283
    %v1947 = vpop.f32.mrf.mxu0
    %v1948 = vadd.f32 0.0, %v1947
    %v1949 = vpop.f32.mrf.mxu0
    %v1950 = vadd.f32 0.0, %v1949
    %1951 = vmatmul.bf16.gmra.mxu0 %v286
    %v1952 = vpop.f32.mrf.mxu0
    %v1953 = vadd.f32 0.0, %v1952
    %v1954 = vpop.f32.mrf.mxu0
    %v1955 = vadd.f32 0.0, %v1954
    %1956 = vmatmul.bf16.gmra.mxu0 %v289
    %v1957 = vpop.f32.mrf.mxu0
    %v1958 = vadd.f32 0.0, %v1957
    %v1959 = vpop.f32.mrf.mxu0
    %v1960 = vadd.f32 0.0, %v1959
    %1961 = vmatmul.bf16.gmra.mxu0 %v292
    %v1962 = vpop.f32.mrf.mxu0
    %v1963 = vadd.f32 0.0, %v1962
    %v1964 = vpop.f32.mrf.mxu0
    %v1965 = vadd.f32 0.0, %v1964
    %1966 = vmatmul.bf16.gmra.mxu0 %v295
    %v1967 = vpop.f32.mrf.mxu0
    %v1968 = vadd.f32 0.0, %v1967
    %v1969 = vpop.f32.mrf.mxu0
    %v1970 = vadd.f32 0.0, %v1969
    %1971 = vmatmul.bf16.gmra.mxu0 %v298
    %v1972 = vpop.f32.mrf.mxu0
    %v1973 = vadd.f32 0.0, %v1972
    %v1974 = vpop.f32.mrf.mxu0
    %v1975 = vadd.f32 0.0, %v1974
    %1976 = vmatmul.bf16.gmra.mxu0 %v301
    %v1977 = vpop.f32.mrf.mxu0
    %v1978 = vadd.f32 0.0, %v1977
    %v1979 = vpop.f32.mrf.mxu0
    %v1980 = vadd.f32 0.0, %v1979
    %1981 = vmatmul.bf16.gmra.mxu0 %v304
    %v1982 = vpop.f32.mrf.mxu0
    %v1983 = vadd.f32 0.0, %v1982
    %v1984 = vpop.f32.mrf.mxu0
    %v1985 = vadd.f32 0.0, %v1984
    %1986 = vmatmul.bf16.gmra.mxu0 %v307
    %v1987 = vpop.f32.mrf.mxu0
    %v1988 = vadd.f32 0.0, %v1987
    %v1989 = vpop.f32.mrf.mxu0
    %v1990 = vadd.f32 0.0, %v1989
    %1991 = vmatmul.bf16.gmra.mxu0 %v310
    %v1992 = vpop.f32.mrf.mxu0
    %v1993 = vadd.f32 0.0, %v1992
    %v1994 = vpop.f32.mrf.mxu0
    %v1995 = vadd.f32 0.0, %v1994
    %1996 = vmatmul.bf16.gmra.mxu0 %v707
    %v1997 = vpop.f32.mrf.mxu0
    %v1998 = vadd.f32 0.0, %v1997
    %v1999 = vpop.f32.mrf.mxu0
    %v2000 = vadd.f32 0.0, %v1999
    %2001 = vmatmul.bf16.gmra.mxu0 %v1098
    %v2002 = vpop.f32.mrf.mxu0
    %v2003 = vadd.f32 0.0, %v2002
    %v2004 = vpop.f32.mrf.mxu0
    %v2005 = vadd.f32 0.0, %v2004
    %2006 = vmatmul.bf16.gmra.mxu0 %v1489
    %v2007 = vpop.f32.mrf.mxu0
    %v2008 = vadd.f32 0.0, %v2007
    %v2009 = vpop.f32.mrf.mxu0
    %v2010 = vadd.f32 0.0, %v2009
    %2011 = vmatmul.bf16.gmra.mxu0 %v1880
    %v2012 = vpop.f32.mrf.mxu0
    %v2013 = vadd.f32 0.0, %v2012
    %v2014 = vpop.f32.mrf.mxu0
    %v2015 = vadd.f32 0.0, %v2014
    %2016 = vdwg.mxu0
    %2017 = vmatpush.bf16.msra.mxu0 0
    %2018 = vmatpush.bf16.msra.mxu0 0
    %2019 = vmatpush.bf16.msra.mxu0 0
    %2020 = vmatpush.bf16.msra.mxu0 0
    %2021 = vmatpush.bf16.msra.mxu0 0
    %2022 = vmatpush.bf16.msra.mxu0 0
    %2023 = vmatpush.bf16.msra.mxu0 %v1886
    %2024 = vmatpush.bf16.msra.mxu0 %v1874
    %2025 = vmatmul.bf16.gmra.mxu0 %v253
    %v2026 = vpop.f32.mrf.mxu0
    %v2027 = vadd.f32 0.0, %v2026
    %v2028 = vpop.f32.mrf.mxu0
    %v2029 = vadd.f32 0.0, %v2028
    %2030 = vmatmul.bf16.gmra.mxu0 %v256
    %v2031 = vpop.f32.mrf.mxu0
    %v2032 = vadd.f32 0.0, %v2031
    %v2033 = vpop.f32.mrf.mxu0
    %v2034 = vadd.f32 0.0, %v2033
    %2035 = vmatmul.bf16.gmra.mxu0 %v259
    %v2036 = vpop.f32.mrf.mxu0
    %v2037 = vadd.f32 0.0, %v2036
    %v2038 = vpop.f32.mrf.mxu0
    %v2039 = vadd.f32 0.0, %v2038
    %2040 = vmatmul.bf16.gmra.mxu0 %v262
    %v2041 = vpop.f32.mrf.mxu0
    %v2042 = vadd.f32 0.0, %v2041
    %v2043 = vpop.f32.mrf.mxu0
    %v2044 = vadd.f32 0.0, %v2043
    %2045 = vmatmul.bf16.gmra.mxu0 %v265
    %v2046 = vpop.f32.mrf.mxu0
    %v2047 = vadd.f32 0.0, %v2046
    %v2048 = vpop.f32.mrf.mxu0
    %v2049 = vadd.f32 0.0, %v2048
    %2050 = vmatmul.bf16.gmra.mxu0 %v268
    %v2051 = vpop.f32.mrf.mxu0
    %v2052 = vadd.f32 0.0, %v2051
    %v2053 = vpop.f32.mrf.mxu0
    %v2054 = vadd.f32 0.0, %v2053
    %2055 = vmatmul.bf16.gmra.mxu0 %v271
    %v2056 = vpop.f32.mrf.mxu0
    %v2057 = vadd.f32 0.0, %v2056
    %v2058 = vpop.f32.mrf.mxu0
    %v2059 = vadd.f32 0.0, %v2058
    %2060 = vmatmul.bf16.gmra.mxu0 %v274
    %v2061 = vpop.f32.mrf.mxu0
    %v2062 = vadd.f32 0.0, %v2061
    %v2063 = vpop.f32.mrf.mxu0
    %v2064 = vadd.f32 0.0, %v2063
    %2065 = vmatmul.bf16.gmra.mxu0 %v277
    %v2066 = vpop.f32.mrf.mxu0
    %v2067 = vadd.f32 0.0, %v2066
    %v2068 = vpop.f32.mrf.mxu0
    %v2069 = vadd.f32 0.0, %v2068
    %2070 = vmatmul.bf16.gmra.mxu0 %v280
    %v2071 = vpop.f32.mrf.mxu0
    %v2072 = vadd.f32 0.0, %v2071
    %v2073 = vpop.f32.mrf.mxu0
    %v2074 = vadd.f32 0.0, %v2073
    %2075 = vmatmul.bf16.gmra.mxu0 %v283
    %v2076 = vpop.f32.mrf.mxu0
    %v2077 = vadd.f32 0.0, %v2076
    %v2078 = vpop.f32.mrf.mxu0
    %v2079 = vadd.f32 0.0, %v2078
    %2080 = vmatmul.bf16.gmra.mxu0 %v286
    %v2081 = vpop.f32.mrf.mxu0
    %v2082 = vadd.f32 0.0, %v2081
    %v2083 = vpop.f32.mrf.mxu0
    %v2084 = vadd.f32 0.0, %v2083
    %2085 = vmatmul.bf16.gmra.mxu0 %v289
    %v2086 = vpop.f32.mrf.mxu0
    %v2087 = vadd.f32 0.0, %v2086
    %v2088 = vpop.f32.mrf.mxu0
    %v2089 = vadd.f32 0.0, %v2088
    %2090 = vmatmul.bf16.gmra.mxu0 %v292
    %v2091 = vpop.f32.mrf.mxu0
    %v2092 = vadd.f32 0.0, %v2091
    %v2093 = vpop.f32.mrf.mxu0
    %v2094 = vadd.f32 0.0, %v2093
    %2095 = vmatmul.bf16.gmra.mxu0 %v295
    %v2096 = vpop.f32.mrf.mxu0
    %v2097 = vadd.f32 0.0, %v2096
    %v2098 = vpop.f32.mrf.mxu0
    %v2099 = vadd.f32 0.0, %v2098
    %2100 = vmatmul.bf16.gmra.mxu0 %v298
    %v2101 = vpop.f32.mrf.mxu0
    %v2102 = vadd.f32 0.0, %v2101
    %v2103 = vpop.f32.mrf.mxu0
    %v2104 = vadd.f32 0.0, %v2103
    %2105 = vmatmul.bf16.gmra.mxu0 %v301
    %v2106 = vpop.f32.mrf.mxu0
    %v2107 = vadd.f32 0.0, %v2106
    %v2108 = vpop.f32.mrf.mxu0
    %v2109 = vadd.f32 0.0, %v2108
    %2110 = vmatmul.bf16.gmra.mxu0 %v304
    %v2111 = vpop.f32.mrf.mxu0
    %v2112 = vadd.f32 0.0, %v2111
    %v2113 = vpop.f32.mrf.mxu0
    %v2114 = vadd.f32 0.0, %v2113
    %2115 = vmatmul.bf16.gmra.mxu0 %v307
    %v2116 = vpop.f32.mrf.mxu0
    %v2117 = vadd.f32 0.0, %v2116
    %v2118 = vpop.f32.mrf.mxu0
    %v2119 = vadd.f32 0.0, %v2118
    %2120 = vmatmul.bf16.gmra.mxu0 %v310
    %v2121 = vpop.f32.mrf.mxu0
    %v2122 = vadd.f32 0.0, %v2121
    %v2123 = vpop.f32.mrf.mxu0
    %v2124 = vadd.f32 0.0, %v2123
    %2125 = vmatmul.bf16.gmra.mxu0 %v707
    %v2126 = vpop.f32.mrf.mxu0
    %v2127 = vadd.f32 0.0, %v2126
    %v2128 = vpop.f32.mrf.mxu0
    %v2129 = vadd.f32 0.0, %v2128
    %2130 = vmatmul.bf16.gmra.mxu0 %v1098
    %v2131 = vpop.f32.mrf.mxu0
    %v2132 = vadd.f32 0.0, %v2131
    %v2133 = vpop.f32.mrf.mxu0
    %v2134 = vadd.f32 0.0, %v2133
    %2135 = vmatmul.bf16.gmra.mxu0 %v1489
    %v2136 = vpop.f32.mrf.mxu0
    %v2137 = vadd.f32 0.0, %v2136
    %v2138 = vpop.f32.mrf.mxu0
    %v2139 = vadd.f32 0.0, %v2138
    %2140 = vmatmul.bf16.gmra.mxu0 %v1880
    %v2141 = vpop.f32.mrf.mxu0
    %v2142 = vadd.f32 0.0, %v2141
    %v2143 = vpop.f32.mrf.mxu0
    %v2144 = vadd.f32 0.0, %v2143
    %2145 = vdwg.mxu0
    %v2146 = vadd.f32 %v1755, %v1898
    %v2147 = vadd.f32 %v1756, %v2027
    %v2148 = vadd.f32 %v1757, %v1900
    %v2149 = vadd.f32 %v1758, %v2029
    %v2150 = vadd.f32 %v1759, %v1903
    %v2151 = vadd.f32 %v1760, %v2032
    %v2152 = vadd.f32 %v1761, %v1905
    %v2153 = vadd.f32 %v1762, %v2034
    %v2154 = vadd.f32 %v1763, %v1908
    %v2155 = vadd.f32 %v1764, %v2037
    %v2156 = vadd.f32 %v1765, %v1910
    %v2157 = vadd.f32 %v1766, %v2039
    %v2158 = vadd.f32 %v1767, %v1913
    %v2159 = vadd.f32 %v1768, %v2042
    %v2160 = vadd.f32 %v1769, %v1915
    %v2161 = vadd.f32 %v1770, %v2044
    %v2162 = vadd.f32 %v1771, %v1918
    %v2163 = vadd.f32 %v1772, %v2047
    %v2164 = vadd.f32 %v1773, %v1920
    %v2165 = vadd.f32 %v1774, %v2049
    %v2166 = vadd.f32 %v1775, %v1923
    %v2167 = vadd.f32 %v1776, %v2052
    %v2168 = vadd.f32 %v1777, %v1925
    %v2169 = vadd.f32 %v1778, %v2054
    %v2170 = vadd.f32 %v1779, %v1928
    %v2171 = vadd.f32 %v1780, %v2057
    %v2172 = vadd.f32 %v1781, %v1930
    %v2173 = vadd.f32 %v1782, %v2059
    %v2174 = vadd.f32 %v1783, %v1933
    %v2175 = vadd.f32 %v1784, %v2062
    %v2176 = vadd.f32 %v1785, %v1935
    %v2177 = vadd.f32 %v1786, %v2064
    %v2178 = vadd.f32 %v1787, %v1938
    %v2179 = vadd.f32 %v1788, %v2067
    %v2180 = vadd.f32 %v1789, %v1940
    %v2181 = vadd.f32 %v1790, %v2069
    %v2182 = vadd.f32 %v1791, %v1943
    %v2183 = vadd.f32 %v1792, %v2072
    %v2184 = vadd.f32 %v1793, %v1945
    %v2185 = vadd.f32 %v1794, %v2074
    %v2186 = vadd.f32 %v1795, %v1948
    %v2187 = vadd.f32 %v1796, %v2077
    %v2188 = vadd.f32 %v1797, %v1950
    %v2189 = vadd.f32 %v1798, %v2079
    %v2190 = vadd.f32 %v1799, %v1953
    %v2191 = vadd.f32 %v1800, %v2082
    %v2192 = vadd.f32 %v1801, %v1955
    %v2193 = vadd.f32 %v1802, %v2084
    %v2194 = vadd.f32 %v1803, %v1958
    %v2195 = vadd.f32 %v1804, %v2087
    %v2196 = vadd.f32 %v1805, %v1960
    %v2197 = vadd.f32 %v1806, %v2089
    %v2198 = vadd.f32 %v1807, %v1963
    %v2199 = vadd.f32 %v1808, %v2092
    %v2200 = vadd.f32 %v1809, %v1965
    %v2201 = vadd.f32 %v1810, %v2094
    %v2202 = vadd.f32 %v1811, %v1968
    %v2203 = vadd.f32 %v1812, %v2097
    %v2204 = vadd.f32 %v1813, %v1970
    %v2205 = vadd.f32 %v1814, %v2099
    %v2206 = vadd.f32 %v1815, %v1973
    %v2207 = vadd.f32 %v1816, %v2102
    %v2208 = vadd.f32 %v1817, %v1975
    %v2209 = vadd.f32 %v1818, %v2104
    %v2210 = vadd.f32 %v1819, %v1978
    %v2211 = vadd.f32 %v1820, %v2107
    %v2212 = vadd.f32 %v1821, %v1980
    %v2213 = vadd.f32 %v1822, %v2109
    %v2214 = vadd.f32 %v1823, %v1983
    %v2215 = vadd.f32 %v1824, %v2112
    %v2216 = vadd.f32 %v1825, %v1985
    %v2217 = vadd.f32 %v1826, %v2114
    %v2218 = vadd.f32 %v1827, %v1988
    %v2219 = vadd.f32 %v1828, %v2117
    %v2220 = vadd.f32 %v1829, %v1990
    %v2221 = vadd.f32 %v1830, %v2119
    %v2222 = vadd.f32 %v1831, %v1993
    %v2223 = vadd.f32 %v1832, %v2122
    %v2224 = vadd.f32 %v1833, %v1995
    %v2225 = vadd.f32 %v1834, %v2124
    %v2226 = vadd.f32 %v1835, %v1998
    %v2227 = vadd.f32 %v1836, %v2127
    %v2228 = vadd.f32 %v1837, %v2000
    %v2229 = vadd.f32 %v1838, %v2129
    %v2230 = vadd.f32 %v1839, %v2003
    %v2231 = vadd.f32 %v1840, %v2132
    %v2232 = vadd.f32 %v1841, %v2005
    %v2233 = vadd.f32 %v1842, %v2134
    %v2234 = vadd.f32 %v1843, %v2008
    %v2235 = vadd.f32 %v1844, %v2137
    %v2236 = vadd.f32 %v1845, %v2010
    %v2237 = vadd.f32 %v1846, %v2139
    %v2238 = vadd.f32 %v1847, %v2013
    %v2239 = vadd.f32 %v1848, %v2142
    %v2240 = vadd.f32 %v1849, %v2015
    %v2241 = vadd.f32 %v1850, %v2144
    %v2242 = vmax.f32 %v2146, %v2150
    %v2243 = vmax.f32 %v2147, %v2151
    %v2244 = vmax.f32 %v2148, %v2152
    %v2245 = vmax.f32 %v2149, %v2153
    %v2246 = vmax.f32 %v2154, %v2158
    %v2247 = vmax.f32 %v2155, %v2159
    %v2248 = vmax.f32 %v2156, %v2160
    %v2249 = vmax.f32 %v2157, %v2161
    %v2250 = vmax.f32 %v2162, %v2166
    %v2251 = vmax.f32 %v2163, %v2167
    %v2252 = vmax.f32 %v2164, %v2168
    %v2253 = vmax.f32 %v2165, %v2169
    %v2254 = vmax.f32 %v2170, %v2174
    %v2255 = vmax.f32 %v2171, %v2175
    %v2256 = vmax.f32 %v2172, %v2176
    %v2257 = vmax.f32 %v2173, %v2177
    %v2258 = vmax.f32 %v2178, %v2182
    %v2259 = vmax.f32 %v2179, %v2183
    %v2260 = vmax.f32 %v2180, %v2184
    %v2261 = vmax.f32 %v2181, %v2185
    %v2262 = vmax.f32 %v2186, %v2190
    %v2263 = vmax.f32 %v2187, %v2191
    %v2264 = vmax.f32 %v2188, %v2192
    %v2265 = vmax.f32 %v2189, %v2193
    %v2266 = vmax.f32 %v2194, %v2198
    %v2267 = vmax.f32 %v2195, %v2199
    %v2268 = vmax.f32 %v2196, %v2200
    %v2269 = vmax.f32 %v2197, %v2201
    %v2270 = vmax.f32 %v2202, %v2206
    %v2271 = vmax.f32 %v2203, %v2207
    %v2272 = vmax.f32 %v2204, %v2208
    %v2273 = vmax.f32 %v2205, %v2209
    %v2274 = vmax.f32 %v2210, %v2214
    %v2275 = vmax.f32 %v2211, %v2215
    %v2276 = vmax.f32 %v2212, %v2216
    %v2277 = vmax.f32 %v2213, %v2217
    %v2278 = vmax.f32 %v2218, %v2222
    %v2279 = vmax.f32 %v2219, %v2223
    %v2280 = vmax.f32 %v2220, %v2224
    %v2281 = vmax.f32 %v2221, %v2225
    %v2282 = vmax.f32 %v2226, %v2230
    %v2283 = vmax.f32 %v2227, %v2231
    %v2284 = vmax.f32 %v2228, %v2232
    %v2285 = vmax.f32 %v2229, %v2233
    %v2286 = vmax.f32 %v2234, %v2238
    %v2287 = vmax.f32 %v2235, %v2239
    %v2288 = vmax.f32 %v2236, %v2240
    %v2289 = vmax.f32 %v2237, %v2241
    %vm2290 = vcmask 1048448
    %2291 = vrot.lane.b32.xlu0 %v2242, 112
    %v2292 = vpop.permute.xlu0 %2291
    %2293 = vrot.lane.b32.xlu0 %v2244, 112
    %v2294 = vpop.permute.xlu0 %2293
    %2295 = vrot.lane.b32.xlu0 %v2246, 112
    %v2296 = vpop.permute.xlu0 %2295
    %2297 = vrot.lane.b32.xlu0 %v2248, 112
    %v2298 = vpop.permute.xlu0 %2297
    %2299 = vrot.lane.b32.xlu0 %v2250, 112
    %v2300 = vpop.permute.xlu0 %2299
    %2301 = vrot.lane.b32.xlu0 %v2252, 112
    %v2302 = vpop.permute.xlu0 %2301
    %2303 = vrot.lane.b32.xlu0 %v2254, 112
    %v2304 = vpop.permute.xlu0 %2303
    %2305 = vrot.lane.b32.xlu0 %v2256, 112
    %v2306 = vpop.permute.xlu0 %2305
    %2307 = vrot.lane.b32.xlu0 %v2258, 112
    %v2308 = vpop.permute.xlu0 %2307
    %2309 = vrot.lane.b32.xlu0 %v2260, 112
    %v2310 = vpop.permute.xlu0 %2309
    %2311 = vrot.lane.b32.xlu0 %v2262, 112
    %v2312 = vpop.permute.xlu0 %2311
    %2313 = vrot.lane.b32.xlu0 %v2264, 112
    %v2314 = vpop.permute.xlu0 %2313
    %2315 = vrot.lane.b32.xlu0 %v2266, 112
    %v2316 = vpop.permute.xlu0 %2315
    %2317 = vrot.lane.b32.xlu0 %v2268, 112
    %v2318 = vpop.permute.xlu0 %2317
    %2319 = vrot.lane.b32.xlu0 %v2270, 112
    %v2320 = vpop.permute.xlu0 %2319
    %2321 = vrot.lane.b32.xlu0 %v2272, 112
    %v2322 = vpop.permute.xlu0 %2321
    %2323 = vrot.lane.b32.xlu0 %v2274, 112
    %v2324 = vpop.permute.xlu0 %2323
    %2325 = vrot.lane.b32.xlu0 %v2276, 112
    %v2326 = vpop.permute.xlu0 %2325
    %2327 = vrot.lane.b32.xlu0 %v2278, 112
    %v2328 = vpop.permute.xlu0 %2327
    %2329 = vrot.lane.b32.xlu0 %v2280, 112
    %v2330 = vpop.permute.xlu0 %2329
    %2331 = vrot.lane.b32.xlu0 %v2282, 112
    %v2332 = vpop.permute.xlu0 %2331
    %2333 = vrot.lane.b32.xlu0 %v2284, 112
    %v2334 = vpop.permute.xlu0 %2333
    %2335 = vrot.lane.b32.xlu0 %v2286, 112
    %v2336 = vpop.permute.xlu0 %2335
    %2337 = vrot.lane.b32.xlu0 %v2288, 112
    %v2338 = vpop.permute.xlu0 %2337
    %v2339 = vsel %vm2290, %v2292, %v2243
    %v2340 = vsel %vm2290, %v2294, %v2245
    %v2341 = vsel %vm2290, %v2296, %v2247
    %v2342 = vsel %vm2290, %v2298, %v2249
    %v2343 = vsel %vm2290, %v2300, %v2251
    %v2344 = vsel %vm2290, %v2302, %v2253
    %v2345 = vsel %vm2290, %v2304, %v2255
    %v2346 = vsel %vm2290, %v2306, %v2257
    %v2347 = vsel %vm2290, %v2308, %v2259
    %v2348 = vsel %vm2290, %v2310, %v2261
    %v2349 = vsel %vm2290, %v2312, %v2263
    %v2350 = vsel %vm2290, %v2314, %v2265
    %v2351 = vsel %vm2290, %v2316, %v2267
    %v2352 = vsel %vm2290, %v2318, %v2269
    %v2353 = vsel %vm2290, %v2320, %v2271
    %v2354 = vsel %vm2290, %v2322, %v2273
    %v2355 = vsel %vm2290, %v2324, %v2275
    %v2356 = vsel %vm2290, %v2326, %v2277
    %v2357 = vsel %vm2290, %v2328, %v2279
    %v2358 = vsel %vm2290, %v2330, %v2281
    %v2359 = vsel %vm2290, %v2332, %v2283
    %v2360 = vsel %vm2290, %v2334, %v2285
    %v2361 = vsel %vm2290, %v2336, %v2287
    %v2362 = vsel %vm2290, %v2338, %v2289
    %2411 = vrot.lane.b32.xlu0 %v2242, 127
    %v2412 = vpop.permute.xlu0 %2411
    %2413 = vrot.lane.b32.xlu0 %v2339, 127
    %v2414 = vpop.permute.xlu0 %2413
    %2415 = vrot.lane.b32.xlu0 %v2244, 127
    %v2416 = vpop.permute.xlu0 %2415
    %2417 = vrot.lane.b32.xlu0 %v2340, 127
    %v2418 = vpop.permute.xlu0 %2417
    %2419 = vrot.lane.b32.xlu0 %v2246, 127
    %v2420 = vpop.permute.xlu0 %2419
    %2421 = vrot.lane.b32.xlu0 %v2341, 127
    %v2422 = vpop.permute.xlu0 %2421
    %2423 = vrot.lane.b32.xlu0 %v2248, 127
    %v2424 = vpop.permute.xlu0 %2423
    %2425 = vrot.lane.b32.xlu0 %v2342, 127
    %v2426 = vpop.permute.xlu0 %2425
    %2427 = vrot.lane.b32.xlu0 %v2250, 127
    %v2428 = vpop.permute.xlu0 %2427
    %2429 = vrot.lane.b32.xlu0 %v2343, 127
    %v2430 = vpop.permute.xlu0 %2429
    %2431 = vrot.lane.b32.xlu0 %v2252, 127
    %v2432 = vpop.permute.xlu0 %2431
    %2433 = vrot.lane.b32.xlu0 %v2344, 127
    %v2434 = vpop.permute.xlu0 %2433
    %2435 = vrot.lane.b32.xlu0 %v2254, 127
    %v2436 = vpop.permute.xlu0 %2435
    %2437 = vrot.lane.b32.xlu0 %v2345, 127
    %v2438 = vpop.permute.xlu0 %2437
    %2439 = vrot.lane.b32.xlu0 %v2256, 127
    %v2440 = vpop.permute.xlu0 %2439
    %2441 = vrot.lane.b32.xlu0 %v2346, 127
    %v2442 = vpop.permute.xlu0 %2441
    %2443 = vrot.lane.b32.xlu0 %v2258, 127
    %v2444 = vpop.permute.xlu0 %2443
    %2445 = vrot.lane.b32.xlu0 %v2347, 127
    %v2446 = vpop.permute.xlu0 %2445
    %2447 = vrot.lane.b32.xlu0 %v2260, 127
    %v2448 = vpop.permute.xlu0 %2447
    %2449 = vrot.lane.b32.xlu0 %v2348, 127
    %v2450 = vpop.permute.xlu0 %2449
    %2451 = vrot.lane.b32.xlu0 %v2262, 127
    %v2452 = vpop.permute.xlu0 %2451
    %2453 = vrot.lane.b32.xlu0 %v2349, 127
    %v2454 = vpop.permute.xlu0 %2453
    %2455 = vrot.lane.b32.xlu0 %v2264, 127
    %v2456 = vpop.permute.xlu0 %2455
    %2457 = vrot.lane.b32.xlu0 %v2350, 127
    %v2458 = vpop.permute.xlu0 %2457
    %2459 = vrot.lane.b32.xlu0 %v2266, 127
    %v2460 = vpop.permute.xlu0 %2459
    %2461 = vrot.lane.b32.xlu0 %v2351, 127
    %v2462 = vpop.permute.xlu0 %2461
    %2463 = vrot.lane.b32.xlu0 %v2268, 127
    %v2464 = vpop.permute.xlu0 %2463
    %2465 = vrot.lane.b32.xlu0 %v2352, 127
    %v2466 = vpop.permute.xlu0 %2465
    %2467 = vrot.lane.b32.xlu0 %v2270, 127
    %v2468 = vpop.permute.xlu0 %2467
    %2469 = vrot.lane.b32.xlu0 %v2353, 127
    %v2470 = vpop.permute.xlu0 %2469
    %2471 = vrot.lane.b32.xlu0 %v2272, 127
    %v2472 = vpop.permute.xlu0 %2471
    %2473 = vrot.lane.b32.xlu0 %v2354, 127
    %v2474 = vpop.permute.xlu0 %2473
    %2475 = vrot.lane.b32.xlu0 %v2274, 127
    %v2476 = vpop.permute.xlu0 %2475
    %2477 = vrot.lane.b32.xlu0 %v2355, 127
    %v2478 = vpop.permute.xlu0 %2477
    %2479 = vrot.lane.b32.xlu0 %v2276, 127
    %v2480 = vpop.permute.xlu0 %2479
    %2481 = vrot.lane.b32.xlu0 %v2356, 127
    %v2482 = vpop.permute.xlu0 %2481
    %2483 = vrot.lane.b32.xlu0 %v2278, 127
    %v2484 = vpop.permute.xlu0 %2483
    %2485 = vrot.lane.b32.xlu0 %v2357, 127
    %v2486 = vpop.permute.xlu0 %2485
    %2487 = vrot.lane.b32.xlu0 %v2280, 127
    %v2488 = vpop.permute.xlu0 %2487
    %2489 = vrot.lane.b32.xlu0 %v2358, 127
    %v2490 = vpop.permute.xlu0 %2489
    %2491 = vrot.lane.b32.xlu0 %v2282, 127
    %v2492 = vpop.permute.xlu0 %2491
    %2493 = vrot.lane.b32.xlu0 %v2359, 127
    %v2494 = vpop.permute.xlu0 %2493
    %2495 = vrot.lane.b32.xlu0 %v2284, 127
    %v2496 = vpop.permute.xlu0 %2495
    %2497 = vrot.lane.b32.xlu0 %v2360, 127
    %v2498 = vpop.permute.xlu0 %2497
    %2499 = vrot.lane.b32.xlu0 %v2286, 127
    %v2500 = vpop.permute.xlu0 %2499
    %2501 = vrot.lane.b32.xlu0 %v2361, 127
    %v2502 = vpop.permute.xlu0 %2501
    %2503 = vrot.lane.b32.xlu0 %v2288, 127
    %v2504 = vpop.permute.xlu0 %2503
    %2505 = vrot.lane.b32.xlu0 %v2362, 127
    %v2506 = vpop.permute.xlu0 %2505
    %vm2507 = vcmask 1039360
    %v2508 = vsel %vm2507, %v2412, %v2414
    %v2509 = vsel %vm2507, %v2416, %v2418
    %v2510 = vsel %vm2507, %v2420, %v2422
    %v2511 = vsel %vm2507, %v2424, %v2426
    %v2512 = vsel %vm2507, %v2428, %v2430
    %v2513 = vsel %vm2507, %v2432, %v2434
    %v2514 = vsel %vm2507, %v2436, %v2438
    %v2515 = vsel %vm2507, %v2440, %v2442
    %v2516 = vsel %vm2507, %v2444, %v2446
    %v2517 = vsel %vm2507, %v2448, %v2450
    %v2518 = vsel %vm2507, %v2452, %v2454
    %v2519 = vsel %vm2507, %v2456, %v2458
    %v2520 = vsel %vm2507, %v2460, %v2462
    %v2521 = vsel %vm2507, %v2464, %v2466
    %v2522 = vsel %vm2507, %v2468, %v2470
    %v2523 = vsel %vm2507, %v2472, %v2474
    %v2524 = vsel %vm2507, %v2476, %v2478
    %v2525 = vsel %vm2507, %v2480, %v2482
    %v2526 = vsel %vm2507, %v2484, %v2486
    %v2527 = vsel %vm2507, %v2488, %v2490
    %v2528 = vsel %vm2507, %v2492, %v2494
    %v2529 = vsel %vm2507, %v2496, %v2498
    %v2530 = vsel %vm2507, %v2500, %v2502
    %v2531 = vsel %vm2507, %v2504, %v2506
    %v2580 = vmax.f32 %v2242, %v2508
    %v2581 = vmax.f32 %v2243, %v2414
    %v2582 = vmax.f32 %v2244, %v2509
    %v2583 = vmax.f32 %v2245, %v2418
    %v2584 = vmax.f32 %v2246, %v2510
    %v2585 = vmax.f32 %v2247, %v2422
    %v2586 = vmax.f32 %v2248, %v2511
    %v2587 = vmax.f32 %v2249, %v2426
    %v2588 = vmax.f32 %v2250, %v2512
    %v2589 = vmax.f32 %v2251, %v2430
    %v2590 = vmax.f32 %v2252, %v2513
    %v2591 = vmax.f32 %v2253, %v2434
    %v2592 = vmax.f32 %v2254, %v2514
    %v2593 = vmax.f32 %v2255, %v2438
    %v2594 = vmax.f32 %v2256, %v2515
    %v2595 = vmax.f32 %v2257, %v2442
    %v2596 = vmax.f32 %v2258, %v2516
    %v2597 = vmax.f32 %v2259, %v2446
    %v2598 = vmax.f32 %v2260, %v2517
    %v2599 = vmax.f32 %v2261, %v2450
    %v2600 = vmax.f32 %v2262, %v2518
    %v2601 = vmax.f32 %v2263, %v2454
    %v2602 = vmax.f32 %v2264, %v2519
    %v2603 = vmax.f32 %v2265, %v2458
    %v2604 = vmax.f32 %v2266, %v2520
    %v2605 = vmax.f32 %v2267, %v2462
    %v2606 = vmax.f32 %v2268, %v2521
    %v2607 = vmax.f32 %v2269, %v2466
    %v2608 = vmax.f32 %v2270, %v2522
    %v2609 = vmax.f32 %v2271, %v2470
    %v2610 = vmax.f32 %v2272, %v2523
    %v2611 = vmax.f32 %v2273, %v2474
    %v2612 = vmax.f32 %v2274, %v2524
    %v2613 = vmax.f32 %v2275, %v2478
    %v2614 = vmax.f32 %v2276, %v2525
    %v2615 = vmax.f32 %v2277, %v2482
    %v2616 = vmax.f32 %v2278, %v2526
    %v2617 = vmax.f32 %v2279, %v2486
    %v2618 = vmax.f32 %v2280, %v2527
    %v2619 = vmax.f32 %v2281, %v2490
    %v2620 = vmax.f32 %v2282, %v2528
    %v2621 = vmax.f32 %v2283, %v2494
    %v2622 = vmax.f32 %v2284, %v2529
    %v2623 = vmax.f32 %v2285, %v2498
    %v2624 = vmax.f32 %v2286, %v2530
    %v2625 = vmax.f32 %v2287, %v2502
    %v2626 = vmax.f32 %v2288, %v2531
    %v2627 = vmax.f32 %v2289, %v2506
    %v2628 = vpack.c.bf16 %v2582, %v2580
    %v2629 = vpack.c.bf16 %v2583, %v2581
    %v2630 = vpack.c.bf16 %v2586, %v2584
    %v2631 = vpack.c.bf16 %v2587, %v2585
    %v2632 = vpack.c.bf16 %v2590, %v2588
    %v2633 = vpack.c.bf16 %v2591, %v2589
    %v2634 = vpack.c.bf16 %v2594, %v2592
    %v2635 = vpack.c.bf16 %v2595, %v2593
    %v2636 = vpack.c.bf16 %v2598, %v2596
    %v2637 = vpack.c.bf16 %v2599, %v2597
    %v2638 = vpack.c.bf16 %v2602, %v2600
    %v2639 = vpack.c.bf16 %v2603, %v2601
    %v2640 = vpack.c.bf16 %v2606, %v2604
    %v2641 = vpack.c.bf16 %v2607, %v2605
    %v2642 = vpack.c.bf16 %v2610, %v2608
    %v2643 = vpack.c.bf16 %v2611, %v2609
    %v2644 = vpack.c.bf16 %v2614, %v2612
    %v2645 = vpack.c.bf16 %v2615, %v2613
    %v2646 = vpack.c.bf16 %v2618, %v2616
    %v2647 = vpack.c.bf16 %v2619, %v2617
    %v2648 = vpack.c.bf16 %v2622, %v2620
    %v2649 = vpack.c.bf16 %v2623, %v2621
    %v2650 = vpack.c.bf16 %v2626, %v2624
    %v2651 = vpack.c.bf16 %v2627, %v2625
    %v2652 = vld [vmem:[%s3] sm:$0xf]
    %v2653 = vld [vmem:[%s3 + $0x4] sm:$0xf]
    %v2654 = vld [vmem:[%s3 + $0x8] sm:$0xf]
    %v2655 = vld [vmem:[%s3 + $0xc] sm:$0xf]
    %v2656 = vld [vmem:[%s3 + $0x10] sm:$0xf]
    %v2657 = vld [vmem:[%s3 + $0x14] sm:$0xf]
    %v2658 = vld [vmem:[%s3 + $0x18] sm:$0xf]
    %v2659 = vld [vmem:[%s3 + $0x1c] sm:$0xf]
    %v2660 = vld [vmem:[%s3 + $0x20] sm:$0xf]
    %v2661 = vld [vmem:[%s3 + $0x24] sm:$0xf]
    %v2662 = vld [vmem:[%s3 + $0x28] sm:$0xf]
    %v2663 = vld [vmem:[%s3 + $0x2c] sm:$0xf]
    %v2664 = vld [vmem:[%s3 + $0x30] sm:$0xf]
    %v2665 = vld [vmem:[%s3 + $0x34] sm:$0xf]
    %v2666 = vld [vmem:[%s3 + $0x38] sm:$0xf]
    %v2667 = vld [vmem:[%s3 + $0x3c] sm:$0xf]
    %v2668 = vld [vmem:[%s3 + $0x40] sm:$0xf]
    %v2669 = vld [vmem:[%s3 + $0x44] sm:$0xf]
    %v2670 = vld [vmem:[%s3 + $0x48] sm:$0xf]
    %v2671 = vld [vmem:[%s3 + $0x4c] sm:$0xf]
    %v2672 = vld [vmem:[%s3 + $0x50] sm:$0xf]
    %v2673 = vld [vmem:[%s3 + $0x54] sm:$0xf]
    %v2674 = vld [vmem:[%s3 + $0x58] sm:$0xf]
    %v2675 = vld [vmem:[%s3 + $0x5c] sm:$0xf]
    %v2676 = vld [vmem:[%s3 + $0x60] sm:$0xf]
    %v2677 = vld [vmem:[%s3 + $0x64] sm:$0xf]
    %v2678 = vld [vmem:[%s3 + $0x68] sm:$0xf]
    %v2679 = vld [vmem:[%s3 + $0x6c] sm:$0xf]
    %v2680 = vld [vmem:[%s3 + $0x70] sm:$0xf]
    %v2681 = vld [vmem:[%s3 + $0x74] sm:$0xf]
    %v2712 = vunpack.c.l.b16 %v2652
    %v2713 = vunpack.c.l.b16 %v2653
    %v2714 = vunpack.c.l.b16 %v2654
    %v2715 = vunpack.c.l.b16 %v2655
    %v2716 = vunpack.c.l.b16 %v2656
    %v2717 = vunpack.c.l.b16 %v2657
    %v2718 = vunpack.c.l.b16 %v2658
    %v2719 = vunpack.c.l.b16 %v2659
    %v2720 = vunpack.c.l.b16 %v2660
    %v2721 = vunpack.c.l.b16 %v2661
    %v2722 = vunpack.c.l.b16 %v2662
    %v2723 = vunpack.c.l.b16 %v2663
    %v2724 = vunpack.c.l.b16 %v2664
    %v2725 = vunpack.c.l.b16 %v2665
    %v2726 = vunpack.c.l.b16 %v2666
    %v2727 = vunpack.c.l.b16 %v2667
    %v2728 = vunpack.c.l.b16 %v2668
    %v2729 = vunpack.c.l.b16 %v2669
    %v2730 = vunpack.c.l.b16 %v2670
    %v2731 = vunpack.c.l.b16 %v2671
    %v2732 = vunpack.c.l.b16 %v2672
    %v2733 = vunpack.c.l.b16 %v2673
    %v2734 = vunpack.c.l.b16 %v2674
    %v2735 = vunpack.c.l.b16 %v2675
    %v2736 = vunpack.c.l.b16 %v2676
    %v2737 = vunpack.c.l.b16 %v2677
    %v2738 = vunpack.c.l.b16 %v2678
    %v2739 = vunpack.c.l.b16 %v2679
    %v2740 = vunpack.c.l.b16 %v2680
    %v2741 = vunpack.c.l.b16 %v2681
    %v2742 = vpack.c.b16 %v2713, %v2712
    %v2743 = vpack.c.b16 %v2715, %v2714
    %v2744 = vpack.c.b16 %v2717, %v2716
    %v2745 = vpack.c.b16 %v2719, %v2718
    %v2746 = vpack.c.b16 %v2721, %v2720
    %v2747 = vpack.c.b16 %v2723, %v2722
    %v2748 = vpack.c.b16 %v2725, %v2724
    %v2749 = vpack.c.b16 %v2727, %v2726
    %v2750 = vpack.c.b16 %v2729, %v2728
    %v2751 = vpack.c.b16 %v2731, %v2730
    %v2752 = vpack.c.b16 %v2733, %v2732
    %v2753 = vpack.c.b16 %v2735, %v2734
    %v2754 = vpack.c.b16 %v2737, %v2736
    %v2755 = vpack.c.b16 %v2739, %v2738
    %v2756 = vpack.c.b16 %v2741, %v2740
    %vm2772 = vcmask 916480
    %v2774 = vsel %vm2772, %v2629, 0
    %v2777 = vsel %vm2772, %v2631, 0
    %v2780 = vsel %vm2772, %v2633, 0
    %v2783 = vsel %vm2772, %v2635, 0
    %v2786 = vsel %vm2772, %v2637, 0
    %v2789 = vsel %vm2772, %v2639, 0
    %v2792 = vsel %vm2772, %v2641, 0
    %v2795 = vsel %vm2772, %v2643, 0
    %v2798 = vsel %vm2772, %v2645, 0
    %v2801 = vsel %vm2772, %v2647, 0
    %v2804 = vsel %vm2772, %v2649, 0
    %v2807 = vsel %vm2772, %v2651, 0
    %2809 = vmatpush.bf16.msra.mxu0 %v2749
    %2810 = vmatpush.bf16.msra.mxu0 %v2748
    %2811 = vmatpush.bf16.msra.mxu0 %v2747
    %2812 = vmatpush.bf16.msra.mxu0 %v2746
    %2813 = vmatpush.bf16.msra.mxu0 %v2745
    %2814 = vmatpush.bf16.msra.mxu0 %v2744
    %2815 = vmatpush.bf16.msra.mxu0 %v2743
    %2816 = vmatpush.bf16.msra.mxu0 %v2742
    %2817 = vmatmul.bf16.gmra.mxu0 %v2628
    %v2818 = vpop.f32.mrf.mxu0
    %v2819 = vadd.f32 0.0, %v2818
    %v2820 = vpop.f32.mrf.mxu0
    %v2821 = vadd.f32 0.0, %v2820
    %2822 = vmatmul.bf16.gmra.mxu0 %v2630
    %v2823 = vpop.f32.mrf.mxu0
    %v2824 = vadd.f32 0.0, %v2823
    %v2825 = vpop.f32.mrf.mxu0
    %v2826 = vadd.f32 0.0, %v2825
    %2827 = vmatmul.bf16.gmra.mxu0 %v2632
    %v2828 = vpop.f32.mrf.mxu0
    %v2829 = vadd.f32 0.0, %v2828
    %v2830 = vpop.f32.mrf.mxu0
    %v2831 = vadd.f32 0.0, %v2830
    %2832 = vmatmul.bf16.gmra.mxu0 %v2634
    %v2833 = vpop.f32.mrf.mxu0
    %v2834 = vadd.f32 0.0, %v2833
    %v2835 = vpop.f32.mrf.mxu0
    %v2836 = vadd.f32 0.0, %v2835
    %2837 = vmatmul.bf16.gmra.mxu0 %v2636
    %v2838 = vpop.f32.mrf.mxu0
    %v2839 = vadd.f32 0.0, %v2838
    %v2840 = vpop.f32.mrf.mxu0
    %v2841 = vadd.f32 0.0, %v2840
    %2842 = vmatmul.bf16.gmra.mxu0 %v2638
    %v2843 = vpop.f32.mrf.mxu0
    %v2844 = vadd.f32 0.0, %v2843
    %v2845 = vpop.f32.mrf.mxu0
    %v2846 = vadd.f32 0.0, %v2845
    %2847 = vmatmul.bf16.gmra.mxu0 %v2640
    %v2848 = vpop.f32.mrf.mxu0
    %v2849 = vadd.f32 0.0, %v2848
    %v2850 = vpop.f32.mrf.mxu0
    %v2851 = vadd.f32 0.0, %v2850
    %2852 = vmatmul.bf16.gmra.mxu0 %v2642
    %v2853 = vpop.f32.mrf.mxu0
    %v2854 = vadd.f32 0.0, %v2853
    %v2855 = vpop.f32.mrf.mxu0
    %v2856 = vadd.f32 0.0, %v2855
    %2857 = vmatmul.bf16.gmra.mxu0 %v2644
    %v2858 = vpop.f32.mrf.mxu0
    %v2859 = vadd.f32 0.0, %v2858
    %v2860 = vpop.f32.mrf.mxu0
    %v2861 = vadd.f32 0.0, %v2860
    %2862 = vmatmul.bf16.gmra.mxu0 %v2646
    %v2863 = vpop.f32.mrf.mxu0
    %v2864 = vadd.f32 0.0, %v2863
    %v2865 = vpop.f32.mrf.mxu0
    %v2866 = vadd.f32 0.0, %v2865
    %2867 = vmatmul.bf16.gmra.mxu0 %v2648
    %v2868 = vpop.f32.mrf.mxu0
    %v2869 = vadd.f32 0.0, %v2868
    %v2870 = vpop.f32.mrf.mxu0
    %v2871 = vadd.f32 0.0, %v2870
    %2872 = vmatmul.bf16.gmra.mxu0 %v2650
    %v2873 = vpop.f32.mrf.mxu0
    %v2874 = vadd.f32 0.0, %v2873
    %v2875 = vpop.f32.mrf.mxu0
    %v2876 = vadd.f32 0.0, %v2875
    %2877 = vdwg.mxu0
    %2878 = vmatpush.bf16.msra.mxu0 0
    %2879 = vmatpush.bf16.msra.mxu0 %v2756
    %2880 = vmatpush.bf16.msra.mxu0 %v2755
    %2881 = vmatpush.bf16.msra.mxu0 %v2754
    %2882 = vmatpush.bf16.msra.mxu0 %v2753
    %2883 = vmatpush.bf16.msra.mxu0 %v2752
    %2884 = vmatpush.bf16.msra.mxu0 %v2751
    %2885 = vmatpush.bf16.msra.mxu0 %v2750
    %2886 = vmatmul.bf16.gmra.mxu0 %v2774
    %v2887 = vpop.f32.mrf.mxu0
    %v2888 = vadd.f32 %v2819, %v2887
    %v2889 = vpop.f32.mrf.mxu0
    %v2890 = vadd.f32 %v2821, %v2889
    %2891 = vmatmul.bf16.gmra.mxu0 %v2777
    %v2892 = vpop.f32.mrf.mxu0
    %v2893 = vadd.f32 %v2824, %v2892
    %v2894 = vpop.f32.mrf.mxu0
    %v2895 = vadd.f32 %v2826, %v2894
    %2896 = vmatmul.bf16.gmra.mxu0 %v2780
    %v2897 = vpop.f32.mrf.mxu0
    %v2898 = vadd.f32 %v2829, %v2897
    %v2899 = vpop.f32.mrf.mxu0
    %v2900 = vadd.f32 %v2831, %v2899
    %2901 = vmatmul.bf16.gmra.mxu0 %v2783
    %v2902 = vpop.f32.mrf.mxu0
    %v2903 = vadd.f32 %v2834, %v2902
    %v2904 = vpop.f32.mrf.mxu0
    %v2905 = vadd.f32 %v2836, %v2904
    %2906 = vmatmul.bf16.gmra.mxu0 %v2786
    %v2907 = vpop.f32.mrf.mxu0
    %v2908 = vadd.f32 %v2839, %v2907
    %v2909 = vpop.f32.mrf.mxu0
    %v2910 = vadd.f32 %v2841, %v2909
    %2911 = vmatmul.bf16.gmra.mxu0 %v2789
    %v2912 = vpop.f32.mrf.mxu0
    %v2913 = vadd.f32 %v2844, %v2912
    %v2914 = vpop.f32.mrf.mxu0
    %v2915 = vadd.f32 %v2846, %v2914
    %2916 = vmatmul.bf16.gmra.mxu0 %v2792
    %v2917 = vpop.f32.mrf.mxu0
    %v2918 = vadd.f32 %v2849, %v2917
    %v2919 = vpop.f32.mrf.mxu0
    %v2920 = vadd.f32 %v2851, %v2919
    %2921 = vmatmul.bf16.gmra.mxu0 %v2795
    %v2922 = vpop.f32.mrf.mxu0
    %v2923 = vadd.f32 %v2854, %v2922
    %v2924 = vpop.f32.mrf.mxu0
    %v2925 = vadd.f32 %v2856, %v2924
    %2926 = vmatmul.bf16.gmra.mxu0 %v2798
    %v2927 = vpop.f32.mrf.mxu0
    %v2928 = vadd.f32 %v2859, %v2927
    %v2929 = vpop.f32.mrf.mxu0
    %v2930 = vadd.f32 %v2861, %v2929
    %2931 = vmatmul.bf16.gmra.mxu0 %v2801
    %v2932 = vpop.f32.mrf.mxu0
    %v2933 = vadd.f32 %v2864, %v2932
    %v2934 = vpop.f32.mrf.mxu0
    %v2935 = vadd.f32 %v2866, %v2934
    %2936 = vmatmul.bf16.gmra.mxu0 %v2804
    %v2937 = vpop.f32.mrf.mxu0
    %v2938 = vadd.f32 %v2869, %v2937
    %v2939 = vpop.f32.mrf.mxu0
    %v2940 = vadd.f32 %v2871, %v2939
    %2941 = vmatmul.bf16.gmra.mxu0 %v2807
    %v2942 = vpop.f32.mrf.mxu0
    %v2943 = vadd.f32 %v2874, %v2942
    %v2944 = vpop.f32.mrf.mxu0
    %v2945 = vadd.f32 %v2876, %v2944
    %2946 = vdwg.mxu0
    %v2947 = vmax.f32 %v2888, 0.0
    %v2948 = vmax.f32 %v2890, 0.0
    %v2949 = vmax.f32 %v2893, 0.0
    %v2950 = vmax.f32 %v2895, 0.0
    %v2951 = vmax.f32 %v2898, 0.0
    %v2952 = vmax.f32 %v2900, 0.0
    %v2953 = vmax.f32 %v2903, 0.0
    %v2954 = vmax.f32 %v2905, 0.0
    %v2955 = vmax.f32 %v2908, 0.0
    %v2956 = vmax.f32 %v2910, 0.0
    %v2957 = vmax.f32 %v2913, 0.0
    %v2958 = vmax.f32 %v2915, 0.0
    %v2959 = vmax.f32 %v2918, 0.0
    %v2960 = vmax.f32 %v2920, 0.0
    %v2961 = vmax.f32 %v2923, 0.0
    %v2962 = vmax.f32 %v2925, 0.0
    %v2963 = vmax.f32 %v2928, 0.0
    %v2964 = vmax.f32 %v2930, 0.0
    %v2965 = vmax.f32 %v2933, 0.0
    %v2966 = vmax.f32 %v2935, 0.0
    %v2967 = vmax.f32 %v2938, 0.0
    %v2968 = vmax.f32 %v2940, 0.0
    %v2969 = vmax.f32 %v2943, 0.0
    %v2970 = vmax.f32 %v2945, 0.0
    %v2971 = vpack.c.bf16 %v2947, %v2947
    %v2972 = vpack.c.bf16 %v2948, %v2948
    %v2973 = vpack.c.bf16 %v2949, %v2949
    %v2974 = vpack.c.bf16 %v2950, %v2950
    %v2975 = vpack.c.bf16 %v2951, %v2951
    %v2976 = vpack.c.bf16 %v2952, %v2952
    %v2977 = vpack.c.bf16 %v2953, %v2953
    %v2978 = vpack.c.bf16 %v2954, %v2954
    %v2979 = vpack.c.bf16 %v2955, %v2955
    %v2980 = vpack.c.bf16 %v2956, %v2956
    %v2981 = vpack.c.bf16 %v2957, %v2957
    %v2982 = vpack.c.bf16 %v2958, %v2958
    %v2983 = vpack.c.bf16 %v2959, %v2959
    %v2984 = vpack.c.bf16 %v2960, %v2960
    %v2985 = vpack.c.bf16 %v2961, %v2961
    %v2986 = vpack.c.bf16 %v2962, %v2962
    %v2987 = vpack.c.bf16 %v2963, %v2963
    %v2988 = vpack.c.bf16 %v2964, %v2964
    %v2989 = vpack.c.bf16 %v2965, %v2965
    %v2990 = vpack.c.bf16 %v2966, %v2966
    %v2991 = vpack.c.bf16 %v2967, %v2967
    %v2992 = vpack.c.bf16 %v2968, %v2968
    %v2993 = vpack.c.bf16 %v2969, %v2969
    %v2994 = vpack.c.bf16 %v2970, %v2970
    %v2995 = vld [vmem:[%s5] sm:$0x3]
    %v2996 = vld [vmem:[%s4] sm:$0xff]
    %v2997 = vld [vmem:[%s4 + $0x8] sm:$0xff]
    %v2998 = vld [vmem:[%s4 + $0x10] sm:$0xff]
    %v2999 = vld [vmem:[%s4 + $0x18] sm:$0xff]
    %v3000 = vld [vmem:[%s4 + $0x20] sm:$0xff]
    %v3001 = vld [vmem:[%s4 + $0x28] sm:$0xff]
    %v3002 = vld [vmem:[%s4 + $0x30] sm:$0xff]
    %v3003 = vld [vmem:[%s4 + $0x38] sm:$0xff]
    %v3004 = vld [vmem:[%s4 + $0x40] sm:$0xff]
    %v3005 = vld [vmem:[%s4 + $0x48] sm:$0xff]
    %v3006 = vld [vmem:[%s4 + $0x50] sm:$0xff]
    %v3007 = vld [vmem:[%s4 + $0x58] sm:$0xff]
    %v3008 = vld [vmem:[%s4 + $0x60] sm:$0xff]
    %v3009 = vld [vmem:[%s4 + $0x68] sm:$0xff]
    %v3010 = vld [vmem:[%s4 + $0x70] sm:$0xff]
    %v3027 = vunpack.c.l.b16 %v2971
    %v3028 = vunpack.c.l.b16 %v2972
    %v3029 = vunpack.c.l.b16 %v2973
    %v3030 = vunpack.c.l.b16 %v2974
    %v3031 = vunpack.c.l.b16 %v2975
    %v3032 = vunpack.c.l.b16 %v2976
    %v3033 = vunpack.c.l.b16 %v2977
    %v3034 = vunpack.c.l.b16 %v2978
    %v3035 = vunpack.c.l.b16 %v2979
    %v3036 = vunpack.c.l.b16 %v2980
    %v3037 = vunpack.c.l.b16 %v2981
    %v3038 = vunpack.c.l.b16 %v2982
    %v3039 = vunpack.c.l.b16 %v2983
    %v3040 = vunpack.c.l.b16 %v2984
    %v3041 = vunpack.c.l.b16 %v2985
    %v3042 = vunpack.c.l.b16 %v2986
    %v3043 = vpack.c.b16 %v3028, %v3027
    %v3044 = vpack.c.b16 %v3030, %v3029
    %v3045 = vpack.c.b16 %v3032, %v3031
    %v3046 = vpack.c.b16 %v3034, %v3033
    %v3047 = vpack.c.b16 %v3036, %v3035
    %v3048 = vpack.c.b16 %v3038, %v3037
    %v3049 = vpack.c.b16 %v3040, %v3039
    %v3050 = vpack.c.b16 %v3042, %v3041
    %v3066 = vunpack.c.l.b16 %v2996
    %v3067 = vunpack.c.h.b16 %v2996
    %v3068 = vunpack.c.l.b16 %v2997
    %v3069 = vunpack.c.h.b16 %v2997
    %v3070 = vunpack.c.l.b16 %v2998
    %v3071 = vunpack.c.h.b16 %v2998
    %v3072 = vunpack.c.l.b16 %v2999
    %v3073 = vunpack.c.h.b16 %v2999
    %v3074 = vunpack.c.l.b16 %v3000
    %v3075 = vunpack.c.h.b16 %v3000
    %v3076 = vunpack.c.l.b16 %v3001
    %v3077 = vunpack.c.h.b16 %v3001
    %v3078 = vunpack.c.l.b16 %v3002
    %v3079 = vunpack.c.h.b16 %v3002
    %v3080 = vunpack.c.l.b16 %v3003
    %v3081 = vunpack.c.h.b16 %v3003
    %v3082 = vunpack.c.l.b16 %v3004
    %v3083 = vunpack.c.h.b16 %v3004
    %v3084 = vunpack.c.l.b16 %v3005
    %v3085 = vunpack.c.h.b16 %v3005
    %v3086 = vunpack.c.l.b16 %v3006
    %v3087 = vunpack.c.h.b16 %v3006
    %v3088 = vunpack.c.l.b16 %v3007
    %v3089 = vunpack.c.h.b16 %v3007
    %v3090 = vunpack.c.l.b16 %v3008
    %v3091 = vunpack.c.h.b16 %v3008
    %v3092 = vunpack.c.l.b16 %v3009
    %v3093 = vunpack.c.h.b16 %v3009
    %v3094 = vunpack.c.l.b16 %v3010
    %v3095 = vunpack.c.h.b16 %v3010
    %v3096 = vpack.c.b16 %v3068, %v3066
    %v3097 = vpack.c.b16 %v3069, %v3067
    %v3098 = vpack.c.b16 %v3072, %v3070
    %v3099 = vpack.c.b16 %v3073, %v3071
    %v3100 = vpack.c.b16 %v3076, %v3074
    %v3101 = vpack.c.b16 %v3077, %v3075
    %v3102 = vpack.c.b16 %v3080, %v3078
    %v3103 = vpack.c.b16 %v3081, %v3079
    %v3104 = vpack.c.b16 %v3084, %v3082
    %v3105 = vpack.c.b16 %v3085, %v3083
    %v3106 = vpack.c.b16 %v3088, %v3086
    %v3107 = vpack.c.b16 %v3089, %v3087
    %v3108 = vpack.c.b16 %v3092, %v3090
    %v3109 = vpack.c.b16 %v3093, %v3091
    %v3110 = vpack.c.b16 %v3094, %v3094
    %v3111 = vpack.c.b16 %v3095, %v3095
    %vm3126 = vcmask 982016
    %v3128 = vsel %vm3126, %v3043, 0
    %v3131 = vsel %vm3126, %v3044, 0
    %v3134 = vsel %vm3126, %v3045, 0
    %v3137 = vsel %vm3126, %v3046, 0
    %v3140 = vsel %vm3126, %v3047, 0
    %v3143 = vsel %vm3126, %v3048, 0
    %v3146 = vsel %vm3126, %v3049, 0
    %v3149 = vsel %vm3126, %v3050, 0
    %vm3151 = vcmask 1043456
    %v3153 = vsel %vm3151, %v3110, 0
    %v3156 = vsel %vm3151, %v3111, 0
    %3158 = vmatpush.bf16.msra.mxu0 %v3153
    %3159 = vmatpush.bf16.msra.mxu0 %v3108
    %3160 = vmatpush.bf16.msra.mxu0 %v3106
    %3161 = vmatpush.bf16.msra.mxu0 %v3104
    %3162 = vmatpush.bf16.msra.mxu0 %v3102
    %3163 = vmatpush.bf16.msra.mxu0 %v3100
    %3164 = vmatpush.bf16.msra.mxu0 %v3098
    %3165 = vmatpush.bf16.msra.mxu0 %v3096
    %3166 = vmatmul.bf16.gmra.mxu0 %v3128
    %v3167 = vpop.f32.mrf.mxu0
    %v3168 = vadd.f32 0.0, %v3167
    %v3169 = vpop.f32.mrf.mxu0
    %v3170 = vadd.f32 0.0, %v3169
    %3171 = vmatmul.bf16.gmra.mxu0 %v3131
    %v3172 = vpop.f32.mrf.mxu0
    %v3173 = vadd.f32 0.0, %v3172
    %v3174 = vpop.f32.mrf.mxu0
    %v3175 = vadd.f32 0.0, %v3174
    %3176 = vmatmul.bf16.gmra.mxu0 %v3134
    %v3177 = vpop.f32.mrf.mxu0
    %v3178 = vadd.f32 0.0, %v3177
    %v3179 = vpop.f32.mrf.mxu0
    %v3180 = vadd.f32 0.0, %v3179
    %3181 = vmatmul.bf16.gmra.mxu0 %v3137
    %v3182 = vpop.f32.mrf.mxu0
    %v3183 = vadd.f32 0.0, %v3182
    %v3184 = vpop.f32.mrf.mxu0
    %v3185 = vadd.f32 0.0, %v3184
    %3186 = vmatmul.bf16.gmra.mxu0 %v3140
    %v3187 = vpop.f32.mrf.mxu0
    %v3188 = vadd.f32 0.0, %v3187
    %v3189 = vpop.f32.mrf.mxu0
    %v3190 = vadd.f32 0.0, %v3189
    %3191 = vmatmul.bf16.gmra.mxu0 %v3143
    %v3192 = vpop.f32.mrf.mxu0
    %v3193 = vadd.f32 0.0, %v3192
    %v3194 = vpop.f32.mrf.mxu0
    %v3195 = vadd.f32 0.0, %v3194
    %3196 = vmatmul.bf16.gmra.mxu0 %v3146
    %v3197 = vpop.f32.mrf.mxu0
    %v3198 = vadd.f32 0.0, %v3197
    %v3199 = vpop.f32.mrf.mxu0
    %v3200 = vadd.f32 0.0, %v3199
    %3201 = vmatmul.bf16.gmra.mxu0 %v3149
    %v3202 = vpop.f32.mrf.mxu0
    %v3203 = vadd.f32 0.0, %v3202
    %v3204 = vpop.f32.mrf.mxu0
    %v3205 = vadd.f32 0.0, %v3204
    %3206 = vdwg.mxu0
    %3207 = vmatpush.bf16.msra.mxu0 %v3156
    %3208 = vmatpush.bf16.msra.mxu0 %v3109
    %3209 = vmatpush.bf16.msra.mxu0 %v3107
    %3210 = vmatpush.bf16.msra.mxu0 %v3105
    %3211 = vmatpush.bf16.msra.mxu0 %v3103
    %3212 = vmatpush.bf16.msra.mxu0 %v3101
    %3213 = vmatpush.bf16.msra.mxu0 %v3099
    %3214 = vmatpush.bf16.msra.mxu0 %v3097
    %3215 = vmatmul.bf16.gmra.mxu0 %v3128
    %v3216 = vpop.f32.mrf.mxu0
    %v3217 = vadd.f32 0.0, %v3216
    %v3218 = vpop.f32.mrf.mxu0
    %v3219 = vadd.f32 0.0, %v3218
    %3220 = vmatmul.bf16.gmra.mxu0 %v3131
    %v3221 = vpop.f32.mrf.mxu0
    %v3222 = vadd.f32 0.0, %v3221
    %v3223 = vpop.f32.mrf.mxu0
    %v3224 = vadd.f32 0.0, %v3223
    %3225 = vmatmul.bf16.gmra.mxu0 %v3134
    %v3226 = vpop.f32.mrf.mxu0
    %v3227 = vadd.f32 0.0, %v3226
    %v3228 = vpop.f32.mrf.mxu0
    %v3229 = vadd.f32 0.0, %v3228
    %3230 = vmatmul.bf16.gmra.mxu0 %v3137
    %v3231 = vpop.f32.mrf.mxu0
    %v3232 = vadd.f32 0.0, %v3231
    %v3233 = vpop.f32.mrf.mxu0
    %v3234 = vadd.f32 0.0, %v3233
    %3235 = vmatmul.bf16.gmra.mxu0 %v3140
    %v3236 = vpop.f32.mrf.mxu0
    %v3237 = vadd.f32 0.0, %v3236
    %v3238 = vpop.f32.mrf.mxu0
    %v3239 = vadd.f32 0.0, %v3238
    %3240 = vmatmul.bf16.gmra.mxu0 %v3143
    %v3241 = vpop.f32.mrf.mxu0
    %v3242 = vadd.f32 0.0, %v3241
    %v3243 = vpop.f32.mrf.mxu0
    %v3244 = vadd.f32 0.0, %v3243
    %3245 = vmatmul.bf16.gmra.mxu0 %v3146
    %v3246 = vpop.f32.mrf.mxu0
    %v3247 = vadd.f32 0.0, %v3246
    %v3248 = vpop.f32.mrf.mxu0
    %v3249 = vadd.f32 0.0, %v3248
    %3250 = vmatmul.bf16.gmra.mxu0 %v3149
    %v3251 = vpop.f32.mrf.mxu0
    %v3252 = vadd.f32 0.0, %v3251
    %v3253 = vpop.f32.mrf.mxu0
    %v3254 = vadd.f32 0.0, %v3253
    %3255 = vdwg.mxu0
    %v3257 = vperm.slane %v2995, 0
    %v3258 = vperm.slane %v2995, 1
    %v3261 = vadd.f32 %v3257, %v3168
    %v3262 = vadd.f32 %v3258, %v3217
    %v3263 = vadd.f32 %v3257, %v3170
    %v3264 = vadd.f32 %v3258, %v3219
    %v3265 = vadd.f32 %v3257, %v3173
    %v3266 = vadd.f32 %v3258, %v3222
    %v3267 = vadd.f32 %v3257, %v3175
    %v3268 = vadd.f32 %v3258, %v3224
    %v3269 = vadd.f32 %v3257, %v3178
    %v3270 = vadd.f32 %v3258, %v3227
    %v3271 = vadd.f32 %v3257, %v3180
    %v3272 = vadd.f32 %v3258, %v3229
    %v3273 = vadd.f32 %v3257, %v3183
    %v3274 = vadd.f32 %v3258, %v3232
    %v3275 = vadd.f32 %v3257, %v3185
    %v3276 = vadd.f32 %v3258, %v3234
    %v3277 = vadd.f32 %v3257, %v3188
    %v3278 = vadd.f32 %v3258, %v3237
    %v3279 = vadd.f32 %v3257, %v3190
    %v3280 = vadd.f32 %v3258, %v3239
    %v3281 = vadd.f32 %v3257, %v3193
    %v3282 = vadd.f32 %v3258, %v3242
    %v3283 = vadd.f32 %v3257, %v3195
    %v3284 = vadd.f32 %v3258, %v3244
    %v3285 = vadd.f32 %v3257, %v3198
    %v3286 = vadd.f32 %v3258, %v3247
    %v3287 = vadd.f32 %v3257, %v3200
    %v3288 = vadd.f32 %v3258, %v3249
    %v3289 = vadd.f32 %v3257, %v3203
    %v3290 = vadd.f32 %v3258, %v3252
    %v3291 = vadd.f32 %v3257, %v3205
    %v3292 = vadd.f32 %v3258, %v3254
    %s3293 = scalar_lea.vmem %s4, 120
    %v3294 = vld [vmem:[%s3293] sm:$0xff]
    %v3295 = vld [vmem:[%s3293 + $0x8] sm:$0xff]
    %v3296 = vld [vmem:[%s3293 + $0x10] sm:$0xff]
    %v3297 = vld [vmem:[%s3293 + $0x18] sm:$0xff]
    %v3298 = vld [vmem:[%s3293 + $0x20] sm:$0xff]
    %v3299 = vld [vmem:[%s3293 + $0x28] sm:$0xff]
    %v3300 = vld [vmem:[%s3293 + $0x30] sm:$0xff]
    %v3301 = vld [vmem:[%s3293 + $0x38] sm:$0xff]
    %v3302 = vld [vmem:[%s3293 + $0x40] sm:$0xff]
    %v3303 = vld [vmem:[%s3293 + $0x48] sm:$0xff]
    %v3304 = vld [vmem:[%s3293 + $0x50] sm:$0xff]
    %v3305 = vld [vmem:[%s3293 + $0x58] sm:$0xff]
    %v3306 = vld [vmem:[%s3293 + $0x60] sm:$0xff]
    %v3307 = vld [vmem:[%s3293 + $0x68] sm:$0xff]
    %v3308 = vld [vmem:[%s3293 + $0x70] sm:$0xff]
    %v3311 = vunpack.c.l.b16 %v2987
    %v3312 = vunpack.c.l.b16 %v2988
    %v3313 = vpack.c.b16 %v3312, %v3311
    %v3329 = vunpack.c.l.b16 %v3294
    %v3330 = vunpack.c.h.b16 %v3294
    %v3331 = vunpack.c.l.b16 %v3295
    %v3332 = vunpack.c.h.b16 %v3295
    %v3333 = vunpack.c.l.b16 %v3296
    %v3334 = vunpack.c.h.b16 %v3296
    %v3335 = vunpack.c.l.b16 %v3297
    %v3336 = vunpack.c.h.b16 %v3297
    %v3337 = vunpack.c.l.b16 %v3298
    %v3338 = vunpack.c.h.b16 %v3298
    %v3339 = vunpack.c.l.b16 %v3299
    %v3340 = vunpack.c.h.b16 %v3299
    %v3341 = vunpack.c.l.b16 %v3300
    %v3342 = vunpack.c.h.b16 %v3300
    %v3343 = vunpack.c.l.b16 %v3301
    %v3344 = vunpack.c.h.b16 %v3301
    %v3345 = vunpack.c.l.b16 %v3302
    %v3346 = vunpack.c.h.b16 %v3302
    %v3347 = vunpack.c.l.b16 %v3303
    %v3348 = vunpack.c.h.b16 %v3303
    %v3349 = vunpack.c.l.b16 %v3304
    %v3350 = vunpack.c.h.b16 %v3304
    %v3351 = vunpack.c.l.b16 %v3305
    %v3352 = vunpack.c.h.b16 %v3305
    %v3353 = vunpack.c.l.b16 %v3306
    %v3354 = vunpack.c.h.b16 %v3306
    %v3355 = vunpack.c.l.b16 %v3307
    %v3356 = vunpack.c.h.b16 %v3307
    %v3357 = vunpack.c.l.b16 %v3308
    %v3358 = vunpack.c.h.b16 %v3308
    %v3359 = vpack.c.b16 %v3331, %v3329
    %v3360 = vpack.c.b16 %v3332, %v3330
    %v3361 = vpack.c.b16 %v3335, %v3333
    %v3362 = vpack.c.b16 %v3336, %v3334
    %v3363 = vpack.c.b16 %v3339, %v3337
    %v3364 = vpack.c.b16 %v3340, %v3338
    %v3365 = vpack.c.b16 %v3343, %v3341
    %v3366 = vpack.c.b16 %v3344, %v3342
    %v3367 = vpack.c.b16 %v3347, %v3345
    %v3368 = vpack.c.b16 %v3348, %v3346
    %v3369 = vpack.c.b16 %v3351, %v3349
    %v3370 = vpack.c.b16 %v3352, %v3350
    %v3371 = vpack.c.b16 %v3355, %v3353
    %v3372 = vpack.c.b16 %v3356, %v3354
    %v3373 = vpack.c.b16 %v3357, %v3357
    %v3374 = vpack.c.b16 %v3358, %v3358
    %v3390 = vsel %vm3126, %v3313, 0
    %v3393 = vsel %vm3151, %v3373, 0
    %v3396 = vsel %vm3151, %v3374, 0
    %3398 = vmatpush.bf16.msra.mxu0 %v3393
    %3399 = vmatpush.bf16.msra.mxu0 %v3371
    %3400 = vmatpush.bf16.msra.mxu0 %v3369
    %3401 = vmatpush.bf16.msra.mxu0 %v3367
    %3402 = vmatpush.bf16.msra.mxu0 %v3365
    %3403 = vmatpush.bf16.msra.mxu0 %v3363
    %3404 = vmatpush.bf16.msra.mxu0 %v3361
    %3405 = vmatpush.bf16.msra.mxu0 %v3359
    %3406 = vmatmul.bf16.gmra.mxu0 %v3131
    %v3407 = vpop.f32.mrf.mxu0
    %v3408 = vadd.f32 0.0, %v3407
    %v3409 = vpop.f32.mrf.mxu0
    %v3410 = vadd.f32 0.0, %v3409
    %3411 = vmatmul.bf16.gmra.mxu0 %v3134
    %v3412 = vpop.f32.mrf.mxu0
    %v3413 = vadd.f32 0.0, %v3412
    %v3414 = vpop.f32.mrf.mxu0
    %v3415 = vadd.f32 0.0, %v3414
    %3416 = vmatmul.bf16.gmra.mxu0 %v3137
    %v3417 = vpop.f32.mrf.mxu0
    %v3418 = vadd.f32 0.0, %v3417
    %v3419 = vpop.f32.mrf.mxu0
    %v3420 = vadd.f32 0.0, %v3419
    %3421 = vmatmul.bf16.gmra.mxu0 %v3140
    %v3422 = vpop.f32.mrf.mxu0
    %v3423 = vadd.f32 0.0, %v3422
    %v3424 = vpop.f32.mrf.mxu0
    %v3425 = vadd.f32 0.0, %v3424
    %3426 = vmatmul.bf16.gmra.mxu0 %v3143
    %v3427 = vpop.f32.mrf.mxu0
    %v3428 = vadd.f32 0.0, %v3427
    %v3429 = vpop.f32.mrf.mxu0
    %v3430 = vadd.f32 0.0, %v3429
    %3431 = vmatmul.bf16.gmra.mxu0 %v3146
    %v3432 = vpop.f32.mrf.mxu0
    %v3433 = vadd.f32 0.0, %v3432
    %v3434 = vpop.f32.mrf.mxu0
    %v3435 = vadd.f32 0.0, %v3434
    %3436 = vmatmul.bf16.gmra.mxu0 %v3149
    %v3437 = vpop.f32.mrf.mxu0
    %v3438 = vadd.f32 0.0, %v3437
    %v3439 = vpop.f32.mrf.mxu0
    %v3440 = vadd.f32 0.0, %v3439
    %3441 = vmatmul.bf16.gmra.mxu0 %v3390
    %v3442 = vpop.f32.mrf.mxu0
    %v3443 = vadd.f32 0.0, %v3442
    %v3444 = vpop.f32.mrf.mxu0
    %v3445 = vadd.f32 0.0, %v3444
    %3446 = vdwg.mxu0
    %3447 = vmatpush.bf16.msra.mxu0 %v3396
    %3448 = vmatpush.bf16.msra.mxu0 %v3372
    %3449 = vmatpush.bf16.msra.mxu0 %v3370
    %3450 = vmatpush.bf16.msra.mxu0 %v3368
    %3451 = vmatpush.bf16.msra.mxu0 %v3366
    %3452 = vmatpush.bf16.msra.mxu0 %v3364
    %3453 = vmatpush.bf16.msra.mxu0 %v3362
    %3454 = vmatpush.bf16.msra.mxu0 %v3360
    %3455 = vmatmul.bf16.gmra.mxu0 %v3131
    %v3456 = vpop.f32.mrf.mxu0
    %v3457 = vadd.f32 0.0, %v3456
    %v3458 = vpop.f32.mrf.mxu0
    %v3459 = vadd.f32 0.0, %v3458
    %3460 = vmatmul.bf16.gmra.mxu0 %v3134
    %v3461 = vpop.f32.mrf.mxu0
    %v3462 = vadd.f32 0.0, %v3461
    %v3463 = vpop.f32.mrf.mxu0
    %v3464 = vadd.f32 0.0, %v3463
    %3465 = vmatmul.bf16.gmra.mxu0 %v3137
    %v3466 = vpop.f32.mrf.mxu0
    %v3467 = vadd.f32 0.0, %v3466
    %v3468 = vpop.f32.mrf.mxu0
    %v3469 = vadd.f32 0.0, %v3468
    %3470 = vmatmul.bf16.gmra.mxu0 %v3140
    %v3471 = vpop.f32.mrf.mxu0
    %v3472 = vadd.f32 0.0, %v3471
    %v3473 = vpop.f32.mrf.mxu0
    %v3474 = vadd.f32 0.0, %v3473
    %3475 = vmatmul.bf16.gmra.mxu0 %v3143
    %v3476 = vpop.f32.mrf.mxu0
    %v3477 = vadd.f32 0.0, %v3476
    %v3478 = vpop.f32.mrf.mxu0
    %v3479 = vadd.f32 0.0, %v3478
    %3480 = vmatmul.bf16.gmra.mxu0 %v3146
    %v3481 = vpop.f32.mrf.mxu0
    %v3482 = vadd.f32 0.0, %v3481
    %v3483 = vpop.f32.mrf.mxu0
    %v3484 = vadd.f32 0.0, %v3483
    %3485 = vmatmul.bf16.gmra.mxu0 %v3149
    %v3486 = vpop.f32.mrf.mxu0
    %v3487 = vadd.f32 0.0, %v3486
    %v3488 = vpop.f32.mrf.mxu0
    %v3489 = vadd.f32 0.0, %v3488
    %3490 = vmatmul.bf16.gmra.mxu0 %v3390
    %v3491 = vpop.f32.mrf.mxu0
    %v3492 = vadd.f32 0.0, %v3491
    %v3493 = vpop.f32.mrf.mxu0
    %v3494 = vadd.f32 0.0, %v3493
    %3495 = vdwg.mxu0
    %v3496 = vadd.f32 %v3261, %v3408
    %v3497 = vadd.f32 %v3262, %v3457
    %v3498 = vadd.f32 %v3263, %v3410
    %v3499 = vadd.f32 %v3264, %v3459
    %v3500 = vadd.f32 %v3265, %v3413
    %v3501 = vadd.f32 %v3266, %v3462
    %v3502 = vadd.f32 %v3267, %v3415
    %v3503 = vadd.f32 %v3268, %v3464
    %v3504 = vadd.f32 %v3269, %v3418
    %v3505 = vadd.f32 %v3270, %v3467
    %v3506 = vadd.f32 %v3271, %v3420
    %v3507 = vadd.f32 %v3272, %v3469
    %v3508 = vadd.f32 %v3273, %v3423
    %v3509 = vadd.f32 %v3274, %v3472
    %v3510 = vadd.f32 %v3275, %v3425
    %v3511 = vadd.f32 %v3276, %v3474
    %v3512 = vadd.f32 %v3277, %v3428
    %v3513 = vadd.f32 %v3278, %v3477
    %v3514 = vadd.f32 %v3279, %v3430
    %v3515 = vadd.f32 %v3280, %v3479
    %v3516 = vadd.f32 %v3281, %v3433
    %v3517 = vadd.f32 %v3282, %v3482
    %v3518 = vadd.f32 %v3283, %v3435
    %v3519 = vadd.f32 %v3284, %v3484
    %v3520 = vadd.f32 %v3285, %v3438
    %v3521 = vadd.f32 %v3286, %v3487
    %v3522 = vadd.f32 %v3287, %v3440
    %v3523 = vadd.f32 %v3288, %v3489
    %v3524 = vadd.f32 %v3289, %v3443
    %v3525 = vadd.f32 %v3290, %v3492
    %v3526 = vadd.f32 %v3291, %v3445
    %v3527 = vadd.f32 %v3292, %v3494
    %s3528 = scalar_lea.vmem %s4, 240
    %v3529 = vld [vmem:[%s3528] sm:$0xff]
    %v3530 = vld [vmem:[%s3528 + $0x8] sm:$0xff]
    %v3531 = vld [vmem:[%s3528 + $0x10] sm:$0xff]
    %v3532 = vld [vmem:[%s3528 + $0x18] sm:$0xff]
    %v3533 = vld [vmem:[%s3528 + $0x20] sm:$0xff]
    %v3534 = vld [vmem:[%s3528 + $0x28] sm:$0xff]
    %v3535 = vld [vmem:[%s3528 + $0x30] sm:$0xff]
    %v3536 = vld [vmem:[%s3528 + $0x38] sm:$0xff]
    %v3537 = vld [vmem:[%s3528 + $0x40] sm:$0xff]
    %v3538 = vld [vmem:[%s3528 + $0x48] sm:$0xff]
    %v3539 = vld [vmem:[%s3528 + $0x50] sm:$0xff]
    %v3540 = vld [vmem:[%s3528 + $0x58] sm:$0xff]
    %v3541 = vld [vmem:[%s3528 + $0x60] sm:$0xff]
    %v3542 = vld [vmem:[%s3528 + $0x68] sm:$0xff]
    %v3543 = vld [vmem:[%s3528 + $0x70] sm:$0xff]
    %v3546 = vunpack.c.l.b16 %v2989
    %v3547 = vunpack.c.l.b16 %v2990
    %v3548 = vpack.c.b16 %v3547, %v3546
    %v3564 = vunpack.c.l.b16 %v3529
    %v3565 = vunpack.c.h.b16 %v3529
    %v3566 = vunpack.c.l.b16 %v3530
    %v3567 = vunpack.c.h.b16 %v3530
    %v3568 = vunpack.c.l.b16 %v3531
    %v3569 = vunpack.c.h.b16 %v3531
    %v3570 = vunpack.c.l.b16 %v3532
    %v3571 = vunpack.c.h.b16 %v3532
    %v3572 = vunpack.c.l.b16 %v3533
    %v3573 = vunpack.c.h.b16 %v3533
    %v3574 = vunpack.c.l.b16 %v3534
    %v3575 = vunpack.c.h.b16 %v3534
    %v3576 = vunpack.c.l.b16 %v3535
    %v3577 = vunpack.c.h.b16 %v3535
    %v3578 = vunpack.c.l.b16 %v3536
    %v3579 = vunpack.c.h.b16 %v3536
    %v3580 = vunpack.c.l.b16 %v3537
    %v3581 = vunpack.c.h.b16 %v3537
    %v3582 = vunpack.c.l.b16 %v3538
    %v3583 = vunpack.c.h.b16 %v3538
    %v3584 = vunpack.c.l.b16 %v3539
    %v3585 = vunpack.c.h.b16 %v3539
    %v3586 = vunpack.c.l.b16 %v3540
    %v3587 = vunpack.c.h.b16 %v3540
    %v3588 = vunpack.c.l.b16 %v3541
    %v3589 = vunpack.c.h.b16 %v3541
    %v3590 = vunpack.c.l.b16 %v3542
    %v3591 = vunpack.c.h.b16 %v3542
    %v3592 = vunpack.c.l.b16 %v3543
    %v3593 = vunpack.c.h.b16 %v3543
    %v3594 = vpack.c.b16 %v3566, %v3564
    %v3595 = vpack.c.b16 %v3567, %v3565
    %v3596 = vpack.c.b16 %v3570, %v3568
    %v3597 = vpack.c.b16 %v3571, %v3569
    %v3598 = vpack.c.b16 %v3574, %v3572
    %v3599 = vpack.c.b16 %v3575, %v3573
    %v3600 = vpack.c.b16 %v3578, %v3576
    %v3601 = vpack.c.b16 %v3579, %v3577
    %v3602 = vpack.c.b16 %v3582, %v3580
    %v3603 = vpack.c.b16 %v3583, %v3581
    %v3604 = vpack.c.b16 %v3586, %v3584
    %v3605 = vpack.c.b16 %v3587, %v3585
    %v3606 = vpack.c.b16 %v3590, %v3588
    %v3607 = vpack.c.b16 %v3591, %v3589
    %v3608 = vpack.c.b16 %v3592, %v3592
    %v3609 = vpack.c.b16 %v3593, %v3593
    %v3625 = vsel %vm3126, %v3548, 0
    %v3628 = vsel %vm3151, %v3608, 0
    %v3631 = vsel %vm3151, %v3609, 0
    %3633 = vmatpush.bf16.msra.mxu0 %v3628
    %3634 = vmatpush.bf16.msra.mxu0 %v3606
    %3635 = vmatpush.bf16.msra.mxu0 %v3604
    %3636 = vmatpush.bf16.msra.mxu0 %v3602
    %3637 = vmatpush.bf16.msra.mxu0 %v3600
    %3638 = vmatpush.bf16.msra.mxu0 %v3598
    %3639 = vmatpush.bf16.msra.mxu0 %v3596
    %3640 = vmatpush.bf16.msra.mxu0 %v3594
    %3641 = vmatmul.bf16.gmra.mxu0 %v3134
    %v3642 = vpop.f32.mrf.mxu0
    %v3643 = vadd.f32 0.0, %v3642
    %v3644 = vpop.f32.mrf.mxu0
    %v3645 = vadd.f32 0.0, %v3644
    %3646 = vmatmul.bf16.gmra.mxu0 %v3137
    %v3647 = vpop.f32.mrf.mxu0
    %v3648 = vadd.f32 0.0, %v3647
    %v3649 = vpop.f32.mrf.mxu0
    %v3650 = vadd.f32 0.0, %v3649
    %3651 = vmatmul.bf16.gmra.mxu0 %v3140
    %v3652 = vpop.f32.mrf.mxu0
    %v3653 = vadd.f32 0.0, %v3652
    %v3654 = vpop.f32.mrf.mxu0
    %v3655 = vadd.f32 0.0, %v3654
    %3656 = vmatmul.bf16.gmra.mxu0 %v3143
    %v3657 = vpop.f32.mrf.mxu0
    %v3658 = vadd.f32 0.0, %v3657
    %v3659 = vpop.f32.mrf.mxu0
    %v3660 = vadd.f32 0.0, %v3659
    %3661 = vmatmul.bf16.gmra.mxu0 %v3146
    %v3662 = vpop.f32.mrf.mxu0
    %v3663 = vadd.f32 0.0, %v3662
    %v3664 = vpop.f32.mrf.mxu0
    %v3665 = vadd.f32 0.0, %v3664
    %3666 = vmatmul.bf16.gmra.mxu0 %v3149
    %v3667 = vpop.f32.mrf.mxu0
    %v3668 = vadd.f32 0.0, %v3667
    %v3669 = vpop.f32.mrf.mxu0
    %v3670 = vadd.f32 0.0, %v3669
    %3671 = vmatmul.bf16.gmra.mxu0 %v3390
    %v3672 = vpop.f32.mrf.mxu0
    %v3673 = vadd.f32 0.0, %v3672
    %v3674 = vpop.f32.mrf.mxu0
    %v3675 = vadd.f32 0.0, %v3674
    %3676 = vmatmul.bf16.gmra.mxu0 %v3625
    %v3677 = vpop.f32.mrf.mxu0
    %v3678 = vadd.f32 0.0, %v3677
    %v3679 = vpop.f32.mrf.mxu0
    %v3680 = vadd.f32 0.0, %v3679
    %3681 = vdwg.mxu0
    %3682 = vmatpush.bf16.msra.mxu0 %v3631
    %3683 = vmatpush.bf16.msra.mxu0 %v3607
    %3684 = vmatpush.bf16.msra.mxu0 %v3605
    %3685 = vmatpush.bf16.msra.mxu0 %v3603
    %3686 = vmatpush.bf16.msra.mxu0 %v3601
    %3687 = vmatpush.bf16.msra.mxu0 %v3599
    %3688 = vmatpush.bf16.msra.mxu0 %v3597
    %3689 = vmatpush.bf16.msra.mxu0 %v3595
    %3690 = vmatmul.bf16.gmra.mxu0 %v3134
    %v3691 = vpop.f32.mrf.mxu0
    %v3692 = vadd.f32 0.0, %v3691
    %v3693 = vpop.f32.mrf.mxu0
    %v3694 = vadd.f32 0.0, %v3693
    %3695 = vmatmul.bf16.gmra.mxu0 %v3137
    %v3696 = vpop.f32.mrf.mxu0
    %v3697 = vadd.f32 0.0, %v3696
    %v3698 = vpop.f32.mrf.mxu0
    %v3699 = vadd.f32 0.0, %v3698
    %3700 = vmatmul.bf16.gmra.mxu0 %v3140
    %v3701 = vpop.f32.mrf.mxu0
    %v3702 = vadd.f32 0.0, %v3701
    %v3703 = vpop.f32.mrf.mxu0
    %v3704 = vadd.f32 0.0, %v3703
    %3705 = vmatmul.bf16.gmra.mxu0 %v3143
    %v3706 = vpop.f32.mrf.mxu0
    %v3707 = vadd.f32 0.0, %v3706
    %v3708 = vpop.f32.mrf.mxu0
    %v3709 = vadd.f32 0.0, %v3708
    %3710 = vmatmul.bf16.gmra.mxu0 %v3146
    %v3711 = vpop.f32.mrf.mxu0
    %v3712 = vadd.f32 0.0, %v3711
    %v3713 = vpop.f32.mrf.mxu0
    %v3714 = vadd.f32 0.0, %v3713
    %3715 = vmatmul.bf16.gmra.mxu0 %v3149
    %v3716 = vpop.f32.mrf.mxu0
    %v3717 = vadd.f32 0.0, %v3716
    %v3718 = vpop.f32.mrf.mxu0
    %v3719 = vadd.f32 0.0, %v3718
    %3720 = vmatmul.bf16.gmra.mxu0 %v3390
    %v3721 = vpop.f32.mrf.mxu0
    %v3722 = vadd.f32 0.0, %v3721
    %v3723 = vpop.f32.mrf.mxu0
    %v3724 = vadd.f32 0.0, %v3723
    %3725 = vmatmul.bf16.gmra.mxu0 %v3625
    %v3726 = vpop.f32.mrf.mxu0
    %v3727 = vadd.f32 0.0, %v3726
    %v3728 = vpop.f32.mrf.mxu0
    %v3729 = vadd.f32 0.0, %v3728
    %3730 = vdwg.mxu0
    %v3731 = vadd.f32 %v3496, %v3643
    %v3732 = vadd.f32 %v3497, %v3692
    %v3733 = vadd.f32 %v3498, %v3645
    %v3734 = vadd.f32 %v3499, %v3694
    %v3735 = vadd.f32 %v3500, %v3648
    %v3736 = vadd.f32 %v3501, %v3697
    %v3737 = vadd.f32 %v3502, %v3650
    %v3738 = vadd.f32 %v3503, %v3699
    %v3739 = vadd.f32 %v3504, %v3653
    %v3740 = vadd.f32 %v3505, %v3702
    %v3741 = vadd.f32 %v3506, %v3655
    %v3742 = vadd.f32 %v3507, %v3704
    %v3743 = vadd.f32 %v3508, %v3658
    %v3744 = vadd.f32 %v3509, %v3707
    %v3745 = vadd.f32 %v3510, %v3660
    %v3746 = vadd.f32 %v3511, %v3709
    %v3747 = vadd.f32 %v3512, %v3663
    %v3748 = vadd.f32 %v3513, %v3712
    %v3749 = vadd.f32 %v3514, %v3665
    %v3750 = vadd.f32 %v3515, %v3714
    %v3751 = vadd.f32 %v3516, %v3668
    %v3752 = vadd.f32 %v3517, %v3717
    %v3753 = vadd.f32 %v3518, %v3670
    %v3754 = vadd.f32 %v3519, %v3719
    %v3755 = vadd.f32 %v3520, %v3673
    %v3756 = vadd.f32 %v3521, %v3722
    %v3757 = vadd.f32 %v3522, %v3675
    %v3758 = vadd.f32 %v3523, %v3724
    %v3759 = vadd.f32 %v3524, %v3678
    %v3760 = vadd.f32 %v3525, %v3727
    %v3761 = vadd.f32 %v3526, %v3680
    %v3762 = vadd.f32 %v3527, %v3729
    %s3763 = scalar_lea.vmem %s4, 360
    %v3764 = vld [vmem:[%s3763] sm:$0xff]
    %v3765 = vld [vmem:[%s3763 + $0x8] sm:$0xff]
    %v3766 = vld [vmem:[%s3763 + $0x10] sm:$0xff]
    %v3767 = vld [vmem:[%s3763 + $0x18] sm:$0xff]
    %v3768 = vld [vmem:[%s3763 + $0x20] sm:$0xff]
    %v3769 = vld [vmem:[%s3763 + $0x28] sm:$0xff]
    %v3770 = vld [vmem:[%s3763 + $0x30] sm:$0xff]
    %v3771 = vld [vmem:[%s3763 + $0x38] sm:$0xff]
    %v3772 = vld [vmem:[%s3763 + $0x40] sm:$0xff]
    %v3773 = vld [vmem:[%s3763 + $0x48] sm:$0xff]
    %v3774 = vld [vmem:[%s3763 + $0x50] sm:$0xff]
    %v3775 = vld [vmem:[%s3763 + $0x58] sm:$0xff]
    %v3776 = vld [vmem:[%s3763 + $0x60] sm:$0xff]
    %v3777 = vld [vmem:[%s3763 + $0x68] sm:$0xff]
    %v3778 = vld [vmem:[%s3763 + $0x70] sm:$0xff]
    %v3781 = vunpack.c.l.b16 %v2991
    %v3782 = vunpack.c.l.b16 %v2992
    %v3783 = vpack.c.b16 %v3782, %v3781
    %v3799 = vunpack.c.l.b16 %v3764
    %v3800 = vunpack.c.h.b16 %v3764
    %v3801 = vunpack.c.l.b16 %v3765
    %v3802 = vunpack.c.h.b16 %v3765
    %v3803 = vunpack.c.l.b16 %v3766
    %v3804 = vunpack.c.h.b16 %v3766
    %v3805 = vunpack.c.l.b16 %v3767
    %v3806 = vunpack.c.h.b16 %v3767
    %v3807 = vunpack.c.l.b16 %v3768
    %v3808 = vunpack.c.h.b16 %v3768
    %v3809 = vunpack.c.l.b16 %v3769
    %v3810 = vunpack.c.h.b16 %v3769
    %v3811 = vunpack.c.l.b16 %v3770
    %v3812 = vunpack.c.h.b16 %v3770
    %v3813 = vunpack.c.l.b16 %v3771
    %v3814 = vunpack.c.h.b16 %v3771
    %v3815 = vunpack.c.l.b16 %v3772
    %v3816 = vunpack.c.h.b16 %v3772
    %v3817 = vunpack.c.l.b16 %v3773
    %v3818 = vunpack.c.h.b16 %v3773
    %v3819 = vunpack.c.l.b16 %v3774
    %v3820 = vunpack.c.h.b16 %v3774
    %v3821 = vunpack.c.l.b16 %v3775
    %v3822 = vunpack.c.h.b16 %v3775
    %v3823 = vunpack.c.l.b16 %v3776
    %v3824 = vunpack.c.h.b16 %v3776
    %v3825 = vunpack.c.l.b16 %v3777
    %v3826 = vunpack.c.h.b16 %v3777
    %v3827 = vunpack.c.l.b16 %v3778
    %v3828 = vunpack.c.h.b16 %v3778
    %v3829 = vpack.c.b16 %v3801, %v3799
    %v3830 = vpack.c.b16 %v3802, %v3800
    %v3831 = vpack.c.b16 %v3805, %v3803
    %v3832 = vpack.c.b16 %v3806, %v3804
    %v3833 = vpack.c.b16 %v3809, %v3807
    %v3834 = vpack.c.b16 %v3810, %v3808
    %v3835 = vpack.c.b16 %v3813, %v3811
    %v3836 = vpack.c.b16 %v3814, %v3812
    %v3837 = vpack.c.b16 %v3817, %v3815
    %v3838 = vpack.c.b16 %v3818, %v3816
    %v3839 = vpack.c.b16 %v3821, %v3819
    %v3840 = vpack.c.b16 %v3822, %v3820
    %v3841 = vpack.c.b16 %v3825, %v3823
    %v3842 = vpack.c.b16 %v3826, %v3824
    %v3843 = vpack.c.b16 %v3827, %v3827
    %v3844 = vpack.c.b16 %v3828, %v3828
    %v3860 = vsel %vm3126, %v3783, 0
    %v3863 = vsel %vm3151, %v3843, 0
    %v3866 = vsel %vm3151, %v3844, 0
    %3868 = vmatpush.bf16.msra.mxu0 %v3863
    %3869 = vmatpush.bf16.msra.mxu0 %v3841
    %3870 = vmatpush.bf16.msra.mxu0 %v3839
    %3871 = vmatpush.bf16.msra.mxu0 %v3837
    %3872 = vmatpush.bf16.msra.mxu0 %v3835
    %3873 = vmatpush.bf16.msra.mxu0 %v3833
    %3874 = vmatpush.bf16.msra.mxu0 %v3831
    %3875 = vmatpush.bf16.msra.mxu0 %v3829
    %3876 = vmatmul.bf16.gmra.mxu0 %v3137
    %v3877 = vpop.f32.mrf.mxu0
    %v3878 = vadd.f32 0.0, %v3877
    %v3879 = vpop.f32.mrf.mxu0
    %v3880 = vadd.f32 0.0, %v3879
    %3881 = vmatmul.bf16.gmra.mxu0 %v3140
    %v3882 = vpop.f32.mrf.mxu0
    %v3883 = vadd.f32 0.0, %v3882
    %v3884 = vpop.f32.mrf.mxu0
    %v3885 = vadd.f32 0.0, %v3884
    %3886 = vmatmul.bf16.gmra.mxu0 %v3143
    %v3887 = vpop.f32.mrf.mxu0
    %v3888 = vadd.f32 0.0, %v3887
    %v3889 = vpop.f32.mrf.mxu0
    %v3890 = vadd.f32 0.0, %v3889
    %3891 = vmatmul.bf16.gmra.mxu0 %v3146
    %v3892 = vpop.f32.mrf.mxu0
    %v3893 = vadd.f32 0.0, %v3892
    %v3894 = vpop.f32.mrf.mxu0
    %v3895 = vadd.f32 0.0, %v3894
    %3896 = vmatmul.bf16.gmra.mxu0 %v3149
    %v3897 = vpop.f32.mrf.mxu0
    %v3898 = vadd.f32 0.0, %v3897
    %v3899 = vpop.f32.mrf.mxu0
    %v3900 = vadd.f32 0.0, %v3899
    %3901 = vmatmul.bf16.gmra.mxu0 %v3390
    %v3902 = vpop.f32.mrf.mxu0
    %v3903 = vadd.f32 0.0, %v3902
    %v3904 = vpop.f32.mrf.mxu0
    %v3905 = vadd.f32 0.0, %v3904
    %3906 = vmatmul.bf16.gmra.mxu0 %v3625
    %v3907 = vpop.f32.mrf.mxu0
    %v3908 = vadd.f32 0.0, %v3907
    %v3909 = vpop.f32.mrf.mxu0
    %v3910 = vadd.f32 0.0, %v3909
    %3911 = vmatmul.bf16.gmra.mxu0 %v3860
    %v3912 = vpop.f32.mrf.mxu0
    %v3913 = vadd.f32 0.0, %v3912
    %v3914 = vpop.f32.mrf.mxu0
    %v3915 = vadd.f32 0.0, %v3914
    %3916 = vdwg.mxu0
    %3917 = vmatpush.bf16.msra.mxu0 %v3866
    %3918 = vmatpush.bf16.msra.mxu0 %v3842
    %3919 = vmatpush.bf16.msra.mxu0 %v3840
    %3920 = vmatpush.bf16.msra.mxu0 %v3838
    %3921 = vmatpush.bf16.msra.mxu0 %v3836
    %3922 = vmatpush.bf16.msra.mxu0 %v3834
    %3923 = vmatpush.bf16.msra.mxu0 %v3832
    %3924 = vmatpush.bf16.msra.mxu0 %v3830
    %3925 = vmatmul.bf16.gmra.mxu0 %v3137
    %v3926 = vpop.f32.mrf.mxu0
    %v3927 = vadd.f32 0.0, %v3926
    %v3928 = vpop.f32.mrf.mxu0
    %v3929 = vadd.f32 0.0, %v3928
    %3930 = vmatmul.bf16.gmra.mxu0 %v3140
    %v3931 = vpop.f32.mrf.mxu0
    %v3932 = vadd.f32 0.0, %v3931
    %v3933 = vpop.f32.mrf.mxu0
    %v3934 = vadd.f32 0.0, %v3933
    %3935 = vmatmul.bf16.gmra.mxu0 %v3143
    %v3936 = vpop.f32.mrf.mxu0
    %v3937 = vadd.f32 0.0, %v3936
    %v3938 = vpop.f32.mrf.mxu0
    %v3939 = vadd.f32 0.0, %v3938
    %3940 = vmatmul.bf16.gmra.mxu0 %v3146
    %v3941 = vpop.f32.mrf.mxu0
    %v3942 = vadd.f32 0.0, %v3941
    %v3943 = vpop.f32.mrf.mxu0
    %v3944 = vadd.f32 0.0, %v3943
    %3945 = vmatmul.bf16.gmra.mxu0 %v3149
    %v3946 = vpop.f32.mrf.mxu0
    %v3947 = vadd.f32 0.0, %v3946
    %v3948 = vpop.f32.mrf.mxu0
    %v3949 = vadd.f32 0.0, %v3948
    %3950 = vmatmul.bf16.gmra.mxu0 %v3390
    %v3951 = vpop.f32.mrf.mxu0
    %v3952 = vadd.f32 0.0, %v3951
    %v3953 = vpop.f32.mrf.mxu0
    %v3954 = vadd.f32 0.0, %v3953
    %3955 = vmatmul.bf16.gmra.mxu0 %v3625
    %v3956 = vpop.f32.mrf.mxu0
    %v3957 = vadd.f32 0.0, %v3956
    %v3958 = vpop.f32.mrf.mxu0
    %v3959 = vadd.f32 0.0, %v3958
    %3960 = vmatmul.bf16.gmra.mxu0 %v3860
    %v3961 = vpop.f32.mrf.mxu0
    %v3962 = vadd.f32 0.0, %v3961
    %v3963 = vpop.f32.mrf.mxu0
    %v3964 = vadd.f32 0.0, %v3963
    %3965 = vdwg.mxu0
    %v3966 = vadd.f32 %v3731, %v3878
    %v3967 = vadd.f32 %v3732, %v3927
    %v3968 = vadd.f32 %v3733, %v3880
    %v3969 = vadd.f32 %v3734, %v3929
    %v3970 = vadd.f32 %v3735, %v3883
    %v3971 = vadd.f32 %v3736, %v3932
    %v3972 = vadd.f32 %v3737, %v3885
    %v3973 = vadd.f32 %v3738, %v3934
    %v3974 = vadd.f32 %v3739, %v3888
    %v3975 = vadd.f32 %v3740, %v3937
    %v3976 = vadd.f32 %v3741, %v3890
    %v3977 = vadd.f32 %v3742, %v3939
    %v3978 = vadd.f32 %v3743, %v3893
    %v3979 = vadd.f32 %v3744, %v3942
    %v3980 = vadd.f32 %v3745, %v3895
    %v3981 = vadd.f32 %v3746, %v3944
    %v3982 = vadd.f32 %v3747, %v3898
    %v3983 = vadd.f32 %v3748, %v3947
    %v3984 = vadd.f32 %v3749, %v3900
    %v3985 = vadd.f32 %v3750, %v3949
    %v3986 = vadd.f32 %v3751, %v3903
    %v3987 = vadd.f32 %v3752, %v3952
    %v3988 = vadd.f32 %v3753, %v3905
    %v3989 = vadd.f32 %v3754, %v3954
    %v3990 = vadd.f32 %v3755, %v3908
    %v3991 = vadd.f32 %v3756, %v3957
    %v3992 = vadd.f32 %v3757, %v3910
    %v3993 = vadd.f32 %v3758, %v3959
    %v3994 = vadd.f32 %v3759, %v3913
    %v3995 = vadd.f32 %v3760, %v3962
    %v3996 = vadd.f32 %v3761, %v3915
    %v3997 = vadd.f32 %v3762, %v3964
    %s3998 = scalar_lea.vmem %s4, 480
    %v3999 = vld [vmem:[%s3998] sm:$0xff]
    %v4000 = vld [vmem:[%s3998 + $0x8] sm:$0xff]
    %v4001 = vld [vmem:[%s3998 + $0x10] sm:$0xff]
    %v4002 = vld [vmem:[%s3998 + $0x18] sm:$0xff]
    %v4003 = vld [vmem:[%s3998 + $0x20] sm:$0xff]
    %v4004 = vld [vmem:[%s3998 + $0x28] sm:$0xff]
    %v4005 = vld [vmem:[%s3998 + $0x30] sm:$0xff]
    %v4006 = vld [vmem:[%s3998 + $0x38] sm:$0xff]
    %v4007 = vld [vmem:[%s3998 + $0x40] sm:$0xff]
    %v4008 = vld [vmem:[%s3998 + $0x48] sm:$0xff]
    %v4009 = vld [vmem:[%s3998 + $0x50] sm:$0xff]
    %v4010 = vld [vmem:[%s3998 + $0x58] sm:$0xff]
    %v4011 = vld [vmem:[%s3998 + $0x60] sm:$0xff]
    %v4012 = vld [vmem:[%s3998 + $0x68] sm:$0xff]
    %v4013 = vld [vmem:[%s3998 + $0x70] sm:$0xff]
    %v4016 = vunpack.c.l.b16 %v2993
    %v4017 = vunpack.c.l.b16 %v2994
    %v4018 = vpack.c.b16 %v4017, %v4016
    %v4034 = vunpack.c.l.b16 %v3999
    %v4035 = vunpack.c.h.b16 %v3999
    %v4036 = vunpack.c.l.b16 %v4000
    %v4037 = vunpack.c.h.b16 %v4000
    %v4038 = vunpack.c.l.b16 %v4001
    %v4039 = vunpack.c.h.b16 %v4001
    %v4040 = vunpack.c.l.b16 %v4002
    %v4041 = vunpack.c.h.b16 %v4002
    %v4042 = vunpack.c.l.b16 %v4003
    %v4043 = vunpack.c.h.b16 %v4003
    %v4044 = vunpack.c.l.b16 %v4004
    %v4045 = vunpack.c.h.b16 %v4004
    %v4046 = vunpack.c.l.b16 %v4005
    %v4047 = vunpack.c.h.b16 %v4005
    %v4048 = vunpack.c.l.b16 %v4006
    %v4049 = vunpack.c.h.b16 %v4006
    %v4050 = vunpack.c.l.b16 %v4007
    %v4051 = vunpack.c.h.b16 %v4007
    %v4052 = vunpack.c.l.b16 %v4008
    %v4053 = vunpack.c.h.b16 %v4008
    %v4054 = vunpack.c.l.b16 %v4009
    %v4055 = vunpack.c.h.b16 %v4009
    %v4056 = vunpack.c.l.b16 %v4010
    %v4057 = vunpack.c.h.b16 %v4010
    %v4058 = vunpack.c.l.b16 %v4011
    %v4059 = vunpack.c.h.b16 %v4011
    %v4060 = vunpack.c.l.b16 %v4012
    %v4061 = vunpack.c.h.b16 %v4012
    %v4062 = vunpack.c.l.b16 %v4013
    %v4063 = vunpack.c.h.b16 %v4013
    %v4064 = vpack.c.b16 %v4036, %v4034
    %v4065 = vpack.c.b16 %v4037, %v4035
    %v4066 = vpack.c.b16 %v4040, %v4038
    %v4067 = vpack.c.b16 %v4041, %v4039
    %v4068 = vpack.c.b16 %v4044, %v4042
    %v4069 = vpack.c.b16 %v4045, %v4043
    %v4070 = vpack.c.b16 %v4048, %v4046
    %v4071 = vpack.c.b16 %v4049, %v4047
    %v4072 = vpack.c.b16 %v4052, %v4050
    %v4073 = vpack.c.b16 %v4053, %v4051
    %v4074 = vpack.c.b16 %v4056, %v4054
    %v4075 = vpack.c.b16 %v4057, %v4055
    %v4076 = vpack.c.b16 %v4060, %v4058
    %v4077 = vpack.c.b16 %v4061, %v4059
    %v4078 = vpack.c.b16 %v4062, %v4062
    %v4079 = vpack.c.b16 %v4063, %v4063
    %v4095 = vsel %vm3126, %v4018, 0
    %v4098 = vsel %vm3151, %v4078, 0
    %v4101 = vsel %vm3151, %v4079, 0
    %4103 = vmatpush.bf16.msra.mxu0 %v4098
    %4104 = vmatpush.bf16.msra.mxu0 %v4076
    %4105 = vmatpush.bf16.msra.mxu0 %v4074
    %4106 = vmatpush.bf16.msra.mxu0 %v4072
    %4107 = vmatpush.bf16.msra.mxu0 %v4070
    %4108 = vmatpush.bf16.msra.mxu0 %v4068
    %4109 = vmatpush.bf16.msra.mxu0 %v4066
    %4110 = vmatpush.bf16.msra.mxu0 %v4064
    %4111 = vmatmul.bf16.gmra.mxu0 %v3140
    %v4112 = vpop.f32.mrf.mxu0
    %v4113 = vadd.f32 0.0, %v4112
    %v4114 = vpop.f32.mrf.mxu0
    %v4115 = vadd.f32 0.0, %v4114
    %4116 = vmatmul.bf16.gmra.mxu0 %v3143
    %v4117 = vpop.f32.mrf.mxu0
    %v4118 = vadd.f32 0.0, %v4117
    %v4119 = vpop.f32.mrf.mxu0
    %v4120 = vadd.f32 0.0, %v4119
    %4121 = vmatmul.bf16.gmra.mxu0 %v3146
    %v4122 = vpop.f32.mrf.mxu0
    %v4123 = vadd.f32 0.0, %v4122
    %v4124 = vpop.f32.mrf.mxu0
    %v4125 = vadd.f32 0.0, %v4124
    %4126 = vmatmul.bf16.gmra.mxu0 %v3149
    %v4127 = vpop.f32.mrf.mxu0
    %v4128 = vadd.f32 0.0, %v4127
    %v4129 = vpop.f32.mrf.mxu0
    %v4130 = vadd.f32 0.0, %v4129
    %4131 = vmatmul.bf16.gmra.mxu0 %v3390
    %v4132 = vpop.f32.mrf.mxu0
    %v4133 = vadd.f32 0.0, %v4132
    %v4134 = vpop.f32.mrf.mxu0
    %v4135 = vadd.f32 0.0, %v4134
    %4136 = vmatmul.bf16.gmra.mxu0 %v3625
    %v4137 = vpop.f32.mrf.mxu0
    %v4138 = vadd.f32 0.0, %v4137
    %v4139 = vpop.f32.mrf.mxu0
    %v4140 = vadd.f32 0.0, %v4139
    %4141 = vmatmul.bf16.gmra.mxu0 %v3860
    %v4142 = vpop.f32.mrf.mxu0
    %v4143 = vadd.f32 0.0, %v4142
    %v4144 = vpop.f32.mrf.mxu0
    %v4145 = vadd.f32 0.0, %v4144
    %4146 = vmatmul.bf16.gmra.mxu0 %v4095
    %v4147 = vpop.f32.mrf.mxu0
    %v4148 = vadd.f32 0.0, %v4147
    %v4149 = vpop.f32.mrf.mxu0
    %v4150 = vadd.f32 0.0, %v4149
    %4151 = vdwg.mxu0
    %4152 = vmatpush.bf16.msra.mxu0 %v4101
    %4153 = vmatpush.bf16.msra.mxu0 %v4077
    %4154 = vmatpush.bf16.msra.mxu0 %v4075
    %4155 = vmatpush.bf16.msra.mxu0 %v4073
    %4156 = vmatpush.bf16.msra.mxu0 %v4071
    %4157 = vmatpush.bf16.msra.mxu0 %v4069
    %4158 = vmatpush.bf16.msra.mxu0 %v4067
    %4159 = vmatpush.bf16.msra.mxu0 %v4065
    %4160 = vmatmul.bf16.gmra.mxu0 %v3140
    %v4161 = vpop.f32.mrf.mxu0
    %v4162 = vadd.f32 0.0, %v4161
    %v4163 = vpop.f32.mrf.mxu0
    %v4164 = vadd.f32 0.0, %v4163
    %4165 = vmatmul.bf16.gmra.mxu0 %v3143
    %v4166 = vpop.f32.mrf.mxu0
    %v4167 = vadd.f32 0.0, %v4166
    %v4168 = vpop.f32.mrf.mxu0
    %v4169 = vadd.f32 0.0, %v4168
    %4170 = vmatmul.bf16.gmra.mxu0 %v3146
    %v4171 = vpop.f32.mrf.mxu0
    %v4172 = vadd.f32 0.0, %v4171
    %v4173 = vpop.f32.mrf.mxu0
    %v4174 = vadd.f32 0.0, %v4173
    %4175 = vmatmul.bf16.gmra.mxu0 %v3149
    %v4176 = vpop.f32.mrf.mxu0
    %v4177 = vadd.f32 0.0, %v4176
    %v4178 = vpop.f32.mrf.mxu0
    %v4179 = vadd.f32 0.0, %v4178
    %4180 = vmatmul.bf16.gmra.mxu0 %v3390
    %v4181 = vpop.f32.mrf.mxu0
    %v4182 = vadd.f32 0.0, %v4181
    %v4183 = vpop.f32.mrf.mxu0
    %v4184 = vadd.f32 0.0, %v4183
    %4185 = vmatmul.bf16.gmra.mxu0 %v3625
    %v4186 = vpop.f32.mrf.mxu0
    %v4187 = vadd.f32 0.0, %v4186
    %v4188 = vpop.f32.mrf.mxu0
    %v4189 = vadd.f32 0.0, %v4188
    %4190 = vmatmul.bf16.gmra.mxu0 %v3860
    %v4191 = vpop.f32.mrf.mxu0
    %v4192 = vadd.f32 0.0, %v4191
    %v4193 = vpop.f32.mrf.mxu0
    %v4194 = vadd.f32 0.0, %v4193
    %4195 = vmatmul.bf16.gmra.mxu0 %v4095
    %v4196 = vpop.f32.mrf.mxu0
    %v4197 = vadd.f32 0.0, %v4196
    %v4198 = vpop.f32.mrf.mxu0
    %v4199 = vadd.f32 0.0, %v4198
    %4200 = vdwg.mxu0
    %v4201 = vadd.f32 %v3966, %v4113
    %v4202 = vadd.f32 %v3967, %v4162
    %v4203 = vadd.f32 %v3968, %v4115
    %v4204 = vadd.f32 %v3969, %v4164
    %v4205 = vadd.f32 %v3970, %v4118
    %v4206 = vadd.f32 %v3971, %v4167
    %v4207 = vadd.f32 %v3972, %v4120
    %v4208 = vadd.f32 %v3973, %v4169
    %v4209 = vadd.f32 %v3974, %v4123
    %v4210 = vadd.f32 %v3975, %v4172
    %v4211 = vadd.f32 %v3976, %v4125
    %v4212 = vadd.f32 %v3977, %v4174
    %v4213 = vadd.f32 %v3978, %v4128
    %v4214 = vadd.f32 %v3979, %v4177
    %v4215 = vadd.f32 %v3980, %v4130
    %v4216 = vadd.f32 %v3981, %v4179
    %v4217 = vadd.f32 %v3982, %v4133
    %v4218 = vadd.f32 %v3983, %v4182
    %v4219 = vadd.f32 %v3984, %v4135
    %v4220 = vadd.f32 %v3985, %v4184
    %v4221 = vadd.f32 %v3986, %v4138
    %v4222 = vadd.f32 %v3987, %v4187
    %v4223 = vadd.f32 %v3988, %v4140
    %v4224 = vadd.f32 %v3989, %v4189
    %v4225 = vadd.f32 %v3990, %v4143
    %v4226 = vadd.f32 %v3991, %v4192
    %v4227 = vadd.f32 %v3992, %v4145
    %v4228 = vadd.f32 %v3993, %v4194
    %v4229 = vadd.f32 %v3994, %v4148
    %v4230 = vadd.f32 %v3995, %v4197
    %v4231 = vadd.f32 %v3996, %v4150
    %v4232 = vadd.f32 %v3997, %v4199
    %v4233 = vmax.f32 %v4201, %v4205
    %v4234 = vmax.f32 %v4202, %v4206
    %v4235 = vmax.f32 %v4203, %v4207
    %v4236 = vmax.f32 %v4204, %v4208
    %v4237 = vmax.f32 %v4209, %v4213
    %v4238 = vmax.f32 %v4210, %v4214
    %v4239 = vmax.f32 %v4211, %v4215
    %v4240 = vmax.f32 %v4212, %v4216
    %v4241 = vmax.f32 %v4217, %v4221
    %v4242 = vmax.f32 %v4218, %v4222
    %v4243 = vmax.f32 %v4219, %v4223
    %v4244 = vmax.f32 %v4220, %v4224
    %v4245 = vmax.f32 %v4225, %v4229
    %v4246 = vmax.f32 %v4226, %v4230
    %v4247 = vmax.f32 %v4227, %v4231
    %v4248 = vmax.f32 %v4228, %v4232
    %vm4249 = vcmask 1047808
    %4250 = vrot.lane.b32.xlu0 %v4233, 32
    %v4251 = vpop.permute.xlu0 %4250
    %4252 = vrot.lane.b32.xlu0 %v4235, 32
    %v4253 = vpop.permute.xlu0 %4252
    %4254 = vrot.lane.b32.xlu0 %v4237, 32
    %v4255 = vpop.permute.xlu0 %4254
    %4256 = vrot.lane.b32.xlu0 %v4239, 32
    %v4257 = vpop.permute.xlu0 %4256
    %4258 = vrot.lane.b32.xlu0 %v4241, 32
    %v4259 = vpop.permute.xlu0 %4258
    %4260 = vrot.lane.b32.xlu0 %v4243, 32
    %v4261 = vpop.permute.xlu0 %4260
    %4262 = vrot.lane.b32.xlu0 %v4245, 32
    %v4263 = vpop.permute.xlu0 %4262
    %4264 = vrot.lane.b32.xlu0 %v4247, 32
    %v4265 = vpop.permute.xlu0 %4264
    %v4266 = vsel %vm4249, %v4251, %v4234
    %v4267 = vsel %vm4249, %v4253, %v4236
    %v4268 = vsel %vm4249, %v4255, %v4238
    %v4269 = vsel %vm4249, %v4257, %v4240
    %v4270 = vsel %vm4249, %v4259, %v4242
    %v4271 = vsel %vm4249, %v4261, %v4244
    %v4272 = vsel %vm4249, %v4263, %v4246
    %v4273 = vsel %vm4249, %v4265, %v4248
    %4290 = vrot.lane.b32.xlu0 %v4233, 127
    %v4291 = vpop.permute.xlu0 %4290
    %4292 = vrot.lane.b32.xlu0 %v4266, 127
    %v4293 = vpop.permute.xlu0 %4292
    %4294 = vrot.lane.b32.xlu0 %v4235, 127
    %v4295 = vpop.permute.xlu0 %4294
    %4296 = vrot.lane.b32.xlu0 %v4267, 127
    %v4297 = vpop.permute.xlu0 %4296
    %4298 = vrot.lane.b32.xlu0 %v4237, 127
    %v4299 = vpop.permute.xlu0 %4298
    %4300 = vrot.lane.b32.xlu0 %v4268, 127
    %v4301 = vpop.permute.xlu0 %4300
    %4302 = vrot.lane.b32.xlu0 %v4239, 127
    %v4303 = vpop.permute.xlu0 %4302
    %4304 = vrot.lane.b32.xlu0 %v4269, 127
    %v4305 = vpop.permute.xlu0 %4304
    %4306 = vrot.lane.b32.xlu0 %v4241, 127
    %v4307 = vpop.permute.xlu0 %4306
    %4308 = vrot.lane.b32.xlu0 %v4270, 127
    %v4309 = vpop.permute.xlu0 %4308
    %4310 = vrot.lane.b32.xlu0 %v4243, 127
    %v4311 = vpop.permute.xlu0 %4310
    %4312 = vrot.lane.b32.xlu0 %v4271, 127
    %v4313 = vpop.permute.xlu0 %4312
    %4314 = vrot.lane.b32.xlu0 %v4245, 127
    %v4315 = vpop.permute.xlu0 %4314
    %4316 = vrot.lane.b32.xlu0 %v4272, 127
    %v4317 = vpop.permute.xlu0 %4316
    %4318 = vrot.lane.b32.xlu0 %v4247, 127
    %v4319 = vpop.permute.xlu0 %4318
    %4320 = vrot.lane.b32.xlu0 %v4273, 127
    %v4321 = vpop.permute.xlu0 %4320
    %v4322 = vsel %vm2507, %v4291, %v4293
    %v4323 = vsel %vm2507, %v4295, %v4297
    %v4324 = vsel %vm2507, %v4299, %v4301
    %v4325 = vsel %vm2507, %v4303, %v4305
    %v4326 = vsel %vm2507, %v4307, %v4309
    %v4327 = vsel %vm2507, %v4311, %v4313
    %v4328 = vsel %vm2507, %v4315, %v4317
    %v4329 = vsel %vm2507, %v4319, %v4321
    %v4346 = vmax.f32 %v4233, %v4322
    %v4347 = vmax.f32 %v4234, %v4293
    %v4348 = vmax.f32 %v4235, %v4323
    %v4349 = vmax.f32 %v4236, %v4297
    %v4350 = vmax.f32 %v4237, %v4324
    %v4351 = vmax.f32 %v4238, %v4301
    %v4352 = vmax.f32 %v4239, %v4325
    %v4353 = vmax.f32 %v4240, %v4305
    %v4354 = vmax.f32 %v4241, %v4326
    %v4355 = vmax.f32 %v4242, %v4309
    %v4356 = vmax.f32 %v4243, %v4327
    %v4357 = vmax.f32 %v4244, %v4313
    %v4358 = vmax.f32 %v4245, %v4328
    %v4359 = vmax.f32 %v4246, %v4317
    %v4360 = vmax.f32 %v4247, %v4329
    %v4361 = vmax.f32 %v4248, %v4321
    %v4362 = vpack.c.bf16 %v4348, %v4346
    %v4363 = vpack.c.bf16 %v4349, %v4347
    %v4364 = vpack.c.bf16 %v4352, %v4350
    %v4365 = vpack.c.bf16 %v4353, %v4351
    %v4366 = vpack.c.bf16 %v4356, %v4354
    %v4367 = vpack.c.bf16 %v4357, %v4355
    %v4368 = vpack.c.bf16 %v4360, %v4358
    %v4369 = vpack.c.bf16 %v4361, %v4359
    %v4370 = vld [vmem:[%s6] sm:$0xf]
    %v4371 = vld [vmem:[%s6 + $0x4] sm:$0xf]
    %v4372 = vld [vmem:[%s6 + $0x8] sm:$0xf]
    %v4373 = vld [vmem:[%s6 + $0xc] sm:$0xf]
    %v4374 = vld [vmem:[%s6 + $0x10] sm:$0xf]
    %v4375 = vld [vmem:[%s6 + $0x14] sm:$0xf]
    %v4376 = vld [vmem:[%s6 + $0x18] sm:$0xf]
    %v4377 = vld [vmem:[%s6 + $0x1c] sm:$0xf]
    %v4378 = vld [vmem:[%s6 + $0x20] sm:$0xf]
    %v4379 = vld [vmem:[%s6 + $0x24] sm:$0xf]
    %v4380 = vld [vmem:[%s6 + $0x28] sm:$0xf]
    %v4381 = vld [vmem:[%s6 + $0x2c] sm:$0xf]
    %v4382 = vld [vmem:[%s6 + $0x30] sm:$0xf]
    %v4383 = vld [vmem:[%s6 + $0x34] sm:$0xf]
    %v4384 = vld [vmem:[%s6 + $0x38] sm:$0xf]
    %v4385 = vld [vmem:[%s6 + $0x3c] sm:$0xf]
    %v4386 = vld [vmem:[%s6 + $0x40] sm:$0xf]
    %v4387 = vld [vmem:[%s6 + $0x44] sm:$0xf]
    %v4388 = vld [vmem:[%s6 + $0x48] sm:$0xf]
    %v4389 = vld [vmem:[%s6 + $0x4c] sm:$0xf]
    %v4410 = vunpack.c.l.b16 %v4370
    %v4411 = vunpack.c.l.b16 %v4371
    %v4412 = vunpack.c.l.b16 %v4372
    %v4413 = vunpack.c.l.b16 %v4373
    %v4414 = vunpack.c.l.b16 %v4374
    %v4415 = vunpack.c.l.b16 %v4375
    %v4416 = vunpack.c.l.b16 %v4376
    %v4417 = vunpack.c.l.b16 %v4377
    %v4418 = vunpack.c.l.b16 %v4378
    %v4419 = vunpack.c.l.b16 %v4379
    %v4420 = vunpack.c.l.b16 %v4380
    %v4421 = vunpack.c.l.b16 %v4381
    %v4422 = vunpack.c.l.b16 %v4382
    %v4423 = vunpack.c.l.b16 %v4383
    %v4424 = vunpack.c.l.b16 %v4384
    %v4425 = vunpack.c.l.b16 %v4385
    %v4426 = vunpack.c.l.b16 %v4386
    %v4427 = vunpack.c.l.b16 %v4387
    %v4428 = vunpack.c.l.b16 %v4388
    %v4429 = vunpack.c.l.b16 %v4389
    %v4430 = vpack.c.b16 %v4411, %v4410
    %v4431 = vpack.c.b16 %v4413, %v4412
    %v4432 = vpack.c.b16 %v4415, %v4414
    %v4433 = vpack.c.b16 %v4417, %v4416
    %v4434 = vpack.c.b16 %v4419, %v4418
    %v4435 = vpack.c.b16 %v4421, %v4420
    %v4436 = vpack.c.b16 %v4423, %v4422
    %v4437 = vpack.c.b16 %v4425, %v4424
    %v4438 = vpack.c.b16 %v4427, %v4426
    %v4439 = vpack.c.b16 %v4429, %v4428
    %vm4450 = vcmask 261120
    %v4452 = vsel %vm4450, %v4363, 0
    %v4455 = vsel %vm4450, %v4365, 0
    %v4458 = vsel %vm4450, %v4367, 0
    %v4461 = vsel %vm4450, %v4369, 0
    %4463 = vmatpush.bf16.msra.mxu0 %v4437
    %4464 = vmatpush.bf16.msra.mxu0 %v4436
    %4465 = vmatpush.bf16.msra.mxu0 %v4435
    %4466 = vmatpush.bf16.msra.mxu0 %v4434
    %4467 = vmatpush.bf16.msra.mxu0 %v4433
    %4468 = vmatpush.bf16.msra.mxu0 %v4432
    %4469 = vmatpush.bf16.msra.mxu0 %v4431
    %4470 = vmatpush.bf16.msra.mxu0 %v4430
    %4471 = vmatmul.bf16.gmra.mxu0 %v4362
    %v4472 = vpop.f32.mrf.mxu0
    %v4473 = vadd.f32 0.0, %v4472
    %v4474 = vpop.f32.mrf.mxu0
    %v4475 = vadd.f32 0.0, %v4474
    %4476 = vmatmul.bf16.gmra.mxu0 %v4364
    %v4477 = vpop.f32.mrf.mxu0
    %v4478 = vadd.f32 0.0, %v4477
    %v4479 = vpop.f32.mrf.mxu0
    %v4480 = vadd.f32 0.0, %v4479
    %4481 = vmatmul.bf16.gmra.mxu0 %v4366
    %v4482 = vpop.f32.mrf.mxu0
    %v4483 = vadd.f32 0.0, %v4482
    %v4484 = vpop.f32.mrf.mxu0
    %v4485 = vadd.f32 0.0, %v4484
    %4486 = vmatmul.bf16.gmra.mxu0 %v4368
    %v4487 = vpop.f32.mrf.mxu0
    %v4488 = vadd.f32 0.0, %v4487
    %v4489 = vpop.f32.mrf.mxu0
    %v4490 = vadd.f32 0.0, %v4489
    %4491 = vdwg.mxu0
    %4492 = vmatpush.bf16.msra.mxu0 0
    %4493 = vmatpush.bf16.msra.mxu0 0
    %4494 = vmatpush.bf16.msra.mxu0 0
    %4495 = vmatpush.bf16.msra.mxu0 0
    %4496 = vmatpush.bf16.msra.mxu0 0
    %4497 = vmatpush.bf16.msra.mxu0 0
    %4498 = vmatpush.bf16.msra.mxu0 %v4439
    %4499 = vmatpush.bf16.msra.mxu0 %v4438
    %4500 = vmatmul.bf16.gmra.mxu0 %v4452
    %v4501 = vpop.f32.mrf.mxu0
    %v4502 = vadd.f32 %v4473, %v4501
    %v4503 = vpop.f32.mrf.mxu0
    %v4504 = vadd.f32 %v4475, %v4503
    %4505 = vmatmul.bf16.gmra.mxu0 %v4455
    %v4506 = vpop.f32.mrf.mxu0
    %v4507 = vadd.f32 %v4478, %v4506
    %v4508 = vpop.f32.mrf.mxu0
    %v4509 = vadd.f32 %v4480, %v4508
    %4510 = vmatmul.bf16.gmra.mxu0 %v4458
    %v4511 = vpop.f32.mrf.mxu0
    %v4512 = vadd.f32 %v4483, %v4511
    %v4513 = vpop.f32.mrf.mxu0
    %v4514 = vadd.f32 %v4485, %v4513
    %4515 = vmatmul.bf16.gmra.mxu0 %v4461
    %v4516 = vpop.f32.mrf.mxu0
    %v4517 = vadd.f32 %v4488, %v4516
    %v4518 = vpop.f32.mrf.mxu0
    %v4519 = vadd.f32 %v4490, %v4518
    %4520 = vdwg.mxu0
    %v4521 = vmax.f32 %v4502, 0.0
    %v4522 = vmax.f32 %v4504, 0.0
    %v4523 = vmax.f32 %v4507, 0.0
    %v4524 = vmax.f32 %v4509, 0.0
    %v4525 = vmax.f32 %v4512, 0.0
    %v4526 = vmax.f32 %v4514, 0.0
    %v4527 = vmax.f32 %v4517, 0.0
    %v4528 = vmax.f32 %v4519, 0.0
    %v4529 = vpack.c.bf16 %v4521, %v4521
    %v4530 = vpack.c.bf16 %v4522, %v4522
    %v4531 = vpack.c.bf16 %v4523, %v4523
    %v4532 = vpack.c.bf16 %v4524, %v4524
    %v4533 = vpack.c.bf16 %v4525, %v4525
    %v4534 = vpack.c.bf16 %v4526, %v4526
    %v4535 = vpack.c.bf16 %v4527, %v4527
    %v4536 = vpack.c.bf16 %v4528, %v4528
    %v4537 = vld [vmem:[%s7] sm:$0xf]
    %v4538 = vld [vmem:[%s7 + $0x4] sm:$0xf]
    %v4539 = vld [vmem:[%s7 + $0x8] sm:$0xf]
    %v4540 = vld [vmem:[%s7 + $0xc] sm:$0xf]
    %v4541 = vld [vmem:[%s7 + $0x10] sm:$0xf]
    %v4542 = vld [vmem:[%s7 + $0x14] sm:$0xf]
    %v4543 = vld [vmem:[%s7 + $0x18] sm:$0xf]
    %v4544 = vld [vmem:[%s7 + $0x1c] sm:$0xf]
    %v4545 = vld [vmem:[%s7 + $0x20] sm:$0xf]
    %v4546 = vld [vmem:[%s7 + $0x24] sm:$0xf]
    %s4547 = scalar_lea.vmem %s7, 40
    %v4548 = vld [vmem:[%s4547] sm:$0xf]
    %v4549 = vld [vmem:[%s4547 + $0x4] sm:$0xf]
    %v4550 = vld [vmem:[%s4547 + $0x8] sm:$0xf]
    %v4551 = vld [vmem:[%s4547 + $0xc] sm:$0xf]
    %v4552 = vld [vmem:[%s4547 + $0x10] sm:$0xf]
    %v4553 = vld [vmem:[%s4547 + $0x14] sm:$0xf]
    %v4554 = vld [vmem:[%s4547 + $0x18] sm:$0xf]
    %v4555 = vld [vmem:[%s4547 + $0x1c] sm:$0xf]
    %v4556 = vld [vmem:[%s4547 + $0x20] sm:$0xf]
    %v4557 = vld [vmem:[%s4547 + $0x24] sm:$0xf]
    %v4560 = vunpack.c.l.b16 %v4531
    %v4561 = vunpack.c.l.b16 %v4532
    %v4562 = vpack.c.b16 %v4561, %v4560
    %v4573 = vunpack.c.l.b16 %v4548
    %v4574 = vunpack.c.l.b16 %v4549
    %v4575 = vunpack.c.l.b16 %v4550
    %v4576 = vunpack.c.l.b16 %v4551
    %v4577 = vunpack.c.l.b16 %v4552
    %v4578 = vunpack.c.l.b16 %v4553
    %v4579 = vunpack.c.l.b16 %v4554
    %v4580 = vunpack.c.l.b16 %v4555
    %v4581 = vunpack.c.l.b16 %v4556
    %v4582 = vunpack.c.l.b16 %v4557
    %v4583 = vpack.c.b16 %v4574, %v4573
    %v4584 = vpack.c.b16 %v4576, %v4575
    %v4585 = vpack.c.b16 %v4578, %v4577
    %v4586 = vpack.c.b16 %v4580, %v4579
    %v4587 = vpack.c.b16 %v4582, %v4581
    %vm4593 = vcmask 654336
    %v4595 = vsel %vm4593, %v4562, 0
    %4597 = vmatpush.bf16.msra.mxu0 0
    %4598 = vmatpush.bf16.msra.mxu0 0
    %4599 = vmatpush.bf16.msra.mxu0 0
    %4600 = vmatpush.bf16.msra.mxu0 %v4587
    %4601 = vmatpush.bf16.msra.mxu0 %v4586
    %4602 = vmatpush.bf16.msra.mxu0 %v4585
    %4603 = vmatpush.bf16.msra.mxu0 %v4584
    %4604 = vmatpush.bf16.msra.mxu0 %v4583
    %4605 = vmatmul.bf16.gmra.mxu0 %v4595
    %v4606 = vpop.f32.mrf.mxu0
    %v4607 = vadd.f32 0.0, %v4606
    %v4608 = vpop.f32.mrf.mxu0
    %v4609 = vadd.f32 0.0, %v4608
    %4610 = vdwg.mxu0
    %v4613 = vunpack.c.l.b16 %v4529
    %v4614 = vunpack.c.l.b16 %v4530
    %v4615 = vpack.c.b16 %v4614, %v4613
    %v4626 = vunpack.c.l.b16 %v4537
    %v4627 = vunpack.c.l.b16 %v4538
    %v4628 = vunpack.c.l.b16 %v4539
    %v4629 = vunpack.c.l.b16 %v4540
    %v4630 = vunpack.c.l.b16 %v4541
    %v4631 = vunpack.c.l.b16 %v4542
    %v4632 = vunpack.c.l.b16 %v4543
    %v4633 = vunpack.c.l.b16 %v4544
    %v4634 = vunpack.c.l.b16 %v4545
    %v4635 = vunpack.c.l.b16 %v4546
    %v4636 = vpack.c.b16 %v4627, %v4626
    %v4637 = vpack.c.b16 %v4629, %v4628
    %v4638 = vpack.c.b16 %v4631, %v4630
    %v4639 = vpack.c.b16 %v4633, %v4632
    %v4640 = vpack.c.b16 %v4635, %v4634
    %v4647 = vsel %vm4593, %v4615, 0
    %4649 = vmatpush.bf16.msra.mxu0 0
    %4650 = vmatpush.bf16.msra.mxu0 0
    %4651 = vmatpush.bf16.msra.mxu0 0
    %4652 = vmatpush.bf16.msra.mxu0 %v4640
    %4653 = vmatpush.bf16.msra.mxu0 %v4639
    %4654 = vmatpush.bf16.msra.mxu0 %v4638
    %4655 = vmatpush.bf16.msra.mxu0 %v4637
    %4656 = vmatpush.bf16.msra.mxu0 %v4636
    %4657 = vmatmul.bf16.gmra.mxu0 %v4647
    %v4658 = vpop.f32.mrf.mxu0
    %v4659 = vadd.f32 %v4607, %v4658
    %v4660 = vpop.f32.mrf.mxu0
    %v4661 = vadd.f32 %v4609, %v4660
    %4662 = vdwg.mxu0
    %s4663 = scalar_lea.vmem %s7, 80
    %v4664 = vld [vmem:[%s4663] sm:$0xf]
    %v4665 = vld [vmem:[%s4663 + $0x4] sm:$0xf]
    %v4666 = vld [vmem:[%s4663 + $0x8] sm:$0xf]
    %v4667 = vld [vmem:[%s4663 + $0xc] sm:$0xf]
    %v4668 = vld [vmem:[%s4663 + $0x10] sm:$0xf]
    %v4669 = vld [vmem:[%s4663 + $0x14] sm:$0xf]
    %v4670 = vld [vmem:[%s4663 + $0x18] sm:$0xf]
    %v4671 = vld [vmem:[%s4663 + $0x1c] sm:$0xf]
    %v4672 = vld [vmem:[%s4663 + $0x20] sm:$0xf]
    %v4673 = vld [vmem:[%s4663 + $0x24] sm:$0xf]
    %v4676 = vunpack.c.l.b16 %v4533
    %v4677 = vunpack.c.l.b16 %v4534
    %v4678 = vpack.c.b16 %v4677, %v4676
    %v4689 = vunpack.c.l.b16 %v4664
    %v4690 = vunpack.c.l.b16 %v4665
    %v4691 = vunpack.c.l.b16 %v4666
    %v4692 = vunpack.c.l.b16 %v4667
    %v4693 = vunpack.c.l.b16 %v4668
    %v4694 = vunpack.c.l.b16 %v4669
    %v4695 = vunpack.c.l.b16 %v4670
    %v4696 = vunpack.c.l.b16 %v4671
    %v4697 = vunpack.c.l.b16 %v4672
    %v4698 = vunpack.c.l.b16 %v4673
    %v4699 = vpack.c.b16 %v4690, %v4689
    %v4700 = vpack.c.b16 %v4692, %v4691
    %v4701 = vpack.c.b16 %v4694, %v4693
    %v4702 = vpack.c.b16 %v4696, %v4695
    %v4703 = vpack.c.b16 %v4698, %v4697
    %v4710 = vsel %vm4593, %v4678, 0
    %4712 = vmatpush.bf16.msra.mxu0 0
    %4713 = vmatpush.bf16.msra.mxu0 0
    %4714 = vmatpush.bf16.msra.mxu0 0
    %4715 = vmatpush.bf16.msra.mxu0 %v4703
    %4716 = vmatpush.bf16.msra.mxu0 %v4702
    %4717 = vmatpush.bf16.msra.mxu0 %v4701
    %4718 = vmatpush.bf16.msra.mxu0 %v4700
    %4719 = vmatpush.bf16.msra.mxu0 %v4699
    %4720 = vmatmul.bf16.gmra.mxu0 %v4710
    %v4721 = vpop.f32.mrf.mxu0
    %v4722 = vadd.f32 0.0, %v4721
    %v4723 = vpop.f32.mrf.mxu0
    %v4724 = vadd.f32 0.0, %v4723
    %4725 = vdwg.mxu0
    %v4726 = vadd.f32 %v4659, %v4722
    %v4727 = vadd.f32 %v4661, %v4724
    %s4728 = scalar_lea.vmem %s7, 120
    %v4729 = vld [vmem:[%s4728] sm:$0xf]
    %v4730 = vld [vmem:[%s4728 + $0x4] sm:$0xf]
    %v4731 = vld [vmem:[%s4728 + $0x8] sm:$0xf]
    %v4732 = vld [vmem:[%s4728 + $0xc] sm:$0xf]
    %v4733 = vld [vmem:[%s4728 + $0x10] sm:$0xf]
    %v4734 = vld [vmem:[%s4728 + $0x14] sm:$0xf]
    %v4735 = vld [vmem:[%s4728 + $0x18] sm:$0xf]
    %v4736 = vld [vmem:[%s4728 + $0x1c] sm:$0xf]
    %v4737 = vld [vmem:[%s4728 + $0x20] sm:$0xf]
    %v4738 = vld [vmem:[%s4728 + $0x24] sm:$0xf]
    %v4741 = vunpack.c.l.b16 %v4535
    %v4742 = vunpack.c.l.b16 %v4536
    %v4743 = vpack.c.b16 %v4742, %v4741
    %v4754 = vunpack.c.l.b16 %v4729
    %v4755 = vunpack.c.l.b16 %v4730
    %v4756 = vunpack.c.l.b16 %v4731
    %v4757 = vunpack.c.l.b16 %v4732
    %v4758 = vunpack.c.l.b16 %v4733
    %v4759 = vunpack.c.l.b16 %v4734
    %v4760 = vunpack.c.l.b16 %v4735
    %v4761 = vunpack.c.l.b16 %v4736
    %v4762 = vunpack.c.l.b16 %v4737
    %v4763 = vunpack.c.l.b16 %v4738
    %v4764 = vpack.c.b16 %v4755, %v4754
    %v4765 = vpack.c.b16 %v4757, %v4756
    %v4766 = vpack.c.b16 %v4759, %v4758
    %v4767 = vpack.c.b16 %v4761, %v4760
    %v4768 = vpack.c.b16 %v4763, %v4762
    %v4775 = vsel %vm4593, %v4743, 0
    %4777 = vmatpush.bf16.msra.mxu0 0
    %4778 = vmatpush.bf16.msra.mxu0 0
    %4779 = vmatpush.bf16.msra.mxu0 0
    %4780 = vmatpush.bf16.msra.mxu0 %v4768
    %4781 = vmatpush.bf16.msra.mxu0 %v4767
    %4782 = vmatpush.bf16.msra.mxu0 %v4766
    %4783 = vmatpush.bf16.msra.mxu0 %v4765
    %4784 = vmatpush.bf16.msra.mxu0 %v4764
    %4785 = vmatmul.bf16.gmra.mxu0 %v4775
    %v4786 = vpop.f32.mrf.mxu0
    %v4787 = vadd.f32 0.0, %v4786
    %v4788 = vpop.f32.mrf.mxu0
    %v4789 = vadd.f32 0.0, %v4788
    %4790 = vdwg.mxu0
    %v4791 = vadd.f32 %v4726, %v4787
    %v4792 = vadd.f32 %v4727, %v4789
    %v4793 = vld [vmem:[%s8] sm:$0x1]
    %v4795 = vperm.slane %v4793, 0
    %v4797 = vadd.f32 %v4791, %v4795
    %v4798 = vadd.f32 %v4792, %v4795
    %v4799 = vmax.f32 %v4797, 0.0
    %v4800 = vmax.f32 %v4798, 0.0
    %v4801 = vpack.c.bf16 %v4800, %v4799
    %v4802 = vld [vmem:[%s9] sm:$0xf]
    %v4803 = vld [vmem:[%s9 + $0x4] sm:$0xf]
    %v4804 = vld [vmem:[%s9 + $0x8] sm:$0xf]
    %v4805 = vld [vmem:[%s9 + $0xc] sm:$0xf]
    %v4806 = vld [vmem:[%s9 + $0x10] sm:$0xf]
    %v4807 = vld [vmem:[%s9 + $0x14] sm:$0xf]
    %v4808 = vld [vmem:[%s9 + $0x18] sm:$0x1]
    %v4809 = vld [vmem:[%s10] sm:$0x1]
    %v4811 = vperm.slane %v4809, 0
    %v4820 = vunpack.c.l.b16 %v4802
    %v4821 = vunpack.c.l.b16 %v4803
    %v4822 = vunpack.c.l.b16 %v4804
    %v4823 = vunpack.c.l.b16 %v4805
    %v4824 = vunpack.c.l.b16 %v4806
    %v4825 = vunpack.c.l.b16 %v4807
    %v4826 = vunpack.c.l.b16 %v4808
    %v4827 = vpack.c.b16 %v4821, %v4820
    %v4828 = vpack.c.b16 %v4823, %v4822
    %v4829 = vpack.c.b16 %v4825, %v4824
    %v4830 = vpack.c.b16 %v4826, %v4826
    %vm4834 = vcmask 408576
    %v4836 = vsel %vm4834, %v4801, 0
    %vm4838 = vcmask 1040384
    %v4840 = vsel %vm4838, %v4830, 0
    %4842 = vmatpush.bf16.msra.mxu0 0
    %4843 = vmatpush.bf16.msra.mxu0 0
    %4844 = vmatpush.bf16.msra.mxu0 0
    %4845 = vmatpush.bf16.msra.mxu0 0
    %4846 = vmatpush.bf16.msra.mxu0 %v4840
    %4847 = vmatpush.bf16.msra.mxu0 %v4829
    %4848 = vmatpush.bf16.msra.mxu0 %v4828
    %4849 = vmatpush.bf16.msra.mxu0 %v4827
    %4850 = vmatmul.bf16.gmra.mxu0 %v4836
    %v4851 = vpop.f32.mrf.mxu0
    %v4852 = vadd.f32 %v4811, %v4851
    %v4853 = vpop.f32.mrf.mxu0
    %v4854 = vadd.f32 %v4811, %v4853
    %4855 = vdwg.mxu0
    %vm4856 = vcmask 80896
    %v4857 = vsel %vm4856, %v4852, -inf
    %4858 = vmax.xlane.f32.xlu0 %v4857
    %v4859 = vpop.xlane.xlu0 %4858
    %v4860 = vsel %vm4856, %v4854, -inf
    %4861 = vmax.xlane.f32.xlu0 %v4860
    %v4862 = vpop.xlane.xlu0 %4861
    %v4863 = vsub.f32 %v4852, %v4859
    %v4864 = vsub.f32 %v4854, %v4862
    %v4865 = vmul.f32 %v4863, 1.442695
    %v4866 = vpow.pop %v4865
    %v4867 = vmul.f32 %v4864, 1.442695
    %v4868 = vpow.pop %v4867
    %v4869 = vsel %vm4856, %v4866, 0.0
    %4870 = vadd.xlane.f32.xlu0 %v4869
    %v4871 = vpop.xlane.xlu0 %4870
    %v4872 = vsel %vm4856, %v4868, 0.0
    %4873 = vadd.xlane.f32.xlu0 %v4872
    %v4874 = vpop.xlane.xlu0 %4873
    %v4875 = vlog2.pop %v4871
    %v4876 = vmul.f32 %v4875, 0.6931472
    %v4877 = vlog2.pop %v4874
    %v4878 = vmul.f32 %v4877, 0.6931472
    %v4879 = vsub.f32 %v4863, %v4876
    %v4880 = vsub.f32 %v4864, %v4878
    %4881 = vst.msk [vmem:[#allocation2] sm:$0xff] %vm4856, %v4879
    %4882 = vst.msk [vmem:[#allocation2 + $0x8] sm:$0xff] %vm4856, %v4880
    // Predicated region
    $region46: #{tpu_custom_call.1} parent=1 // pred_check
      _
    $region47: #{tpu_custom_call.1} parent=1 // pred_check_branch
      %4884 = sbr.rel (0) target = $region49
    $region48: #{tpu_custom_call.1} parent=1 // pred_region
      %4886 = vsyncadd [#allocation3], 0
      %s4887 = sshll.u32 [#allocation2], 4
      %s4888 = int_to_ptr.vmem [resolvable:$true] %s4887
      %s4889 = sshll.u32 %s11, 4
      %s4890 = int_to_ptr.hbm [resolvable:$true] %s4889
      %4895 = dma.vmem_to_hbm [thread:$0]  %s4888, 256, %s4890, [#allocation3], 128, 128, 8
    $region49: #{tpu_custom_call.1} parent=1 // pred_fallthru
      _
    // Predicated region
    $region50: #{tpu_custom_call.1} parent=1 // pred_check
      _
    $region51: #{tpu_custom_call.1} parent=1 // pred_check_branch
      %4897 = sbr.rel (0) target = $region53
    $region52: #{tpu_custom_call.1} parent=1 // pred_region
      %4899 = dma.done [#allocation3], 256
    $region53: #{tpu_custom_call.1} parent=1 // pred_fallthru
      _
    %4900 = vsyncpa [#allocation3], 1

</llo_original>
